<compile_context>
chip_gen: v5e
topology: v5e:2x2
jax: 0.10.0
libtpu: 0.0.40
codegen_flags: <defaults>
</compile_context>

<pallas_src>
import functools

import jax
import jax.numpy as jnp
from jax.experimental import pallas as pl
from jax.experimental.pallas import tpu as pltpu

# ---------------- scaled-down BERT config (lane-dense widths) ----------------
VOCAB = 128
MAX_POS = 32
TYPE_VOCAB = 2
HIDDEN = 128          # stands in for 768 (multiple of 128 -> lane-dense)
N_HEADS = 2
HEAD_DIM = HIDDEN // N_HEADS
INTER = 4 * HIDDEN    # stands in for 3072
N_LAYERS = 2
HEAD_H = 128          # stands in for the 512-wide regression head
LN_EPS = 1e-12


# ---------------- in-kernel helpers ----------------
def _layernorm(x, g, b):
    # single-pass statistics: var = E[x^2] - E[x]^2 (halves cross-lane reductions)
    mean = jnp.mean(x, axis=-1, keepdims=True)
    meansq = jnp.mean(x * x, axis=-1, keepdims=True)
    var = meansq - mean * mean
    return (x - mean) * jax.lax.rsqrt(var + LN_EPS) * g + b


# ---------------- single fused kernel: one grid step = one transformer layer ----------------
def _bert_kernel(word_ref, pos_ref, typ_ref, mask_ref,
                 embg_ref, embb_ref,
                 wqkv_ref, bqkv_ref, wo_ref, bo_ref, ln1g_ref, ln1b_ref,
                 w1_ref, b1_ref, w2_ref, b2_ref, ln2g_ref, ln2b_ref,
                 pw_ref, pb_ref, l2w_ref, l2b_ref, l3w_ref, l3b_ref,
                 l4w_ref, l4b_ref,
                 o_ref,                       # (B, 1) regression output
                 x_ref,                       # VMEM scratch: resident activation (B*S, H) f32
                 *, B, S, n_heads, head_dim):
    H = n_heads * head_dim
    scale = 1.0 / (head_dim ** 0.5)
    f32 = jnp.float32
    bf16 = jnp.bfloat16

    # ---- layer 0: word+pos+type sum and embedding LayerNorm computed in-kernel ----
    @pl.when(pl.program_id(0) == 0)
    def _():
        e = (word_ref[...].astype(f32).reshape(B, S, H)
             + typ_ref[...].astype(f32).reshape(B, S, H)
             + pos_ref[...].astype(f32)[None, :, :]).reshape(B * S, H)
        x_ref[...] = _layernorm(e, embg_ref[...].astype(f32), embb_ref[...].astype(f32))

    x = x_ref[...]                                                     # (B*S, H) f32

    # HF-style additive mask computed in-register (tiny; keeps XLA glue out)
    addmask = (1.0 - mask_ref[...].astype(f32)) * -10000.0             # (B, 1, S)

    # ---- self-attention: fused QKV projection (bf16 weights, f32 accumulate) ----
    qkv = (jnp.dot(x.astype(bf16), wqkv_ref[0], preferred_element_type=f32)
           + bqkv_ref[0].astype(f32))                                  # (B*S, 3H)
    q = qkv[:, 0 * H:1 * H].reshape(B, S, H)                           # 128-aligned slices
    k = qkv[:, 1 * H:2 * H].reshape(B, S, H)
    v = qkv[:, 2 * H:3 * H].reshape(B, S, H)
    kb = k.astype(bf16)

    # Head split via disjoint lane masks (VPU multiplies) instead of 64-lane slices
    # + concat: zero unaligned XLU lane shuffles; extra MXU work is negligible here.
    lane = jax.lax.broadcasted_iota(jnp.int32, (1, H), 1)
    ctx = jnp.zeros((B, S, H), f32)
    for h in range(n_heads):                                           # static unroll
        hmask = jnp.where((lane >= h * head_dim) & (lane < (h + 1) * head_dim), 1.0, 0.0)
        qh = (q * hmask).astype(bf16)
        s = jnp.einsum('bqd,bkd->bqk', qh, kb, preferred_element_type=f32) * scale
        s = s + addmask                                                # (B,1,S) broadcast
        s = s - jnp.max(s, axis=-1, keepdims=True)
        p = jnp.exp(s)
        p = p * pl.reciprocal(jnp.sum(p, axis=-1, keepdims=True), approx=True)
        vh = (v * hmask).astype(bf16)
        ctx = ctx + jnp.einsum('bqk,bkd->bqd', p.astype(bf16), vh,
                               preferred_element_type=f32)
    ctx = ctx.reshape(B * S, H)

    attn = (jnp.dot(ctx.astype(bf16), wo_ref[0], preferred_element_type=f32)
            + bo_ref[0].astype(f32))
    x = _layernorm(attn + x, ln1g_ref[0].astype(f32), ln1b_ref[0].astype(f32))

    # ---- feed-forward ----
    ff = (jnp.dot(x.astype(bf16), w1_ref[0], preferred_element_type=f32)
          + b1_ref[0].astype(f32))
    # TODO(synk): HF bert-base-uncased uses the exact-erf GELU; tanh approximation is
    # used because erf lowering in Mosaic is not guaranteed.
    ff = jax.nn.gelu(ff, approximate=True)
    ff = (jnp.dot(ff.astype(bf16), w2_ref[0], preferred_element_type=f32)
          + b2_ref[0].astype(f32))
    x = _layernorm(ff + x, ln2g_ref[0].astype(f32), ln2b_ref[0].astype(f32))
    x_ref[...] = x

    # ---- fused pooler + regression head on the final layer's activation ----
    @pl.when(pl.program_id(0) == pl.num_programs(0) - 1)
    def _():
        cls = x.reshape(B, S, H)[:, 0, :]                              # (B, H) [CLS]
        pooled = jnp.tanh(jnp.dot(cls.astype(bf16), pw_ref[...],
                                  preferred_element_type=f32) + pb_ref[...].astype(f32))
        h1 = jnp.maximum(jnp.dot(pooled.astype(bf16), l2w_ref[...],
                                 preferred_element_type=f32) + l2b_ref[...].astype(f32), 0.0)
        h2 = jnp.maximum(jnp.dot(h1.astype(bf16), l3w_ref[...],
                                 preferred_element_type=f32) + l3b_ref[...].astype(f32), 0.0)
        # N=1 output column: VPU multiply + lane reduce instead of a wasted MXU pass.
        out = jnp.sum(h2 * l4w_ref[...].astype(f32), axis=-1, keepdims=True) + l4b_ref[...]
        o_ref[...] = out.astype(o_ref.dtype)


def _bert_call(word, pos, typ, mask3, params, B, S):
    M = B * S
    kernel = functools.partial(_bert_kernel, B=B, S=S,
                               n_heads=N_HEADS, head_dim=HEAD_DIM)
    c2 = lambda l: (0, 0)
    c3 = lambda l: (0, 0, 0)
    per_layer = lambda l: (l, 0, 0)
    return pl.pallas_call(
        kernel,
        out_shape=jax.ShapeDtypeStruct((B, 1), jnp.float32),
        grid=(N_LAYERS,),
        in_specs=[
            pl.BlockSpec((M, HIDDEN), c2),                     # word embeddings (bf16)
            pl.BlockSpec((S, HIDDEN), c2),                     # position embeddings
            pl.BlockSpec((M, HIDDEN), c2),                     # token-type embeddings
            pl.BlockSpec((B, 1, S), c3),                       # raw attention mask (int32)
            pl.BlockSpec((1, HIDDEN), c2),                     # emb LN gamma
            pl.BlockSpec((1, HIDDEN), c2),                     # emb LN beta
            pl.BlockSpec((1, HIDDEN, 3 * HIDDEN), per_layer),  # wqkv
            pl.BlockSpec((1, 1, 3 * HIDDEN), per_layer),       # bqkv
            pl.BlockSpec((1, HIDDEN, HIDDEN), per_layer),      # wo
            pl.BlockSpec((1, 1, HIDDEN), per_layer),           # bo
            pl.BlockSpec((1, 1, HIDDEN), per_layer),           # ln1 gamma
            pl.BlockSpec((1, 1, HIDDEN), per_layer),           # ln1 beta
            pl.BlockSpec((1, HIDDEN, INTER), per_layer),       # w1
            pl.BlockSpec((1, 1, INTER), per_layer),            # b1
            pl.BlockSpec((1, INTER, HIDDEN), per_layer),       # w2
            pl.BlockSpec((1, 1, HIDDEN), per_layer),           # b2
            pl.BlockSpec((1, 1, HIDDEN), per_layer),           # ln2 gamma
            pl.BlockSpec((1, 1, HIDDEN), per_layer),           # ln2 beta
            pl.BlockSpec((HIDDEN, HIDDEN), c2),                # pooler W
            pl.BlockSpec((1, HIDDEN), c2),                     # pooler b
            pl.BlockSpec((HIDDEN, HEAD_H), c2),                # l2 W
            pl.BlockSpec((1, HEAD_H), c2),                     # l2 b
            pl.BlockSpec((HEAD_H, HEAD_H), c2),                # l3 W
            pl.BlockSpec((1, HEAD_H), c2),                     # l3 b
            pl.BlockSpec((1, HEAD_H), c2),                     # l4 W (row vector)
            pl.BlockSpec((1, 1), c2),                          # l4 b
        ],
        out_specs=pl.BlockSpec((B, 1), c2),                    # written on the last layer only
        scratch_shapes=[pltpu.VMEM((M, HIDDEN), jnp.float32)], # resident activation
        compiler_params=pltpu.CompilerParams(
            dimension_semantics=("arbitrary",),
            vmem_limit_bytes=32 * 1024 * 1024),
    )(word, pos, typ, mask3,
      params["emb_ln_g"], params["emb_ln_b"],
      params["wqkv"], params["bqkv"], params["wo"], params["bo"],
      params["ln1_g"], params["ln1_b"], params["w1"], params["b1"],
      params["w2"], params["b2"], params["ln2_g"], params["ln2_b"],
      params["pool_w"], params["pool_b"], params["l2_w"], params["l2_b"],
      params["l3_w"], params["l3_b"], params["l4_w"], params["l4_b"])


# ---------------- forward: ONE pallas_call launch ----------------
def bert_regression_forward(params, ids, mask, token_type_ids):
    B, S = ids.shape
    # Only the embedding-table gathers stay in XLA; everything else runs in the kernel.
    word = jnp.take(params["word_emb"], ids.reshape(-1), axis=0)             # (B*S, H) bf16
    typ = jnp.take(params["type_emb"], token_type_ids.reshape(-1), axis=0)   # (B*S, H) bf16
    pos = params["pos_emb"][:S]                                              # (S, H) bf16
    mask3 = mask.astype(jnp.int32).reshape(B, 1, S)
    return _bert_call(word, pos, typ, mask3, params, B, S)                   # (B, 1) f32


# ---------------- deterministic parameter init (weights streamed as bf16) ----------------
def init_params(key):
    std = 0.02
    keys = iter(jax.random.split(key, 7 + 4 * N_LAYERS))

    def w(shape):
        return (jax.random.normal(next(keys), shape, jnp.float32) * std).astype(jnp.bfloat16)

    def zeros(shape):
        return jnp.zeros(shape, jnp.bfloat16)

    def ones(shape):
        return jnp.ones(shape, jnp.bfloat16)

    return {
        "word_emb": w((VOCAB, HIDDEN)),
        "pos_emb": w((MAX_POS, HIDDEN)),
        "type_emb": w((TYPE_VOCAB, HIDDEN)),
        "emb_ln_g": ones((1, HIDDEN)),
        "emb_ln_b": zeros((1, HIDDEN)),
        "pool_w": w((HIDDEN, HIDDEN)), "pool_b": zeros((1, HIDDEN)),
        "l2_w": w((HIDDEN, HEAD_H)),   "l2_b": zeros((1, HEAD_H)),
        "l3_w": w((HEAD_H, HEAD_H)),   "l3_b": zeros((1, HEAD_H)),
        "l4_w": w((1, HEAD_H)),        # stored transposed (row) for the VPU reduce
        "l4_b": jnp.zeros((1, 1), jnp.float32),
        # per-layer encoder params stacked on a leading N_LAYERS axis
        "wqkv": jnp.stack([w((HIDDEN, 3 * HIDDEN)) for _ in range(N_LAYERS)]),
        "bqkv": zeros((N_LAYERS, 1, 3 * HIDDEN)),
        "wo": jnp.stack([w((HIDDEN, HIDDEN)) for _ in range(N_LAYERS)]),
        "bo": zeros((N_LAYERS, 1, HIDDEN)),
        "ln1_g": ones((N_LAYERS, 1, HIDDEN)),
        "ln1_b": zeros((N_LAYERS, 1, HIDDEN)),
        "w1": jnp.stack([w((HIDDEN, INTER)) for _ in range(N_LAYERS)]),
        "b1": zeros((N_LAYERS, 1, INTER)),
        "w2": jnp.stack([w((INTER, HIDDEN)) for _ in range(N_LAYERS)]),
        "b2": zeros((N_LAYERS, 1, HIDDEN)),
        "ln2_g": ones((N_LAYERS, 1, HIDDEN)),
        "ln2_b": zeros((N_LAYERS, 1, HIDDEN)),
    }


# ---------------- main ----------------
if __name__ == "__main__":
    B, S = 2, 8
    root = jax.random.PRNGKey(0)
    k_param, k_ids, k_types = jax.random.split(root, 3)

    params = init_params(k_param)
    ids = jax.random.randint(k_ids, (B, S), 0, VOCAB, dtype=jnp.int32)
    token_type_ids = jax.random.randint(k_types, (B, S), 0, TYPE_VOCAB,
                                        dtype=jnp.int32)
    mask = jnp.ones((B, S), jnp.int32).at[:, -2:].set(0)   # last 2 tokens padded

    fwd = jax.jit(bert_regression_forward)
    out = fwd(params, ids, mask, token_type_ids)
    jax.block_until_ready(out)
    assert out.shape == (B, 1) and out.dtype == jnp.float32
    assert bool(jnp.all(jnp.isfinite(out)))
    print("KERNEL_OK")
</pallas_src>

<mosaic_0001>
module attributes {stable_mosaic.version = 11 : i64} {
  func.func @_bert_kernel(%arg0: i32, %arg1: memref<16x128xbf16, #tpu.memory_space<vmem>>, %arg2: memref<8x128xbf16, #tpu.memory_space<vmem>>, %arg3: memref<16x128xbf16, #tpu.memory_space<vmem>>, %arg4: memref<2x1x8xi32, #tpu.memory_space<vmem>>, %arg5: memref<1x128xbf16, #tpu.memory_space<vmem>>, %arg6: memref<1x128xbf16, #tpu.memory_space<vmem>>, %arg7: memref<1x128x384xbf16, #tpu.memory_space<vmem>>, %arg8: memref<1x1x384xbf16, #tpu.memory_space<vmem>>, %arg9: memref<1x128x128xbf16, #tpu.memory_space<vmem>>, %arg10: memref<1x1x128xbf16, #tpu.memory_space<vmem>>, %arg11: memref<1x1x128xbf16, #tpu.memory_space<vmem>>, %arg12: memref<1x1x128xbf16, #tpu.memory_space<vmem>>, %arg13: memref<1x128x512xbf16, #tpu.memory_space<vmem>>, %arg14: memref<1x1x512xbf16, #tpu.memory_space<vmem>>, %arg15: memref<1x512x128xbf16, #tpu.memory_space<vmem>>, %arg16: memref<1x1x128xbf16, #tpu.memory_space<vmem>>, %arg17: memref<1x1x128xbf16, #tpu.memory_space<vmem>>, %arg18: memref<1x1x128xbf16, #tpu.memory_space<vmem>>, %arg19: memref<128x128xbf16, #tpu.memory_space<vmem>>, %arg20: memref<1x128xbf16, #tpu.memory_space<vmem>>, %arg21: memref<128x128xbf16, #tpu.memory_space<vmem>>, %arg22: memref<1x128xbf16, #tpu.memory_space<vmem>>, %arg23: memref<128x128xbf16, #tpu.memory_space<vmem>>, %arg24: memref<1x128xbf16, #tpu.memory_space<vmem>>, %arg25: memref<1x128xbf16, #tpu.memory_space<vmem>>, %arg26: memref<1x1xf32, #tpu.memory_space<vmem>>, %arg27: memref<2x1xf32, #tpu.memory_space<vmem>>, %arg28: memref<16x128xf32, #tpu.memory_space<vmem>>) attributes {dimension_semantics = [#tpu.dimension_semantics<arbitrary>], iteration_bounds = array<i64: 2>, scalar_prefetch = 0 : i64, scratch_operands = 1 : i64, tpu.core_type = #tpu.core_type<tc>, window_params = [{pipeline_mode = #tpu.pipeline_mode<synchronous>, transform_indices = @transform_0, window_bounds = array<i64: 16, 128>}, {pipeline_mode = #tpu.pipeline_mode<synchronous>, transform_indices = @transform_1, window_bounds = array<i64: 8, 128>}, {pipeline_mode = #tpu.pipeline_mode<synchronous>, transform_indices = @transform_2, window_bounds = array<i64: 16, 128>}, {pipeline_mode = #tpu.pipeline_mode<synchronous>, transform_indices = @transform_3, window_bounds = array<i64: 2, 1, 8>}, {pipeline_mode = #tpu.pipeline_mode<synchronous>, transform_indices = @transform_4, window_bounds = array<i64: 1, 128>}, {pipeline_mode = #tpu.pipeline_mode<synchronous>, transform_indices = @transform_5, window_bounds = array<i64: 1, 128>}, {transform_indices = @transform_6, window_bounds = array<i64: 1, 128, 384>}, {transform_indices = @transform_7, window_bounds = array<i64: 1, 1, 384>}, {transform_indices = @transform_8, window_bounds = array<i64: 1, 128, 128>}, {transform_indices = @transform_9, window_bounds = array<i64: 1, 1, 128>}, {transform_indices = @transform_10, window_bounds = array<i64: 1, 1, 128>}, {transform_indices = @transform_11, window_bounds = array<i64: 1, 1, 128>}, {transform_indices = @transform_12, window_bounds = array<i64: 1, 128, 512>}, {transform_indices = @transform_13, window_bounds = array<i64: 1, 1, 512>}, {transform_indices = @transform_14, window_bounds = array<i64: 1, 512, 128>}, {transform_indices = @transform_15, window_bounds = array<i64: 1, 1, 128>}, {transform_indices = @transform_16, window_bounds = array<i64: 1, 1, 128>}, {transform_indices = @transform_17, window_bounds = array<i64: 1, 1, 128>}, {pipeline_mode = #tpu.pipeline_mode<synchronous>, transform_indices = @transform_18, window_bounds = array<i64: 128, 128>}, {pipeline_mode = #tpu.pipeline_mode<synchronous>, transform_indices = @transform_19, window_bounds = array<i64: 1, 128>}, {pipeline_mode = #tpu.pipeline_mode<synchronous>, transform_indices = @transform_20, window_bounds = array<i64: 128, 128>}, {pipeline_mode = #tpu.pipeline_mode<synchronous>, transform_indices = @transform_21, window_bounds = array<i64: 1, 128>}, {pipeline_mode = #tpu.pipeline_mode<synchronous>, transform_indices = @transform_22, window_bounds = array<i64: 128, 128>}, {pipeline_mode = #tpu.pipeline_mode<synchronous>, transform_indices = @transform_23, window_bounds = array<i64: 1, 128>}, {pipeline_mode = #tpu.pipeline_mode<synchronous>, transform_indices = @transform_24, window_bounds = array<i64: 1, 128>}, {pipeline_mode = #tpu.pipeline_mode<synchronous>, transform_indices = @transform_25, window_bounds = array<i64: 1, 1>}, {pipeline_mode = #tpu.pipeline_mode<synchronous>, transform_indices = @transform_26, window_bounds = array<i64: 2, 1>}]} {
    %c0_i32 = arith.constant 0 : i32
    %0 = arith.cmpi eq, %arg0, %c0_i32 : i32
    %1 = arith.extui %0 : i1 to i32
    %c0_i32_0 = arith.constant 0 : i32
    %2 = arith.cmpi ne, %1, %c0_i32_0 : i32
    scf.if %2 {
      %c0_80 = arith.constant 0 : index
      %c0_81 = arith.constant 0 : index
      %199 = vector.load %arg1[%c0_80, %c0_81] : memref<16x128xbf16, #tpu.memory_space<vmem>>, vector<16x128xbf16>
      %200 = arith.extf %199 : vector<16x128xbf16> to vector<16x128xf32>
      %201 = vector.shape_cast %200 : vector<16x128xf32> to vector<2x8x128xf32>
      %c0_82 = arith.constant 0 : index
      %c0_83 = arith.constant 0 : index
      %202 = vector.load %arg3[%c0_82, %c0_83] : memref<16x128xbf16, #tpu.memory_space<vmem>>, vector<16x128xbf16>
      %203 = arith.extf %202 : vector<16x128xbf16> to vector<16x128xf32>
      %204 = vector.shape_cast %203 : vector<16x128xf32> to vector<2x8x128xf32>
      %205 = arith.addf %201, %204 : vector<2x8x128xf32>
      %c0_84 = arith.constant 0 : index
      %c0_85 = arith.constant 0 : index
      %206 = vector.load %arg2[%c0_84, %c0_85] : memref<8x128xbf16, #tpu.memory_space<vmem>>, vector<8x128xbf16>
      %207 = arith.extf %206 : vector<8x128xbf16> to vector<8x128xf32>
      %208 = vector.shape_cast %207 : vector<8x128xf32> to vector<1x8x128xf32>
      %209 = vector.broadcast %208 : vector<1x8x128xf32> to vector<2x8x128xf32>
      %210 = arith.addf %205, %209 : vector<2x8x128xf32>
      %211 = vector.shape_cast %210 : vector<2x8x128xf32> to vector<16x128xf32>
      %c0_86 = arith.constant 0 : index
      %c0_87 = arith.constant 0 : index
      %212 = vector.load %arg5[%c0_86, %c0_87] : memref<1x128xbf16, #tpu.memory_space<vmem>>, vector<1x128xbf16>
      %213 = arith.extf %212 : vector<1x128xbf16> to vector<1x128xf32>
      %c0_88 = arith.constant 0 : index
      %c0_89 = arith.constant 0 : index
      %214 = vector.load %arg6[%c0_88, %c0_89] : memref<1x128xbf16, #tpu.memory_space<vmem>>, vector<1x128xbf16>
      %215 = arith.extf %214 : vector<1x128xbf16> to vector<1x128xf32>
      %cst_90 = arith.constant dense<0.000000e+00> : vector<16xf32>
      %216 = vector.multi_reduction <add>, %211, %cst_90 [1] : vector<16x128xf32> to vector<16xf32>
      %217 = vector.shape_cast %216 : vector<16xf32> to vector<16x1xf32>
      %cst_91 = arith.constant 1.280000e+02 : f32
      %218 = vector.broadcast %cst_91 : f32 to vector<16x1xf32>
      %219 = arith.divf %217, %218 : vector<16x1xf32>
      %220 = arith.mulf %211, %211 : vector<16x128xf32>
      %cst_92 = arith.constant dense<0.000000e+00> : vector<16xf32>
      %221 = vector.multi_reduction <add>, %220, %cst_92 [1] : vector<16x128xf32> to vector<16xf32>
      %222 = vector.shape_cast %221 : vector<16xf32> to vector<16x1xf32>
      %cst_93 = arith.constant 1.280000e+02 : f32
      %223 = vector.broadcast %cst_93 : f32 to vector<16x1xf32>
      %224 = arith.divf %222, %223 : vector<16x1xf32>
      %225 = arith.mulf %219, %219 : vector<16x1xf32>
      %226 = arith.subf %224, %225 : vector<16x1xf32>
      %227 = vector.broadcast %219 : vector<16x1xf32> to vector<16x128xf32>
      %228 = arith.subf %211, %227 : vector<16x128xf32>
      %cst_94 = arith.constant 9.99999996E-13 : f32
      %229 = vector.broadcast %cst_94 : f32 to vector<16x1xf32>
      %230 = arith.addf %226, %229 : vector<16x1xf32>
      %231 = math.rsqrt %230 : vector<16x1xf32>
      %232 = vector.broadcast %231 : vector<16x1xf32> to vector<16x128xf32>
      %233 = arith.mulf %228, %232 : vector<16x128xf32>
      %234 = vector.broadcast %213 : vector<1x128xf32> to vector<16x128xf32>
      %235 = arith.mulf %233, %234 : vector<16x128xf32>
      %236 = vector.broadcast %215 : vector<1x128xf32> to vector<16x128xf32>
      %237 = arith.addf %235, %236 : vector<16x128xf32>
      %c0_95 = arith.constant 0 : index
      %c0_96 = arith.constant 0 : index
      %238 = vector.load %arg28[%c0_95, %c0_96] : memref<16x128xf32, #tpu.memory_space<vmem>>, vector<16x128xf32>
      tpu.vector_store %arg28[%c0_95, %c0_96], %237 {strides = array<i32>} : memref<16x128xf32, #tpu.memory_space<vmem>>, vector<16x128xf32>,
    } else {
    }
    %c0 = arith.constant 0 : index
    %c0_1 = arith.constant 0 : index
    %3 = vector.load %arg28[%c0, %c0_1] : memref<16x128xf32, #tpu.memory_space<vmem>>, vector<16x128xf32>
    %c0_2 = arith.constant 0 : index
    %c0_3 = arith.constant 0 : index
    %c0_4 = arith.constant 0 : index
    %4 = vector.load %arg4[%c0_2, %c0_3, %c0_4] : memref<2x1x8xi32, #tpu.memory_space<vmem>>, vector<2x1x8xi32>
    %5 = arith.sitofp %4 : vector<2x1x8xi32> to vector<2x1x8xf32>
    %cst = arith.constant 1.000000e+00 : f32
    %6 = vector.broadcast %cst : f32 to vector<2x1x8xf32>
    %7 = arith.subf %6, %5 : vector<2x1x8xf32>
    %cst_5 = arith.constant -1.000000e+04 : f32
    %8 = vector.broadcast %cst_5 : f32 to vector<2x1x8xf32>
    %9 = arith.mulf %7, %8 : vector<2x1x8xf32>
    %10 = arith.truncf %3 : vector<16x128xf32> to vector<16x128xbf16>
    %c0_6 = arith.constant 0 : index
    %c0_7 = arith.constant 0 : index
    %c0_8 = arith.constant 0 : index
    %11 = vector.load %arg7[%c0_6, %c0_7, %c0_8] : memref<1x128x384xbf16, #tpu.memory_space<vmem>>, vector<1x128x384xbf16>
    %12 = vector.shape_cast %11 : vector<1x128x384xbf16> to vector<128x384xbf16>
    %cst_9 = arith.constant dense<0.000000e+00> : vector<16x384xf32>
    %13 = tpu.matmul %10, %12, %cst_9 {dimension_numbers = #tpu.dot_dimension_numbers<[1], [0], [0], [1], [0, 0, 1, 1], [], []>} : vector<16x128xbf16>, vector<128x384xbf16>, vector<16x384xf32> -> vector<16x384xf32>
    %c0_10 = arith.constant 0 : index
    %c0_11 = arith.constant 0 : index
    %c0_12 = arith.constant 0 : index
    %14 = vector.load %arg8[%c0_10, %c0_11, %c0_12] : memref<1x1x384xbf16, #tpu.memory_space<vmem>>, vector<1x1x384xbf16>
    %15 = vector.shape_cast %14 : vector<1x1x384xbf16> to vector<1x384xbf16>
    %16 = arith.extf %15 : vector<1x384xbf16> to vector<1x384xf32>
    %17 = vector.broadcast %16 : vector<1x384xf32> to vector<16x384xf32>
    %18 = arith.addf %13, %17 : vector<16x384xf32>
    %19 = vector.extract_strided_slice %18 {offsets = [0, 0], sizes = [16, 128], strides = [1, 1]} : vector<16x384xf32> to vector<16x128xf32>
    %20 = vector.shape_cast %19 : vector<16x128xf32> to vector<2x8x128xf32>
    %21 = vector.extract_strided_slice %18 {offsets = [0, 128], sizes = [16, 128], strides = [1, 1]} : vector<16x384xf32> to vector<16x128xf32>
    %22 = vector.shape_cast %21 : vector<16x128xf32> to vector<2x8x128xf32>
    %23 = vector.extract_strided_slice %18 {offsets = [0, 256], sizes = [16, 128], strides = [1, 1]} : vector<16x384xf32> to vector<16x128xf32>
    %24 = vector.shape_cast %23 : vector<16x128xf32> to vector<2x8x128xf32>
    %25 = arith.truncf %22 : vector<2x8x128xf32> to vector<2x8x128xbf16>
    %26 = tpu.iota {dimensions = array<i32: 1>} : vector<1x128xi32>
    %cst_13 = arith.constant 0.000000e+00 : f32
    %27 = vector.broadcast %cst_13 : f32 to vector<2x8x128xf32>
    %c0_i32_14 = arith.constant 0 : i32
    %28 = vector.broadcast %c0_i32_14 : i32 to vector<1x128xi32>
    %29 = arith.cmpi sge, %26, %28 : vector<1x128xi32>
    %c64_i32 = arith.constant 64 : i32
    %30 = vector.broadcast %c64_i32 : i32 to vector<1x128xi32>
    %31 = arith.cmpi slt, %26, %30 : vector<1x128xi32>
    %32 = arith.andi %29, %31 : vector<1x128xi1>
    %cst_15 = arith.constant 1.000000e+00 : f32
    %cst_16 = arith.constant 0.000000e+00 : f32
    %33 = vector.broadcast %cst_15 : f32 to vector<1x128xf32>
    %34 = vector.broadcast %cst_16 : f32 to vector<1x128xf32>
    %35 = arith.select %32, %33, %34 : vector<1x128xi1>, vector<1x128xf32>
    %36 = vector.shape_cast %35 : vector<1x128xf32> to vector<1x1x128xf32>
    %37 = vector.broadcast %36 : vector<1x1x128xf32> to vector<2x8x128xf32>
    %38 = arith.mulf %20, %37 : vector<2x8x128xf32>
    %39 = arith.truncf %38 : vector<2x8x128xf32> to vector<2x8x128xbf16>
    "tpu.trace_start"() <{level = 10 : i32, message = "bqd,bkd->bqk"}> : () -> ()
    %cst_17 = arith.constant dense<0.000000e+00> : vector<2x8x8xf32>
    %40 = tpu.matmul %39, %25, %cst_17 {dimension_numbers = #tpu.dot_dimension_numbers<[2], [2], [1], [1], [0, 0, 0, 1, 1, 1], [0], [0]>} : vector<2x8x128xbf16>, vector<2x8x128xbf16>, vector<2x8x8xf32> -> vector<2x8x8xf32>
    "tpu.trace_stop"() : () -> ()
    %cst_18 = arith.constant 1.250000e-01 : f32
    %41 = vector.broadcast %cst_18 : f32 to vector<2x8x8xf32>
    %42 = arith.mulf %40, %41 : vector<2x8x8xf32>
    %43 = vector.broadcast %9 : vector<2x1x8xf32> to vector<2x8x8xf32>
    %44 = arith.addf %42, %43 : vector<2x8x8xf32>
    %cst_19 = arith.constant dense<0xFF800000> : vector<2x8xf32>
    %45 = vector.multi_reduction <maximumf>, %44, %cst_19 [2] : vector<2x8x8xf32> to vector<2x8xf32>
    %46 = vector.shape_cast %45 : vector<2x8xf32> to vector<2x8x1xf32>
    %47 = vector.broadcast %46 : vector<2x8x1xf32> to vector<2x8x8xf32>
    %48 = arith.subf %44, %47 : vector<2x8x8xf32>
    %49 = math.exp %48 : vector<2x8x8xf32>
    %cst_20 = arith.constant dense<0.000000e+00> : vector<2x8xf32>
    %50 = vector.multi_reduction <add>, %49, %cst_20 [2] : vector<2x8x8xf32> to vector<2x8xf32>
    %51 = vector.shape_cast %50 : vector<2x8xf32> to vector<2x8x1xf32>
    %52 = tpu.reciprocal %51 {approx = true} : vector<2x8x1xf32> -> vector<2x8x1xf32>
    %53 = vector.broadcast %52 : vector<2x8x1xf32> to vector<2x8x8xf32>
    %54 = arith.mulf %49, %53 : vector<2x8x8xf32>
    %55 = vector.shape_cast %35 : vector<1x128xf32> to vector<1x1x128xf32>
    %56 = vector.broadcast %55 : vector<1x1x128xf32> to vector<2x8x128xf32>
    %57 = arith.mulf %24, %56 : vector<2x8x128xf32>
    %58 = arith.truncf %57 : vector<2x8x128xf32> to vector<2x8x128xbf16>
    %59 = arith.truncf %54 : vector<2x8x8xf32> to vector<2x8x8xbf16>
    "tpu.trace_start"() <{level = 10 : i32, message = "bqk,bkd->bqd"}> : () -> ()
    %cst_21 = arith.constant dense<0.000000e+00> : vector<2x8x128xf32>
    %60 = tpu.matmul %59, %58, %cst_21 {dimension_numbers = #tpu.dot_dimension_numbers<[2], [1], [1], [2], [0, 0, 0, 1, 1, 2], [0], [0]>} : vector<2x8x8xbf16>, vector<2x8x128xbf16>, vector<2x8x128xf32> -> vector<2x8x128xf32>
    "tpu.trace_stop"() : () -> ()
    %61 = arith.addf %27, %60 : vector<2x8x128xf32>
    %c64_i32_22 = arith.constant 64 : i32
    %62 = vector.broadcast %c64_i32_22 : i32 to vector<1x128xi32>
    %63 = arith.cmpi sge, %26, %62 : vector<1x128xi32>
    %c128_i32 = arith.constant 128 : i32
    %64 = vector.broadcast %c128_i32 : i32 to vector<1x128xi32>
    %65 = arith.cmpi slt, %26, %64 : vector<1x128xi32>
    %66 = arith.andi %63, %65 : vector<1x128xi1>
    %cst_23 = arith.constant 1.000000e+00 : f32
    %cst_24 = arith.constant 0.000000e+00 : f32
    %67 = vector.broadcast %cst_23 : f32 to vector<1x128xf32>
    %68 = vector.broadcast %cst_24 : f32 to vector<1x128xf32>
    %69 = arith.select %66, %67, %68 : vector<1x128xi1>, vector<1x128xf32>
    %70 = vector.shape_cast %69 : vector<1x128xf32> to vector<1x1x128xf32>
    %71 = vector.broadcast %70 : vector<1x1x128xf32> to vector<2x8x128xf32>
    %72 = arith.mulf %20, %71 : vector<2x8x128xf32>
    %73 = arith.truncf %72 : vector<2x8x128xf32> to vector<2x8x128xbf16>
    "tpu.trace_start"() <{level = 10 : i32, message = "bqd,bkd->bqk"}> : () -> ()
    %cst_25 = arith.constant dense<0.000000e+00> : vector<2x8x8xf32>
    %74 = tpu.matmul %73, %25, %cst_25 {dimension_numbers = #tpu.dot_dimension_numbers<[2], [2], [1], [1], [0, 0, 0, 1, 1, 1], [0], [0]>} : vector<2x8x128xbf16>, vector<2x8x128xbf16>, vector<2x8x8xf32> -> vector<2x8x8xf32>
    "tpu.trace_stop"() : () -> ()
    %cst_26 = arith.constant 1.250000e-01 : f32
    %75 = vector.broadcast %cst_26 : f32 to vector<2x8x8xf32>
    %76 = arith.mulf %74, %75 : vector<2x8x8xf32>
    %77 = vector.broadcast %9 : vector<2x1x8xf32> to vector<2x8x8xf32>
    %78 = arith.addf %76, %77 : vector<2x8x8xf32>
    %cst_27 = arith.constant dense<0xFF800000> : vector<2x8xf32>
    %79 = vector.multi_reduction <maximumf>, %78, %cst_27 [2] : vector<2x8x8xf32> to vector<2x8xf32>
    %80 = vector.shape_cast %79 : vector<2x8xf32> to vector<2x8x1xf32>
    %81 = vector.broadcast %80 : vector<2x8x1xf32> to vector<2x8x8xf32>
    %82 = arith.subf %78, %81 : vector<2x8x8xf32>
    %83 = math.exp %82 : vector<2x8x8xf32>
    %cst_28 = arith.constant dense<0.000000e+00> : vector<2x8xf32>
    %84 = vector.multi_reduction <add>, %83, %cst_28 [2] : vector<2x8x8xf32> to vector<2x8xf32>
    %85 = vector.shape_cast %84 : vector<2x8xf32> to vector<2x8x1xf32>
    %86 = tpu.reciprocal %85 {approx = true} : vector<2x8x1xf32> -> vector<2x8x1xf32>
    %87 = vector.broadcast %86 : vector<2x8x1xf32> to vector<2x8x8xf32>
    %88 = arith.mulf %83, %87 : vector<2x8x8xf32>
    %89 = vector.shape_cast %69 : vector<1x128xf32> to vector<1x1x128xf32>
    %90 = vector.broadcast %89 : vector<1x1x128xf32> to vector<2x8x128xf32>
    %91 = arith.mulf %24, %90 : vector<2x8x128xf32>
    %92 = arith.truncf %91 : vector<2x8x128xf32> to vector<2x8x128xbf16>
    %93 = arith.truncf %88 : vector<2x8x8xf32> to vector<2x8x8xbf16>
    "tpu.trace_start"() <{level = 10 : i32, message = "bqk,bkd->bqd"}> : () -> ()
    %cst_29 = arith.constant dense<0.000000e+00> : vector<2x8x128xf32>
    %94 = tpu.matmul %93, %92, %cst_29 {dimension_numbers = #tpu.dot_dimension_numbers<[2], [1], [1], [2], [0, 0, 0, 1, 1, 2], [0], [0]>} : vector<2x8x8xbf16>, vector<2x8x128xbf16>, vector<2x8x128xf32> -> vector<2x8x128xf32>
    "tpu.trace_stop"() : () -> ()
    %95 = arith.addf %61, %94 : vector<2x8x128xf32>
    %96 = vector.shape_cast %95 : vector<2x8x128xf32> to vector<16x128xf32>
    %97 = arith.truncf %96 : vector<16x128xf32> to vector<16x128xbf16>
    %c0_30 = arith.constant 0 : index
    %c0_31 = arith.constant 0 : index
    %c0_32 = arith.constant 0 : index
    %98 = vector.load %arg9[%c0_30, %c0_31, %c0_32] : memref<1x128x128xbf16, #tpu.memory_space<vmem>>, vector<1x128x128xbf16>
    %99 = vector.shape_cast %98 : vector<1x128x128xbf16> to vector<128x128xbf16>
    %cst_33 = arith.constant dense<0.000000e+00> : vector<16x128xf32>
    %100 = tpu.matmul %97, %99, %cst_33 {dimension_numbers = #tpu.dot_dimension_numbers<[1], [0], [0], [1], [0, 0, 1, 1], [], []>} : vector<16x128xbf16>, vector<128x128xbf16>, vector<16x128xf32> -> vector<16x128xf32>
    %c0_34 = arith.constant 0 : index
    %c0_35 = arith.constant 0 : index
    %c0_36 = arith.constant 0 : index
    %101 = vector.load %arg10[%c0_34, %c0_35, %c0_36] : memref<1x1x128xbf16, #tpu.memory_space<vmem>>, vector<1x1x128xbf16>
    %102 = vector.shape_cast %101 : vector<1x1x128xbf16> to vector<1x128xbf16>
    %103 = arith.extf %102 : vector<1x128xbf16> to vector<1x128xf32>
    %104 = vector.broadcast %103 : vector<1x128xf32> to vector<16x128xf32>
    %105 = arith.addf %100, %104 : vector<16x128xf32>
    %106 = arith.addf %105, %3 : vector<16x128xf32>
    %c0_37 = arith.constant 0 : index
    %c0_38 = arith.constant 0 : index
    %c0_39 = arith.constant 0 : index
    %107 = vector.load %arg11[%c0_37, %c0_38, %c0_39] : memref<1x1x128xbf16, #tpu.memory_space<vmem>>, vector<1x1x128xbf16>
    %108 = vector.shape_cast %107 : vector<1x1x128xbf16> to vector<1x128xbf16>
    %109 = arith.extf %108 : vector<1x128xbf16> to vector<1x128xf32>
    %c0_40 = arith.constant 0 : index
    %c0_41 = arith.constant 0 : index
    %c0_42 = arith.constant 0 : index
    %110 = vector.load %arg12[%c0_40, %c0_41, %c0_42] : memref<1x1x128xbf16, #tpu.memory_space<vmem>>, vector<1x1x128xbf16>
    %111 = vector.shape_cast %110 : vector<1x1x128xbf16> to vector<1x128xbf16>
    %112 = arith.extf %111 : vector<1x128xbf16> to vector<1x128xf32>
    %cst_43 = arith.constant dense<0.000000e+00> : vector<16xf32>
    %113 = vector.multi_reduction <add>, %106, %cst_43 [1] : vector<16x128xf32> to vector<16xf32>
    %114 = vector.shape_cast %113 : vector<16xf32> to vector<16x1xf32>
    %cst_44 = arith.constant 1.280000e+02 : f32
    %115 = vector.broadcast %cst_44 : f32 to vector<16x1xf32>
    %116 = arith.divf %114, %115 : vector<16x1xf32>
    %117 = arith.mulf %106, %106 : vector<16x128xf32>
    %cst_45 = arith.constant dense<0.000000e+00> : vector<16xf32>
    %118 = vector.multi_reduction <add>, %117, %cst_45 [1] : vector<16x128xf32> to vector<16xf32>
    %119 = vector.shape_cast %118 : vector<16xf32> to vector<16x1xf32>
    %cst_46 = arith.constant 1.280000e+02 : f32
    %120 = vector.broadcast %cst_46 : f32 to vector<16x1xf32>
    %121 = arith.divf %119, %120 : vector<16x1xf32>
    %122 = arith.mulf %116, %116 : vector<16x1xf32>
    %123 = arith.subf %121, %122 : vector<16x1xf32>
    %124 = vector.broadcast %116 : vector<16x1xf32> to vector<16x128xf32>
    %125 = arith.subf %106, %124 : vector<16x128xf32>
    %cst_47 = arith.constant 9.99999996E-13 : f32
    %126 = vector.broadcast %cst_47 : f32 to vector<16x1xf32>
    %127 = arith.addf %123, %126 : vector<16x1xf32>
    %128 = math.rsqrt %127 : vector<16x1xf32>
    %129 = vector.broadcast %128 : vector<16x1xf32> to vector<16x128xf32>
    %130 = arith.mulf %125, %129 : vector<16x128xf32>
    %131 = vector.broadcast %109 : vector<1x128xf32> to vector<16x128xf32>
    %132 = arith.mulf %130, %131 : vector<16x128xf32>
    %133 = vector.broadcast %112 : vector<1x128xf32> to vector<16x128xf32>
    %134 = arith.addf %132, %133 : vector<16x128xf32>
    %135 = arith.truncf %134 : vector<16x128xf32> to vector<16x128xbf16>
    %c0_48 = arith.constant 0 : index
    %c0_49 = arith.constant 0 : index
    %c0_50 = arith.constant 0 : index
    %136 = vector.load %arg13[%c0_48, %c0_49, %c0_50] : memref<1x128x512xbf16, #tpu.memory_space<vmem>>, vector<1x128x512xbf16>
    %137 = vector.shape_cast %136 : vector<1x128x512xbf16> to vector<128x512xbf16>
    %cst_51 = arith.constant dense<0.000000e+00> : vector<16x512xf32>
    %138 = tpu.matmul %135, %137, %cst_51 {dimension_numbers = #tpu.dot_dimension_numbers<[1], [0], [0], [1], [0, 0, 1, 1], [], []>} : vector<16x128xbf16>, vector<128x512xbf16>, vector<16x512xf32> -> vector<16x512xf32>
    %c0_52 = arith.constant 0 : index
    %c0_53 = arith.constant 0 : index
    %c0_54 = arith.constant 0 : index
    %139 = vector.load %arg14[%c0_52, %c0_53, %c0_54] : memref<1x1x512xbf16, #tpu.memory_space<vmem>>, vector<1x1x512xbf16>
    %140 = vector.shape_cast %139 : vector<1x1x512xbf16> to vector<1x512xbf16>
    %141 = arith.extf %140 : vector<1x512xbf16> to vector<1x512xf32>
    %142 = vector.broadcast %141 : vector<1x512xf32> to vector<16x512xf32>
    %143 = arith.addf %138, %142 : vector<16x512xf32>
    %144 = arith.mulf %143, %143 : vector<16x512xf32>
    %145 = arith.mulf %143, %144 : vector<16x512xf32>
    %cst_55 = arith.constant 4.471500e-02 : f32
    %146 = vector.broadcast %cst_55 : f32 to vector<16x512xf32>
    %147 = arith.mulf %146, %145 : vector<16x512xf32>
    %148 = arith.addf %143, %147 : vector<16x512xf32>
    %cst_56 = arith.constant 0.797884583 : f32
    %149 = vector.broadcast %cst_56 : f32 to vector<16x512xf32>
    %150 = arith.mulf %149, %148 : vector<16x512xf32>
    %151 = math.tanh %150 : vector<16x512xf32>
    %cst_57 = arith.constant 1.000000e+00 : f32
    %152 = vector.broadcast %cst_57 : f32 to vector<16x512xf32>
    %153 = arith.addf %152, %151 : vector<16x512xf32>
    %cst_58 = arith.constant 5.000000e-01 : f32
    %154 = vector.broadcast %cst_58 : f32 to vector<16x512xf32>
    %155 = arith.mulf %154, %153 : vector<16x512xf32>
    %156 = arith.mulf %143, %155 : vector<16x512xf32>
    %157 = arith.truncf %156 : vector<16x512xf32> to vector<16x512xbf16>
    %c0_59 = arith.constant 0 : index
    %c0_60 = arith.constant 0 : index
    %c0_61 = arith.constant 0 : index
    %158 = vector.load %arg15[%c0_59, %c0_60, %c0_61] : memref<1x512x128xbf16, #tpu.memory_space<vmem>>, vector<1x512x128xbf16>
    %159 = vector.shape_cast %158 : vector<1x512x128xbf16> to vector<512x128xbf16>
    %cst_62 = arith.constant dense<0.000000e+00> : vector<16x128xf32>
    %160 = tpu.matmul %157, %159, %cst_62 {dimension_numbers = #tpu.dot_dimension_numbers<[1], [0], [0], [1], [0, 0, 1, 1], [], []>} : vector<16x512xbf16>, vector<512x128xbf16>, vector<16x128xf32> -> vector<16x128xf32>
    %c0_63 = arith.constant 0 : index
    %c0_64 = arith.constant 0 : index
    %c0_65 = arith.constant 0 : index
    %161 = vector.load %arg16[%c0_63, %c0_64, %c0_65] : memref<1x1x128xbf16, #tpu.memory_space<vmem>>, vector<1x1x128xbf16>
    %162 = vector.shape_cast %161 : vector<1x1x128xbf16> to vector<1x128xbf16>
    %163 = arith.extf %162 : vector<1x128xbf16> to vector<1x128xf32>
    %164 = vector.broadcast %163 : vector<1x128xf32> to vector<16x128xf32>
    %165 = arith.addf %160, %164 : vector<16x128xf32>
    %166 = arith.addf %165, %134 : vector<16x128xf32>
    %c0_66 = arith.constant 0 : index
    %c0_67 = arith.constant 0 : index
    %c0_68 = arith.constant 0 : index
    %167 = vector.load %arg17[%c0_66, %c0_67, %c0_68] : memref<1x1x128xbf16, #tpu.memory_space<vmem>>, vector<1x1x128xbf16>
    %168 = vector.shape_cast %167 : vector<1x1x128xbf16> to vector<1x128xbf16>
    %169 = arith.extf %168 : vector<1x128xbf16> to vector<1x128xf32>
    %c0_69 = arith.constant 0 : index
    %c0_70 = arith.constant 0 : index
    %c0_71 = arith.constant 0 : index
    %170 = vector.load %arg18[%c0_69, %c0_70, %c0_71] : memref<1x1x128xbf16, #tpu.memory_space<vmem>>, vector<1x1x128xbf16>
    %171 = vector.shape_cast %170 : vector<1x1x128xbf16> to vector<1x128xbf16>
    %172 = arith.extf %171 : vector<1x128xbf16> to vector<1x128xf32>
    %cst_72 = arith.constant dense<0.000000e+00> : vector<16xf32>
    %173 = vector.multi_reduction <add>, %166, %cst_72 [1] : vector<16x128xf32> to vector<16xf32>
    %174 = vector.shape_cast %173 : vector<16xf32> to vector<16x1xf32>
    %cst_73 = arith.constant 1.280000e+02 : f32
    %175 = vector.broadcast %cst_73 : f32 to vector<16x1xf32>
    %176 = arith.divf %174, %175 : vector<16x1xf32>
    %177 = arith.mulf %166, %166 : vector<16x128xf32>
    %cst_74 = arith.constant dense<0.000000e+00> : vector<16xf32>
    %178 = vector.multi_reduction <add>, %177, %cst_74 [1] : vector<16x128xf32> to vector<16xf32>
    %179 = vector.shape_cast %178 : vector<16xf32> to vector<16x1xf32>
    %cst_75 = arith.constant 1.280000e+02 : f32
    %180 = vector.broadcast %cst_75 : f32 to vector<16x1xf32>
    %181 = arith.divf %179, %180 : vector<16x1xf32>
    %182 = arith.mulf %176, %176 : vector<16x1xf32>
    %183 = arith.subf %181, %182 : vector<16x1xf32>
    %184 = vector.broadcast %176 : vector<16x1xf32> to vector<16x128xf32>
    %185 = arith.subf %166, %184 : vector<16x128xf32>
    %cst_76 = arith.constant 9.99999996E-13 : f32
    %186 = vector.broadcast %cst_76 : f32 to vector<16x1xf32>
    %187 = arith.addf %183, %186 : vector<16x1xf32>
    %188 = math.rsqrt %187 : vector<16x1xf32>
    %189 = vector.broadcast %188 : vector<16x1xf32> to vector<16x128xf32>
    %190 = arith.mulf %185, %189 : vector<16x128xf32>
    %191 = vector.broadcast %169 : vector<1x128xf32> to vector<16x128xf32>
    %192 = arith.mulf %190, %191 : vector<16x128xf32>
    %193 = vector.broadcast %172 : vector<1x128xf32> to vector<16x128xf32>
    %194 = arith.addf %192, %193 : vector<16x128xf32>
    %c0_77 = arith.constant 0 : index
    %c0_78 = arith.constant 0 : index
    %195 = vector.load %arg28[%c0_77, %c0_78] : memref<16x128xf32, #tpu.memory_space<vmem>>, vector<16x128xf32>
    tpu.vector_store %arg28[%c0_77, %c0_78], %194 {strides = array<i32>} : memref<16x128xf32, #tpu.memory_space<vmem>>, vector<16x128xf32>,
    %c1_i32 = arith.constant 1 : i32
    %196 = arith.cmpi eq, %arg0, %c1_i32 : i32
    %197 = arith.extui %196 : i1 to i32
    %c0_i32_79 = arith.constant 0 : i32
    %198 = arith.cmpi ne, %197, %c0_i32_79 : i32
    scf.if %198 {
      %199 = vector.shape_cast %194 : vector<16x128xf32> to vector<2x8x128xf32>
      %200 = vector.extract_strided_slice %199 {offsets = [0, 0, 0], sizes = [2, 1, 128], strides = [1, 1, 1]} : vector<2x8x128xf32> to vector<2x1x128xf32>
      %201 = vector.shape_cast %200 : vector<2x1x128xf32> to vector<2x128xf32>
      %202 = arith.truncf %201 : vector<2x128xf32> to vector<2x128xbf16>
      %c0_80 = arith.constant 0 : index
      %c0_81 = arith.constant 0 : index
      %203 = vector.load %arg19[%c0_80, %c0_81] : memref<128x128xbf16, #tpu.memory_space<vmem>>, vector<128x128xbf16>
      %cst_82 = arith.constant dense<0.000000e+00> : vector<2x128xf32>
      %204 = tpu.matmul %202, %203, %cst_82 {dimension_numbers = #tpu.dot_dimension_numbers<[1], [0], [0], [1], [0, 0, 1, 1], [], []>} : vector<2x128xbf16>, vector<128x128xbf16>, vector<2x128xf32> -> vector<2x128xf32>
      %c0_83 = arith.constant 0 : index
      %c0_84 = arith.constant 0 : index
      %205 = vector.load %arg20[%c0_83, %c0_84] : memref<1x128xbf16, #tpu.memory_space<vmem>>, vector<1x128xbf16>
      %206 = arith.extf %205 : vector<1x128xbf16> to vector<1x128xf32>
      %207 = vector.broadcast %206 : vector<1x128xf32> to vector<2x128xf32>
      %208 = arith.addf %204, %207 : vector<2x128xf32>
      %209 = math.tanh %208 : vector<2x128xf32>
      %210 = arith.truncf %209 : vector<2x128xf32> to vector<2x128xbf16>
      %c0_85 = arith.constant 0 : index
      %c0_86 = arith.constant 0 : index
      %211 = vector.load %arg21[%c0_85, %c0_86] : memref<128x128xbf16, #tpu.memory_space<vmem>>, vector<128x128xbf16>
      %cst_87 = arith.constant dense<0.000000e+00> : vector<2x128xf32>
      %212 = tpu.matmul %210, %211, %cst_87 {dimension_numbers = #tpu.dot_dimension_numbers<[1], [0], [0], [1], [0, 0, 1, 1], [], []>} : vector<2x128xbf16>, vector<128x128xbf16>, vector<2x128xf32> -> vector<2x128xf32>
      %c0_88 = arith.constant 0 : index
      %c0_89 = arith.constant 0 : index
      %213 = vector.load %arg22[%c0_88, %c0_89] : memref<1x128xbf16, #tpu.memory_space<vmem>>, vector<1x128xbf16>
      %214 = arith.extf %213 : vector<1x128xbf16> to vector<1x128xf32>
      %215 = vector.broadcast %214 : vector<1x128xf32> to vector<2x128xf32>
      %216 = arith.addf %212, %215 : vector<2x128xf32>
      %cst_90 = arith.constant 0.000000e+00 : f32
      %217 = vector.broadcast %cst_90 : f32 to vector<2x128xf32>
      %218 = arith.maximumf %216, %217 : vector<2x128xf32>
      %219 = arith.truncf %218 : vector<2x128xf32> to vector<2x128xbf16>
      %c0_91 = arith.constant 0 : index
      %c0_92 = arith.constant 0 : index
      %220 = vector.load %arg23[%c0_91, %c0_92] : memref<128x128xbf16, #tpu.memory_space<vmem>>, vector<128x128xbf16>
      %cst_93 = arith.constant dense<0.000000e+00> : vector<2x128xf32>
      %221 = tpu.matmul %219, %220, %cst_93 {dimension_numbers = #tpu.dot_dimension_numbers<[1], [0], [0], [1], [0, 0, 1, 1], [], []>} : vector<2x128xbf16>, vector<128x128xbf16>, vector<2x128xf32> -> vector<2x128xf32>
      %c0_94 = arith.constant 0 : index
      %c0_95 = arith.constant 0 : index
      %222 = vector.load %arg24[%c0_94, %c0_95] : memref<1x128xbf16, #tpu.memory_space<vmem>>, vector<1x128xbf16>
      %223 = arith.extf %222 : vector<1x128xbf16> to vector<1x128xf32>
      %224 = vector.broadcast %223 : vector<1x128xf32> to vector<2x128xf32>
      %225 = arith.addf %221, %224 : vector<2x128xf32>
      %cst_96 = arith.constant 0.000000e+00 : f32
      %226 = vector.broadcast %cst_96 : f32 to vector<2x128xf32>
      %227 = arith.maximumf %225, %226 : vector<2x128xf32>
      %c0_97 = arith.constant 0 : index
      %c0_98 = arith.constant 0 : index
      %228 = vector.load %arg25[%c0_97, %c0_98] : memref<1x128xbf16, #tpu.memory_space<vmem>>, vector<1x128xbf16>
      %229 = arith.extf %228 : vector<1x128xbf16> to vector<1x128xf32>
      %230 = vector.broadcast %229 : vector<1x128xf32> to vector<2x128xf32>
      %231 = arith.mulf %227, %230 : vector<2x128xf32>
      %cst_99 = arith.constant dense<0.000000e+00> : vector<2xf32>
      %232 = vector.multi_reduction <add>, %231, %cst_99 [1] : vector<2x128xf32> to vector<2xf32>
      %233 = vector.shape_cast %232 : vector<2xf32> to vector<2x1xf32>
      %c0_100 = arith.constant 0 : index
      %c0_101 = arith.constant 0 : index
      %234 = vector.load %arg26[%c0_100, %c0_101] : memref<1x1xf32, #tpu.memory_space<vmem>>, vector<1x1xf32>
      %235 = vector.broadcast %234 : vector<1x1xf32> to vector<2x1xf32>
      %236 = arith.addf %233, %235 : vector<2x1xf32>
      %c0_102 = arith.constant 0 : index
      %c0_103 = arith.constant 0 : index
      %237 = vector.load %arg27[%c0_102, %c0_103] : memref<2x1xf32, #tpu.memory_space<vmem>>, vector<2x1xf32>
      tpu.vector_store %arg27[%c0_102, %c0_103], %236 {strides = array<i32>} : memref<2x1xf32, #tpu.memory_space<vmem>>, vector<2x1xf32>,
    } else {
    }
    return
  }
  func.func @transform_0(%arg0: i32) -> (i32, i32) {
    %c0_i32 = arith.constant 0 : i32
    %c0_i32_0 = arith.constant 0 : i32
    %c0_i32_1 = arith.constant 0 : i32
    return %c0_i32, %c0_i32_0 : i32, i32
  }
  func.func @transform_1(%arg0: i32) -> (i32, i32) {
    %c0_i32 = arith.constant 0 : i32
    %c0_i32_0 = arith.constant 0 : i32
    %c0_i32_1 = arith.constant 0 : i32
    return %c0_i32, %c0_i32_0 : i32, i32
  }
  func.func @transform_2(%arg0: i32) -> (i32, i32) {
    %c0_i32 = arith.constant 0 : i32
    %c0_i32_0 = arith.constant 0 : i32
    %c0_i32_1 = arith.constant 0 : i32
    return %c0_i32, %c0_i32_0 : i32, i32
  }
  func.func @transform_3(%arg0: i32) -> (i32, i32, i32) {
    %c0_i32 = arith.constant 0 : i32
    %c0_i32_0 = arith.constant 0 : i32
    %c0_i32_1 = arith.constant 0 : i32
    %c0_i32_2 = arith.constant 0 : i32
    return %c0_i32, %c0_i32_0, %c0_i32_1 : i32, i32, i32
  }
  func.func @transform_4(%arg0: i32) -> (i32, i32) {
    %c0_i32 = arith.constant 0 : i32
    %c0_i32_0 = arith.constant 0 : i32
    %c0_i32_1 = arith.constant 0 : i32
    return %c0_i32, %c0_i32_0 : i32, i32
  }
  func.func @transform_5(%arg0: i32) -> (i32, i32) {
    %c0_i32 = arith.constant 0 : i32
    %c0_i32_0 = arith.constant 0 : i32
    %c0_i32_1 = arith.constant 0 : i32
    return %c0_i32, %c0_i32_0 : i32, i32
  }
  func.func @transform_6(%arg0: i32) -> (i32, i32, i32) {
    %c0_i32 = arith.constant 0 : i32
    %c0_i32_0 = arith.constant 0 : i32
    %c0_i32_1 = arith.constant 0 : i32
    return %arg0, %c0_i32, %c0_i32_0 : i32, i32, i32
  }
  func.func @transform_7(%arg0: i32) -> (i32, i32, i32) {
    %c0_i32 = arith.constant 0 : i32
    %c0_i32_0 = arith.constant 0 : i32
    %c0_i32_1 = arith.constant 0 : i32
    return %arg0, %c0_i32, %c0_i32_0 : i32, i32, i32
  }
  func.func @transform_8(%arg0: i32) -> (i32, i32, i32) {
    %c0_i32 = arith.constant 0 : i32
    %c0_i32_0 = arith.constant 0 : i32
    %c0_i32_1 = arith.constant 0 : i32
    return %arg0, %c0_i32, %c0_i32_0 : i32, i32, i32
  }
  func.func @transform_9(%arg0: i32) -> (i32, i32, i32) {
    %c0_i32 = arith.constant 0 : i32
    %c0_i32_0 = arith.constant 0 : i32
    %c0_i32_1 = arith.constant 0 : i32
    return %arg0, %c0_i32, %c0_i32_0 : i32, i32, i32
  }
  func.func @transform_10(%arg0: i32) -> (i32, i32, i32) {
    %c0_i32 = arith.constant 0 : i32
    %c0_i32_0 = arith.constant 0 : i32
    %c0_i32_1 = arith.constant 0 : i32
    return %arg0, %c0_i32, %c0_i32_0 : i32, i32, i32
  }
  func.func @transform_11(%arg0: i32) -> (i32, i32, i32) {
    %c0_i32 = arith.constant 0 : i32
    %c0_i32_0 = arith.constant 0 : i32
    %c0_i32_1 = arith.constant 0 : i32
    return %arg0, %c0_i32, %c0_i32_0 : i32, i32, i32
  }
  func.func @transform_12(%arg0: i32) -> (i32, i32, i32) {
    %c0_i32 = arith.constant 0 : i32
    %c0_i32_0 = arith.constant 0 : i32
    %c0_i32_1 = arith.constant 0 : i32
    return %arg0, %c0_i32, %c0_i32_0 : i32, i32, i32
  }
  func.func @transform_13(%arg0: i32) -> (i32, i32, i32) {
    %c0_i32 = arith.constant 0 : i32
    %c0_i32_0 = arith.constant 0 : i32
    %c0_i32_1 = arith.constant 0 : i32
    return %arg0, %c0_i32, %c0_i32_0 : i32, i32, i32
  }
  func.func @transform_14(%arg0: i32) -> (i32, i32, i32) {
    %c0_i32 = arith.constant 0 : i32
    %c0_i32_0 = arith.constant 0 : i32
    %c0_i32_1 = arith.constant 0 : i32
    return %arg0, %c0_i32, %c0_i32_0 : i32, i32, i32
  }
  func.func @transform_15(%arg0: i32) -> (i32, i32, i32) {
    %c0_i32 = arith.constant 0 : i32
    %c0_i32_0 = arith.constant 0 : i32
    %c0_i32_1 = arith.constant 0 : i32
    return %arg0, %c0_i32, %c0_i32_0 : i32, i32, i32
  }
  func.func @transform_16(%arg0: i32) -> (i32, i32, i32) {
    %c0_i32 = arith.constant 0 : i32
    %c0_i32_0 = arith.constant 0 : i32
    %c0_i32_1 = arith.constant 0 : i32
    return %arg0, %c0_i32, %c0_i32_0 : i32, i32, i32
  }
  func.func @transform_17(%arg0: i32) -> (i32, i32, i32) {
    %c0_i32 = arith.constant 0 : i32
    %c0_i32_0 = arith.constant 0 : i32
    %c0_i32_1 = arith.constant 0 : i32
    return %arg0, %c0_i32, %c0_i32_0 : i32, i32, i32
  }
  func.func @transform_18(%arg0: i32) -> (i32, i32) {
    %c0_i32 = arith.constant 0 : i32
    %c0_i32_0 = arith.constant 0 : i32
    %c0_i32_1 = arith.constant 0 : i32
    return %c0_i32, %c0_i32_0 : i32, i32
  }
  func.func @transform_19(%arg0: i32) -> (i32, i32) {
    %c0_i32 = arith.constant 0 : i32
    %c0_i32_0 = arith.constant 0 : i32
    %c0_i32_1 = arith.constant 0 : i32
    return %c0_i32, %c0_i32_0 : i32, i32
  }
  func.func @transform_20(%arg0: i32) -> (i32, i32) {
    %c0_i32 = arith.constant 0 : i32
    %c0_i32_0 = arith.constant 0 : i32
    %c0_i32_1 = arith.constant 0 : i32
    return %c0_i32, %c0_i32_0 : i32, i32
  }
  func.func @transform_21(%arg0: i32) -> (i32, i32) {
    %c0_i32 = arith.constant 0 : i32
    %c0_i32_0 = arith.constant 0 : i32
    %c0_i32_1 = arith.constant 0 : i32
    return %c0_i32, %c0_i32_0 : i32, i32
  }
  func.func @transform_22(%arg0: i32) -> (i32, i32) {
    %c0_i32 = arith.constant 0 : i32
    %c0_i32_0 = arith.constant 0 : i32
    %c0_i32_1 = arith.constant 0 : i32
    return %c0_i32, %c0_i32_0 : i32, i32
  }
  func.func @transform_23(%arg0: i32) -> (i32, i32) {
    %c0_i32 = arith.constant 0 : i32
    %c0_i32_0 = arith.constant 0 : i32
    %c0_i32_1 = arith.constant 0 : i32
    return %c0_i32, %c0_i32_0 : i32, i32
  }
  func.func @transform_24(%arg0: i32) -> (i32, i32) {
    %c0_i32 = arith.constant 0 : i32
    %c0_i32_0 = arith.constant 0 : i32
    %c0_i32_1 = arith.constant 0 : i32
    return %c0_i32, %c0_i32_0 : i32, i32
  }
  func.func @transform_25(%arg0: i32) -> (i32, i32) {
    %c0_i32 = arith.constant 0 : i32
    %c0_i32_0 = arith.constant 0 : i32
    %c0_i32_1 = arith.constant 0 : i32
    return %c0_i32, %c0_i32_0 : i32, i32
  }
  func.func @transform_26(%arg0: i32) -> (i32, i32) {
    %c0_i32 = arith.constant 0 : i32
    %c0_i32_0 = arith.constant 0 : i32
    %c0_i32_1 = arith.constant 0 : i32
    return %c0_i32, %c0_i32_0 : i32, i32
  }
}

</mosaic_0001>

<llo_original>
// kernel: bert_regression_forward.1
$region0: #{bert_regression_forward.1}
  #allocation0 [shape = 'u32[]', space=smem, size = 0x4, offset = 0x4, fixed_abs, tag = 'smem constant byte address 0x4 - core index']
  #allocation1 [shape = 'u32[72,128]{1,0:T(1,128)}', space=vmem, size = 0x9000, scoped, tag = 'internal scratch']
  #allocation2 [shape = 'f32[16,128]{1,0:T(8,128)}', space=vmem, size = 0x2000, scoped, tag = 'scratch operand']
  #allocation3 [shape = 'f32[1,1]{1,0:T(1,128)S(1)}', space=vmem, size = 0x200, scoped, tag = 'scoped memory for bert_regression_forward.1']
  %s0 = inlined_call_operand.vmem [shape: bf16[16,128], index: 0, kind: input, shape index: {}]
  %s1 = inlined_call_operand.vmem [shape: bf16[8,128], index: 1, kind: input, shape index: {}]
  %s2 = inlined_call_operand.vmem [shape: bf16[16,128], index: 2, kind: input, shape index: {}]
  %s3 = inlined_call_operand.vmem [shape: s32[2,1,8], index: 3, kind: input, shape index: {}]
  %s4 = inlined_call_operand.vmem [shape: bf16[1,128], index: 4, kind: input, shape index: {}]
  %s5 = inlined_call_operand.vmem [shape: bf16[1,128], index: 5, kind: input, shape index: {}]
  %s6 = inlined_call_operand.hbm [shape: bf16[2,128,384], index: 6, kind: input, shape index: {}]
  %s7 = inlined_call_operand.vmem [shape: bf16[2,1,384], index: 7, kind: input, shape index: {}]
  %s8 = inlined_call_operand.vmem [shape: bf16[2,128,128], index: 8, kind: input, shape index: {}]
  %s9 = inlined_call_operand.vmem [shape: bf16[2,1,128], index: 9, kind: input, shape index: {}]
  %s10 = inlined_call_operand.vmem [shape: bf16[2,1,128], index: 10, kind: input, shape index: {}]
  %s11 = inlined_call_operand.vmem [shape: bf16[2,1,128], index: 11, kind: input, shape index: {}]
  %s12 = inlined_call_operand.hbm [shape: bf16[2,128,512], index: 12, kind: input, shape index: {}]
  %s13 = inlined_call_operand.vmem [shape: bf16[2,1,512], index: 13, kind: input, shape index: {}]
  %s14 = inlined_call_operand.hbm [shape: bf16[2,512,128], index: 14, kind: input, shape index: {}]
  %s15 = inlined_call_operand.vmem [shape: bf16[2,1,128], index: 15, kind: input, shape index: {}]
  %s16 = inlined_call_operand.vmem [shape: bf16[2,1,128], index: 16, kind: input, shape index: {}]
  %s17 = inlined_call_operand.vmem [shape: bf16[2,1,128], index: 17, kind: input, shape index: {}]
  %s18 = inlined_call_operand.vmem [shape: bf16[128,128], index: 18, kind: input, shape index: {}]
  %s19 = inlined_call_operand.vmem [shape: bf16[1,128], index: 19, kind: input, shape index: {}]
  %s20 = inlined_call_operand.hbm [shape: bf16[128,128], index: 20, kind: input, shape index: {}]
  %s21 = inlined_call_operand.vmem [shape: bf16[1,128], index: 21, kind: input, shape index: {}]
  %s22 = inlined_call_operand.hbm [shape: bf16[128,128], index: 22, kind: input, shape index: {}]
  %s23 = inlined_call_operand.vmem [shape: bf16[1,128], index: 23, kind: input, shape index: {}]
  %s24 = inlined_call_operand.vmem [shape: bf16[1,128], index: 24, kind: input, shape index: {}]
  %s25 = inlined_call_operand.<no memory space> [shape: f32[1,1], index: 25, kind: input, shape index: {}]
  %s26 = inlined_call_operand.vmem [shape: f32[2,1], index: 26, kind: output, shape index: {}]
  %s27 = sld [smem:[#allocation0]]
  $region165: #{bert_regression_forward.1} parent=0
    _
  %s29 = ssub.s32 1, %s27
  %s30 = scalar_select 0, %s29, %s27
  %v31 = vstv %s25
  %32 = vst [vmem:[#allocation3] sm:$0x1] %v31
  $region1: #{bert_regression_forward.1} parent=0
    #allocation4 [shape = 'u8[196608]{0}', space=vmem, size = 0x30000, scoped, tag = 'input window, operand 6']
    #allocation5 [shape = 's32[2]{0}', space=sflag, size = 0x8, scoped, tag = 'scoped memory for bert_regression_forward.1']
    #allocation6 [shape = 'u8[262144]{0}', space=vmem, size = 0x40000, scoped, tag = 'input window, operand 12']
    #allocation7 [shape = 's32[2]{0}', space=sflag, size = 0x8, scoped, tag = 'scoped memory for bert_regression_forward.1']
    #allocation8 [shape = 'u8[262144]{0}', space=vmem, size = 0x40000, scoped, tag = 'input window, operand 14']
    #allocation9 [shape = 'u8[32768]{0}', space=vmem, size = 0x8000, scoped, tag = 'input window, operand 20, single buffered']
    #allocation10 [shape = 's32[1]{0}', space=sflag, size = 0x4, scoped, tag = 'scoped memory for bert_regression_forward.1']
    #allocation11 [shape = 'u8[32768]{0}', space=vmem, size = 0x8000, scoped, tag = 'input window, operand 22, single buffered']
    %33 = vsyncpa [#allocation5], 0
    %s34 = scalar_lea.sflag [#allocation5], 1
    %35 = vsyncpa %s34, 0
    %36 = vsyncpa [#allocation7], 0
    %s37 = scalar_lea.sflag [#allocation7], 1
    %38 = vsyncpa %s37, 0
    %39 = vsyncpa [#allocation10], 0
    loop: start=0, step=1, limit=4
    $region2: #{bert_regression_forward.1} parent=1 // loop_pre_header
      _
    $region3: #{bert_regression_forward.1} parent=1 // loop_header
      %s41 = sphi 0, %s45
      %p42 = scmp.ge.s32.totalorder %s41, 4
      %s49 = sphi 0, %s49
      %s51 = sphi 0, %s49
      %s52 = sphi 0, %s51
      %s66 = sphi 0, %s52
      %s70 = sphi 0, %s70
      %s72 = sphi 0, %s70
      %s73 = sphi 0, %s72
      %s87 = sphi 0, %s73
      %s91 = sphi 0, %s91
      %s93 = sphi 0, %s91
      %s94 = sphi 0, %s93
      %s108 = sphi 0, %s94
      %s112 = sphi 0, %s112
      %s114 = sphi 0, %s112
      %s115 = sphi 0, %s114
      %s129 = sphi 0, %s115
      %s133 = sphi 0, %s133
      %s135 = sphi 0, %s133
      %s136 = sphi 0, %s135
      %s150 = sphi 0, %s136
      %s154 = sphi 0, %s154
      %s156 = sphi 0, %s154
      %s157 = sphi 0, %s156
      %s171 = sphi 0, %s157
      %s177 = sphi 0, %s179
      %s180 = sphi 0, %s177
      %s181 = sphi 0, %s180
      %s197 = sphi 0, %s181
      %s203 = sphi 0, %s205
      %s206 = sphi 0, %s203
      %s207 = sphi 0, %s206
      %s223 = sphi 0, %s207
      %s229 = sphi 0, %s231
      %s232 = sphi 0, %s229
      %s233 = sphi 0, %s232
      %s249 = sphi 0, %s233
      %s255 = sphi 0, %s257
      %s258 = sphi 0, %s255
      %s259 = sphi 0, %s258
      %s275 = sphi 0, %s259
      %s281 = sphi 0, %s283
      %s284 = sphi 0, %s281
      %s285 = sphi 0, %s284
      %s301 = sphi 0, %s285
      %s307 = sphi 0, %s309
      %s310 = sphi 0, %s307
      %s311 = sphi 0, %s310
      %s327 = sphi 0, %s311
      %s333 = sphi 0, %s335
      %s336 = sphi 0, %s333
      %s337 = sphi 0, %s336
      %s353 = sphi 0, %s337
      %s359 = sphi 0, %s361
      %s362 = sphi 0, %s359
      %s363 = sphi 0, %s362
      %s379 = sphi 0, %s363
      %s385 = sphi 0, %s387
      %s388 = sphi 0, %s385
      %s389 = sphi 0, %s388
      %s405 = sphi 0, %s389
      %s411 = sphi 0, %s413
      %s414 = sphi 0, %s411
      %s415 = sphi 0, %s414
      %s431 = sphi 0, %s415
      %s437 = sphi 0, %s439
      %s440 = sphi 0, %s437
      %s441 = sphi 0, %s440
      %s457 = sphi 0, %s441
      %s463 = sphi 0, %s465
      %s466 = sphi 0, %s463
      %s467 = sphi 0, %s466
      %s483 = sphi 0, %s467
      %s487 = sphi 0, %s487
      %s489 = sphi 0, %s487
      %s490 = sphi 0, %s489
      %s504 = sphi 0, %s490
      %s508 = sphi 0, %s508
      %s510 = sphi 0, %s508
      %s511 = sphi 0, %s510
      %s525 = sphi 0, %s511
      %s529 = sphi 0, %s529
      %s531 = sphi 0, %s529
      %s532 = sphi 0, %s531
      %s546 = sphi 0, %s532
      %s550 = sphi 0, %s550
      %s552 = sphi 0, %s550
      %s553 = sphi 0, %s552
      %s567 = sphi 0, %s553
      %s571 = sphi 0, %s571
      %s573 = sphi 0, %s571
      %s574 = sphi 0, %s573
      %s588 = sphi 0, %s574
      %s592 = sphi 0, %s592
      %s594 = sphi 0, %s592
      %s595 = sphi 0, %s594
      %s609 = sphi 0, %s595
      %s613 = sphi 0, %s613
      %s615 = sphi 0, %s613
      %s616 = sphi 0, %s615
      %s630 = sphi 0, %s616
      %s634 = sphi 0, %s634
      %s636 = sphi 0, %s634
      %s637 = sphi 0, %s636
      %s651 = sphi 0, %s637
      %s655 = sphi 0, %s655
      %s657 = sphi 0, %s655
      %s658 = sphi 0, %s657
      %s672 = sphi 0, %s658
    $region4: #{bert_regression_forward.1} parent=1 // loop_header_branch
      %44 = sbr.rel (%p42) target = $region8
    $region5: #{bert_regression_forward.1} parent=1 // loop_body
      %s46 = ssub.s32 %s41, 1
      %s47 = ssub.s32 %s41, 2
      %s48 = sadd.s32 %s41, 1
      %s50 = sadd.s32 %s49, 1
      %p53 = scmp.eq.s32.totalorder %s41, 1
      %p54 = scmp.ne.s32.totalorder %s49, %s51
      %p55 = scmp.eq.s32.totalorder %s41, 0
      %p56 = por %p54, %p55
      %p57 = scmp.ne.s32.totalorder %s49, %s51
      %p58 = scmp.eq.s32.totalorder %s46, 1
      %p59 = por %p57, %p58
      %p60 = scmp.ne.s32.totalorder %s51, %s52
      %p61 = scmp.eq.s32.totalorder %s46, 0
      %p62 = por %p60, %p61
      %p63 = scmp.ne.s32.totalorder %s51, %s52
      %p64 = scmp.eq.s32.totalorder %s47, 1
      %p65 = por %p63, %p64
      %p67 = scmp.ne.s32.totalorder %s52, %s66
      %p68 = scmp.eq.s32.totalorder %s47, 0
      %p69 = por %p67, %p68
      %s71 = sadd.s32 %s70, 1
      %p74 = scmp.eq.s32.totalorder %s41, 1
      %p75 = scmp.ne.s32.totalorder %s70, %s72
      %p76 = scmp.eq.s32.totalorder %s41, 0
      %p77 = por %p75, %p76
      %p78 = scmp.ne.s32.totalorder %s70, %s72
      %p79 = scmp.eq.s32.totalorder %s46, 1
      %p80 = por %p78, %p79
      %p81 = scmp.ne.s32.totalorder %s72, %s73
      %p82 = scmp.eq.s32.totalorder %s46, 0
      %p83 = por %p81, %p82
      %p84 = scmp.ne.s32.totalorder %s72, %s73
      %p85 = scmp.eq.s32.totalorder %s47, 1
      %p86 = por %p84, %p85
      %p88 = scmp.ne.s32.totalorder %s73, %s87
      %p89 = scmp.eq.s32.totalorder %s47, 0
      %p90 = por %p88, %p89
      %s92 = sadd.s32 %s91, 1
      %p95 = scmp.eq.s32.totalorder %s41, 1
      %p96 = scmp.ne.s32.totalorder %s91, %s93
      %p97 = scmp.eq.s32.totalorder %s41, 0
      %p98 = por %p96, %p97
      %p99 = scmp.ne.s32.totalorder %s91, %s93
      %p100 = scmp.eq.s32.totalorder %s46, 1
      %p101 = por %p99, %p100
      %p102 = scmp.ne.s32.totalorder %s93, %s94
      %p103 = scmp.eq.s32.totalorder %s46, 0
      %p104 = por %p102, %p103
      %p105 = scmp.ne.s32.totalorder %s93, %s94
      %p106 = scmp.eq.s32.totalorder %s47, 1
      %p107 = por %p105, %p106
      %p109 = scmp.ne.s32.totalorder %s94, %s108
      %p110 = scmp.eq.s32.totalorder %s47, 0
      %p111 = por %p109, %p110
      %s113 = sadd.s32 %s112, 1
      %p116 = scmp.eq.s32.totalorder %s41, 1
      %p117 = scmp.ne.s32.totalorder %s112, %s114
      %p118 = scmp.eq.s32.totalorder %s41, 0
      %p119 = por %p117, %p118
      %p120 = scmp.ne.s32.totalorder %s112, %s114
      %p121 = scmp.eq.s32.totalorder %s46, 1
      %p122 = por %p120, %p121
      %p123 = scmp.ne.s32.totalorder %s114, %s115
      %p124 = scmp.eq.s32.totalorder %s46, 0
      %p125 = por %p123, %p124
      %p126 = scmp.ne.s32.totalorder %s114, %s115
      %p127 = scmp.eq.s32.totalorder %s47, 1
      %p128 = por %p126, %p127
      %p130 = scmp.ne.s32.totalorder %s115, %s129
      %p131 = scmp.eq.s32.totalorder %s47, 0
      %p132 = por %p130, %p131
      %s134 = sadd.s32 %s133, 1
      %p137 = scmp.eq.s32.totalorder %s41, 1
      %p138 = scmp.ne.s32.totalorder %s133, %s135
      %p139 = scmp.eq.s32.totalorder %s41, 0
      %p140 = por %p138, %p139
      %p141 = scmp.ne.s32.totalorder %s133, %s135
      %p142 = scmp.eq.s32.totalorder %s46, 1
      %p143 = por %p141, %p142
      %p144 = scmp.ne.s32.totalorder %s135, %s136
      %p145 = scmp.eq.s32.totalorder %s46, 0
      %p146 = por %p144, %p145
      %p147 = scmp.ne.s32.totalorder %s135, %s136
      %p148 = scmp.eq.s32.totalorder %s47, 1
      %p149 = por %p147, %p148
      %p151 = scmp.ne.s32.totalorder %s136, %s150
      %p152 = scmp.eq.s32.totalorder %s47, 0
      %p153 = por %p151, %p152
      %s155 = sadd.s32 %s154, 1
      %p158 = scmp.eq.s32.totalorder %s41, 1
      %p159 = scmp.ne.s32.totalorder %s154, %s156
      %p160 = scmp.eq.s32.totalorder %s41, 0
      %p161 = por %p159, %p160
      %p162 = scmp.ne.s32.totalorder %s154, %s156
      %p163 = scmp.eq.s32.totalorder %s46, 1
      %p164 = por %p162, %p163
      %p165 = scmp.ne.s32.totalorder %s156, %s157
      %p166 = scmp.eq.s32.totalorder %s46, 0
      %p167 = por %p165, %p166
      %p168 = scmp.ne.s32.totalorder %s156, %s157
      %p169 = scmp.eq.s32.totalorder %s47, 1
      %p170 = por %p168, %p169
      %p172 = scmp.ne.s32.totalorder %s157, %s171
      %p173 = scmp.eq.s32.totalorder %s47, 0
      %p174 = por %p172, %p173
      %s175 = ssub.s32 %s41, %s48
      %p176 = scmp.eq.s32.totalorder %s175, 0
      %s178 = sadd.s32 %s177, 1
      %s179 = scalar_select %p176, %s177, %s178
      %p182 = pneg %p176
      %p183 = scmp.eq.s32.totalorder %s41, 1
      %p184 = por %p182, %p183
      %p185 = scmp.ne.s32.totalorder %s177, %s180
      %p186 = scmp.eq.s32.totalorder %s41, 0
      %p187 = por %p185, %p186
      %p188 = scmp.ne.s32.totalorder %s177, %s180
      %p189 = scmp.eq.s32.totalorder %s46, 1
      %p190 = por %p188, %p189
      %p191 = scmp.ne.s32.totalorder %s180, %s181
      %p192 = scmp.eq.s32.totalorder %s46, 0
      %p193 = por %p191, %p192
      %p194 = scmp.ne.s32.totalorder %s180, %s181
      %p195 = scmp.eq.s32.totalorder %s47, 1
      %p196 = por %p194, %p195
      %p198 = scmp.ne.s32.totalorder %s181, %s197
      %p199 = scmp.eq.s32.totalorder %s47, 0
      %p200 = por %p198, %p199
      %s201 = ssub.s32 %s41, %s48
      %p202 = scmp.eq.s32.totalorder %s201, 0
      %s204 = sadd.s32 %s203, 1
      %s205 = scalar_select %p202, %s203, %s204
      %p208 = pneg %p202
      %p209 = scmp.eq.s32.totalorder %s41, 1
      %p210 = por %p208, %p209
      %p211 = scmp.ne.s32.totalorder %s203, %s206
      %p212 = scmp.eq.s32.totalorder %s41, 0
      %p213 = por %p211, %p212
      %p214 = scmp.ne.s32.totalorder %s203, %s206
      %p215 = scmp.eq.s32.totalorder %s46, 1
      %p216 = por %p214, %p215
      %p217 = scmp.ne.s32.totalorder %s206, %s207
      %p218 = scmp.eq.s32.totalorder %s46, 0
      %p219 = por %p217, %p218
      %p220 = scmp.ne.s32.totalorder %s206, %s207
      %p221 = scmp.eq.s32.totalorder %s47, 1
      %p222 = por %p220, %p221
      %p224 = scmp.ne.s32.totalorder %s207, %s223
      %p225 = scmp.eq.s32.totalorder %s47, 0
      %p226 = por %p224, %p225
      %s227 = ssub.s32 %s41, %s48
      %p228 = scmp.eq.s32.totalorder %s227, 0
      %s230 = sadd.s32 %s229, 1
      %s231 = scalar_select %p228, %s229, %s230
      %p234 = pneg %p228
      %p235 = scmp.eq.s32.totalorder %s41, 1
      %p236 = por %p234, %p235
      %p237 = scmp.ne.s32.totalorder %s229, %s232
      %p238 = scmp.eq.s32.totalorder %s41, 0
      %p239 = por %p237, %p238
      %p240 = scmp.ne.s32.totalorder %s229, %s232
      %p241 = scmp.eq.s32.totalorder %s46, 1
      %p242 = por %p240, %p241
      %p243 = scmp.ne.s32.totalorder %s232, %s233
      %p244 = scmp.eq.s32.totalorder %s46, 0
      %p245 = por %p243, %p244
      %p246 = scmp.ne.s32.totalorder %s232, %s233
      %p247 = scmp.eq.s32.totalorder %s47, 1
      %p248 = por %p246, %p247
      %p250 = scmp.ne.s32.totalorder %s233, %s249
      %p251 = scmp.eq.s32.totalorder %s47, 0
      %p252 = por %p250, %p251
      %s253 = ssub.s32 %s41, %s48
      %p254 = scmp.eq.s32.totalorder %s253, 0
      %s256 = sadd.s32 %s255, 1
      %s257 = scalar_select %p254, %s255, %s256
      %p260 = pneg %p254
      %p261 = scmp.eq.s32.totalorder %s41, 1
      %p262 = por %p260, %p261
      %p263 = scmp.ne.s32.totalorder %s255, %s258
      %p264 = scmp.eq.s32.totalorder %s41, 0
      %p265 = por %p263, %p264
      %p266 = scmp.ne.s32.totalorder %s255, %s258
      %p267 = scmp.eq.s32.totalorder %s46, 1
      %p268 = por %p266, %p267
      %p269 = scmp.ne.s32.totalorder %s258, %s259
      %p270 = scmp.eq.s32.totalorder %s46, 0
      %p271 = por %p269, %p270
      %p272 = scmp.ne.s32.totalorder %s258, %s259
      %p273 = scmp.eq.s32.totalorder %s47, 1
      %p274 = por %p272, %p273
      %p276 = scmp.ne.s32.totalorder %s259, %s275
      %p277 = scmp.eq.s32.totalorder %s47, 0
      %p278 = por %p276, %p277
      %s279 = ssub.s32 %s41, %s48
      %p280 = scmp.eq.s32.totalorder %s279, 0
      %s282 = sadd.s32 %s281, 1
      %s283 = scalar_select %p280, %s281, %s282
      %p286 = pneg %p280
      %p287 = scmp.eq.s32.totalorder %s41, 1
      %p288 = por %p286, %p287
      %p289 = scmp.ne.s32.totalorder %s281, %s284
      %p290 = scmp.eq.s32.totalorder %s41, 0
      %p291 = por %p289, %p290
      %p292 = scmp.ne.s32.totalorder %s281, %s284
      %p293 = scmp.eq.s32.totalorder %s46, 1
      %p294 = por %p292, %p293
      %p295 = scmp.ne.s32.totalorder %s284, %s285
      %p296 = scmp.eq.s32.totalorder %s46, 0
      %p297 = por %p295, %p296
      %p298 = scmp.ne.s32.totalorder %s284, %s285
      %p299 = scmp.eq.s32.totalorder %s47, 1
      %p300 = por %p298, %p299
      %p302 = scmp.ne.s32.totalorder %s285, %s301
      %p303 = scmp.eq.s32.totalorder %s47, 0
      %p304 = por %p302, %p303
      %s305 = ssub.s32 %s41, %s48
      %p306 = scmp.eq.s32.totalorder %s305, 0
      %s308 = sadd.s32 %s307, 1
      %s309 = scalar_select %p306, %s307, %s308
      %p312 = pneg %p306
      %p313 = scmp.eq.s32.totalorder %s41, 1
      %p314 = por %p312, %p313
      %p315 = scmp.ne.s32.totalorder %s307, %s310
      %p316 = scmp.eq.s32.totalorder %s41, 0
      %p317 = por %p315, %p316
      %p318 = scmp.ne.s32.totalorder %s307, %s310
      %p319 = scmp.eq.s32.totalorder %s46, 1
      %p320 = por %p318, %p319
      %p321 = scmp.ne.s32.totalorder %s310, %s311
      %p322 = scmp.eq.s32.totalorder %s46, 0
      %p323 = por %p321, %p322
      %p324 = scmp.ne.s32.totalorder %s310, %s311
      %p325 = scmp.eq.s32.totalorder %s47, 1
      %p326 = por %p324, %p325
      %p328 = scmp.ne.s32.totalorder %s311, %s327
      %p329 = scmp.eq.s32.totalorder %s47, 0
      %p330 = por %p328, %p329
      %s331 = ssub.s32 %s41, %s48
      %p332 = scmp.eq.s32.totalorder %s331, 0
      %s334 = sadd.s32 %s333, 1
      %s335 = scalar_select %p332, %s333, %s334
      %p338 = pneg %p332
      %p339 = scmp.eq.s32.totalorder %s41, 1
      %p340 = por %p338, %p339
      %p341 = scmp.ne.s32.totalorder %s333, %s336
      %p342 = scmp.eq.s32.totalorder %s41, 0
      %p343 = por %p341, %p342
      %p344 = scmp.ne.s32.totalorder %s333, %s336
      %p345 = scmp.eq.s32.totalorder %s46, 1
      %p346 = por %p344, %p345
      %p347 = scmp.ne.s32.totalorder %s336, %s337
      %p348 = scmp.eq.s32.totalorder %s46, 0
      %p349 = por %p347, %p348
      %p350 = scmp.ne.s32.totalorder %s336, %s337
      %p351 = scmp.eq.s32.totalorder %s47, 1
      %p352 = por %p350, %p351
      %p354 = scmp.ne.s32.totalorder %s337, %s353
      %p355 = scmp.eq.s32.totalorder %s47, 0
      %p356 = por %p354, %p355
      %s357 = ssub.s32 %s41, %s48
      %p358 = scmp.eq.s32.totalorder %s357, 0
      %s360 = sadd.s32 %s359, 1
      %s361 = scalar_select %p358, %s359, %s360
      %p364 = pneg %p358
      %p365 = scmp.eq.s32.totalorder %s41, 1
      %p366 = por %p364, %p365
      %p367 = scmp.ne.s32.totalorder %s359, %s362
      %p368 = scmp.eq.s32.totalorder %s41, 0
      %p369 = por %p367, %p368
      %p370 = scmp.ne.s32.totalorder %s359, %s362
      %p371 = scmp.eq.s32.totalorder %s46, 1
      %p372 = por %p370, %p371
      %p373 = scmp.ne.s32.totalorder %s362, %s363
      %p374 = scmp.eq.s32.totalorder %s46, 0
      %p375 = por %p373, %p374
      %p376 = scmp.ne.s32.totalorder %s362, %s363
      %p377 = scmp.eq.s32.totalorder %s47, 1
      %p378 = por %p376, %p377
      %p380 = scmp.ne.s32.totalorder %s363, %s379
      %p381 = scmp.eq.s32.totalorder %s47, 0
      %p382 = por %p380, %p381
      %s383 = ssub.s32 %s41, %s48
      %p384 = scmp.eq.s32.totalorder %s383, 0
      %s386 = sadd.s32 %s385, 1
      %s387 = scalar_select %p384, %s385, %s386
      %p390 = pneg %p384
      %p391 = scmp.eq.s32.totalorder %s41, 1
      %p392 = por %p390, %p391
      %p393 = scmp.ne.s32.totalorder %s385, %s388
      %p394 = scmp.eq.s32.totalorder %s41, 0
      %p395 = por %p393, %p394
      %p396 = scmp.ne.s32.totalorder %s385, %s388
      %p397 = scmp.eq.s32.totalorder %s46, 1
      %p398 = por %p396, %p397
      %p399 = scmp.ne.s32.totalorder %s388, %s389
      %p400 = scmp.eq.s32.totalorder %s46, 0
      %p401 = por %p399, %p400
      %p402 = scmp.ne.s32.totalorder %s388, %s389
      %p403 = scmp.eq.s32.totalorder %s47, 1
      %p404 = por %p402, %p403
      %p406 = scmp.ne.s32.totalorder %s389, %s405
      %p407 = scmp.eq.s32.totalorder %s47, 0
      %p408 = por %p406, %p407
      %s409 = ssub.s32 %s41, %s48
      %p410 = scmp.eq.s32.totalorder %s409, 0
      %s412 = sadd.s32 %s411, 1
      %s413 = scalar_select %p410, %s411, %s412
      %p416 = pneg %p410
      %p417 = scmp.eq.s32.totalorder %s41, 1
      %p418 = por %p416, %p417
      %p419 = scmp.ne.s32.totalorder %s411, %s414
      %p420 = scmp.eq.s32.totalorder %s41, 0
      %p421 = por %p419, %p420
      %p422 = scmp.ne.s32.totalorder %s411, %s414
      %p423 = scmp.eq.s32.totalorder %s46, 1
      %p424 = por %p422, %p423
      %p425 = scmp.ne.s32.totalorder %s414, %s415
      %p426 = scmp.eq.s32.totalorder %s46, 0
      %p427 = por %p425, %p426
      %p428 = scmp.ne.s32.totalorder %s414, %s415
      %p429 = scmp.eq.s32.totalorder %s47, 1
      %p430 = por %p428, %p429
      %p432 = scmp.ne.s32.totalorder %s415, %s431
      %p433 = scmp.eq.s32.totalorder %s47, 0
      %p434 = por %p432, %p433
      %s435 = ssub.s32 %s41, %s48
      %p436 = scmp.eq.s32.totalorder %s435, 0
      %s438 = sadd.s32 %s437, 1
      %s439 = scalar_select %p436, %s437, %s438
      %p442 = pneg %p436
      %p443 = scmp.eq.s32.totalorder %s41, 1
      %p444 = por %p442, %p443
      %p445 = scmp.ne.s32.totalorder %s437, %s440
      %p446 = scmp.eq.s32.totalorder %s41, 0
      %p447 = por %p445, %p446
      %p448 = scmp.ne.s32.totalorder %s437, %s440
      %p449 = scmp.eq.s32.totalorder %s46, 1
      %p450 = por %p448, %p449
      %p451 = scmp.ne.s32.totalorder %s440, %s441
      %p452 = scmp.eq.s32.totalorder %s46, 0
      %p453 = por %p451, %p452
      %p454 = scmp.ne.s32.totalorder %s440, %s441
      %p455 = scmp.eq.s32.totalorder %s47, 1
      %p456 = por %p454, %p455
      %p458 = scmp.ne.s32.totalorder %s441, %s457
      %p459 = scmp.eq.s32.totalorder %s47, 0
      %p460 = por %p458, %p459
      %s461 = ssub.s32 %s41, %s48
      %p462 = scmp.eq.s32.totalorder %s461, 0
      %s464 = sadd.s32 %s463, 1
      %s465 = scalar_select %p462, %s463, %s464
      %p468 = pneg %p462
      %p469 = scmp.eq.s32.totalorder %s41, 1
      %p470 = por %p468, %p469
      %p471 = scmp.ne.s32.totalorder %s463, %s466
      %p472 = scmp.eq.s32.totalorder %s41, 0
      %p473 = por %p471, %p472
      %p474 = scmp.ne.s32.totalorder %s463, %s466
      %p475 = scmp.eq.s32.totalorder %s46, 1
      %p476 = por %p474, %p475
      %p477 = scmp.ne.s32.totalorder %s466, %s467
      %p478 = scmp.eq.s32.totalorder %s46, 0
      %p479 = por %p477, %p478
      %p480 = scmp.ne.s32.totalorder %s466, %s467
      %p481 = scmp.eq.s32.totalorder %s47, 1
      %p482 = por %p480, %p481
      %p484 = scmp.ne.s32.totalorder %s467, %s483
      %p485 = scmp.eq.s32.totalorder %s47, 0
      %p486 = por %p484, %p485
      %s488 = sadd.s32 %s487, 1
      %p491 = scmp.eq.s32.totalorder %s41, 1
      %p492 = scmp.ne.s32.totalorder %s487, %s489
      %p493 = scmp.eq.s32.totalorder %s41, 0
      %p494 = por %p492, %p493
      %p495 = scmp.ne.s32.totalorder %s487, %s489
      %p496 = scmp.eq.s32.totalorder %s46, 1
      %p497 = por %p495, %p496
      %p498 = scmp.ne.s32.totalorder %s489, %s490
      %p499 = scmp.eq.s32.totalorder %s46, 0
      %p500 = por %p498, %p499
      %p501 = scmp.ne.s32.totalorder %s489, %s490
      %p502 = scmp.eq.s32.totalorder %s47, 1
      %p503 = por %p501, %p502
      %p505 = scmp.ne.s32.totalorder %s490, %s504
      %p506 = scmp.eq.s32.totalorder %s47, 0
      %p507 = por %p505, %p506
      %s509 = sadd.s32 %s508, 1
      %p512 = scmp.eq.s32.totalorder %s41, 1
      %p513 = scmp.ne.s32.totalorder %s508, %s510
      %p514 = scmp.eq.s32.totalorder %s41, 0
      %p515 = por %p513, %p514
      %p516 = scmp.ne.s32.totalorder %s508, %s510
      %p517 = scmp.eq.s32.totalorder %s46, 1
      %p518 = por %p516, %p517
      %p519 = scmp.ne.s32.totalorder %s510, %s511
      %p520 = scmp.eq.s32.totalorder %s46, 0
      %p521 = por %p519, %p520
      %p522 = scmp.ne.s32.totalorder %s510, %s511
      %p523 = scmp.eq.s32.totalorder %s47, 1
      %p524 = por %p522, %p523
      %p526 = scmp.ne.s32.totalorder %s511, %s525
      %p527 = scmp.eq.s32.totalorder %s47, 0
      %p528 = por %p526, %p527
      %s530 = sadd.s32 %s529, 1
      %p533 = scmp.eq.s32.totalorder %s41, 1
      %p534 = scmp.ne.s32.totalorder %s529, %s531
      %p535 = scmp.eq.s32.totalorder %s41, 0
      %p536 = por %p534, %p535
      %p537 = scmp.ne.s32.totalorder %s529, %s531
      %p538 = scmp.eq.s32.totalorder %s46, 1
      %p539 = por %p537, %p538
      %p540 = scmp.ne.s32.totalorder %s531, %s532
      %p541 = scmp.eq.s32.totalorder %s46, 0
      %p542 = por %p540, %p541
      %p543 = scmp.ne.s32.totalorder %s531, %s532
      %p544 = scmp.eq.s32.totalorder %s47, 1
      %p545 = por %p543, %p544
      %p547 = scmp.ne.s32.totalorder %s532, %s546
      %p548 = scmp.eq.s32.totalorder %s47, 0
      %p549 = por %p547, %p548
      %s551 = sadd.s32 %s550, 1
      %p554 = scmp.eq.s32.totalorder %s41, 1
      %p555 = scmp.ne.s32.totalorder %s550, %s552
      %p556 = scmp.eq.s32.totalorder %s41, 0
      %p557 = por %p555, %p556
      %p558 = scmp.ne.s32.totalorder %s550, %s552
      %p559 = scmp.eq.s32.totalorder %s46, 1
      %p560 = por %p558, %p559
      %p561 = scmp.ne.s32.totalorder %s552, %s553
      %p562 = scmp.eq.s32.totalorder %s46, 0
      %p563 = por %p561, %p562
      %p564 = scmp.ne.s32.totalorder %s552, %s553
      %p565 = scmp.eq.s32.totalorder %s47, 1
      %p566 = por %p564, %p565
      %p568 = scmp.ne.s32.totalorder %s553, %s567
      %p569 = scmp.eq.s32.totalorder %s47, 0
      %p570 = por %p568, %p569
      %s572 = sadd.s32 %s571, 1
      %p575 = scmp.eq.s32.totalorder %s41, 1
      %p576 = scmp.ne.s32.totalorder %s571, %s573
      %p577 = scmp.eq.s32.totalorder %s41, 0
      %p578 = por %p576, %p577
      %p579 = scmp.ne.s32.totalorder %s571, %s573
      %p580 = scmp.eq.s32.totalorder %s46, 1
      %p581 = por %p579, %p580
      %p582 = scmp.ne.s32.totalorder %s573, %s574
      %p583 = scmp.eq.s32.totalorder %s46, 0
      %p584 = por %p582, %p583
      %p585 = scmp.ne.s32.totalorder %s573, %s574
      %p586 = scmp.eq.s32.totalorder %s47, 1
      %p587 = por %p585, %p586
      %p589 = scmp.ne.s32.totalorder %s574, %s588
      %p590 = scmp.eq.s32.totalorder %s47, 0
      %p591 = por %p589, %p590
      %s593 = sadd.s32 %s592, 1
      %p596 = scmp.eq.s32.totalorder %s41, 1
      %p597 = scmp.ne.s32.totalorder %s592, %s594
      %p598 = scmp.eq.s32.totalorder %s41, 0
      %p599 = por %p597, %p598
      %p600 = scmp.ne.s32.totalorder %s592, %s594
      %p601 = scmp.eq.s32.totalorder %s46, 1
      %p602 = por %p600, %p601
      %p603 = scmp.ne.s32.totalorder %s594, %s595
      %p604 = scmp.eq.s32.totalorder %s46, 0
      %p605 = por %p603, %p604
      %p606 = scmp.ne.s32.totalorder %s594, %s595
      %p607 = scmp.eq.s32.totalorder %s47, 1
      %p608 = por %p606, %p607
      %p610 = scmp.ne.s32.totalorder %s595, %s609
      %p611 = scmp.eq.s32.totalorder %s47, 0
      %p612 = por %p610, %p611
      %s614 = sadd.s32 %s613, 1
      %p617 = scmp.eq.s32.totalorder %s41, 1
      %p618 = scmp.ne.s32.totalorder %s613, %s615
      %p619 = scmp.eq.s32.totalorder %s41, 0
      %p620 = por %p618, %p619
      %p621 = scmp.ne.s32.totalorder %s613, %s615
      %p622 = scmp.eq.s32.totalorder %s46, 1
      %p623 = por %p621, %p622
      %p624 = scmp.ne.s32.totalorder %s615, %s616
      %p625 = scmp.eq.s32.totalorder %s46, 0
      %p626 = por %p624, %p625
      %p627 = scmp.ne.s32.totalorder %s615, %s616
      %p628 = scmp.eq.s32.totalorder %s47, 1
      %p629 = por %p627, %p628
      %p631 = scmp.ne.s32.totalorder %s616, %s630
      %p632 = scmp.eq.s32.totalorder %s47, 0
      %p633 = por %p631, %p632
      %s635 = sadd.s32 %s634, 1
      %p638 = scmp.eq.s32.totalorder %s41, 1
      %p639 = scmp.ne.s32.totalorder %s634, %s636
      %p640 = scmp.eq.s32.totalorder %s41, 0
      %p641 = por %p639, %p640
      %p642 = scmp.ne.s32.totalorder %s634, %s636
      %p643 = scmp.eq.s32.totalorder %s46, 1
      %p644 = por %p642, %p643
      %p645 = scmp.ne.s32.totalorder %s636, %s637
      %p646 = scmp.eq.s32.totalorder %s46, 0
      %p647 = por %p645, %p646
      %p648 = scmp.ne.s32.totalorder %s636, %s637
      %p649 = scmp.eq.s32.totalorder %s47, 1
      %p650 = por %p648, %p649
      %p652 = scmp.ne.s32.totalorder %s637, %s651
      %p653 = scmp.eq.s32.totalorder %s47, 0
      %p654 = por %p652, %p653
      %s656 = sadd.s32 %s655, 1
      %p659 = scmp.eq.s32.totalorder %s41, 1
      %p660 = scmp.ne.s32.totalorder %s655, %s657
      %p661 = scmp.eq.s32.totalorder %s41, 0
      %p662 = por %p660, %p661
      %p663 = scmp.ne.s32.totalorder %s655, %s657
      %p664 = scmp.eq.s32.totalorder %s46, 1
      %p665 = por %p663, %p664
      %p666 = scmp.ne.s32.totalorder %s657, %s658
      %p667 = scmp.eq.s32.totalorder %s46, 0
      %p668 = por %p666, %p667
      %p669 = scmp.ne.s32.totalorder %s657, %s658
      %p670 = scmp.eq.s32.totalorder %s47, 1
      %p671 = por %p669, %p670
      %p673 = scmp.ne.s32.totalorder %s658, %s672
      %p674 = scmp.eq.s32.totalorder %s47, 0
      %p675 = por %p673, %p674
      %p676 = scmp.le.s32.totalorder 1, %s41
      %p677 = scmp.lt.s32.totalorder %s41, 3
      %p678 = pnand %p676, %p677
      %p679 = pneg %p678
      // Predicated region
      $region9: #{bert_regression_forward.1} parent=5 // pred_check
        _
      $region10: #{bert_regression_forward.1} parent=5 // pred_check_branch
        %681 = sbr.rel (%p678) target = $region12
      $region11: #{bert_regression_forward.1} parent=5 // pred_region
        %s682 = ssub.s32 %s41, 1
        // Predicated region
        $region13: #{bert_regression_forward.1} parent=11 // pred_check
          %p683 = pneg %p62
        $region14: #{bert_regression_forward.1} parent=11 // pred_check_branch
          %685 = sbr.rel (%p683) target = $region16
        $region15: #{bert_regression_forward.1} parent=11 // pred_region
          _
        $region16: #{bert_regression_forward.1} parent=11 // pred_fallthru
          _
        // Predicated region
        $region17: #{bert_regression_forward.1} parent=11 // pred_check
          %p686 = pneg %p83
        $region18: #{bert_regression_forward.1} parent=11 // pred_check_branch
          %688 = sbr.rel (%p686) target = $region20
        $region19: #{bert_regression_forward.1} parent=11 // pred_region
          _
        $region20: #{bert_regression_forward.1} parent=11 // pred_fallthru
          _
        // Predicated region
        $region21: #{bert_regression_forward.1} parent=11 // pred_check
          %p689 = pneg %p104
        $region22: #{bert_regression_forward.1} parent=11 // pred_check_branch
          %691 = sbr.rel (%p689) target = $region24
        $region23: #{bert_regression_forward.1} parent=11 // pred_region
          _
        $region24: #{bert_regression_forward.1} parent=11 // pred_fallthru
          _
        // Predicated region
        $region25: #{bert_regression_forward.1} parent=11 // pred_check
          %p692 = pneg %p125
        $region26: #{bert_regression_forward.1} parent=11 // pred_check_branch
          %694 = sbr.rel (%p692) target = $region28
        $region27: #{bert_regression_forward.1} parent=11 // pred_region
          _
        $region28: #{bert_regression_forward.1} parent=11 // pred_fallthru
          _
        // Predicated region
        $region29: #{bert_regression_forward.1} parent=11 // pred_check
          %p695 = pneg %p146
        $region30: #{bert_regression_forward.1} parent=11 // pred_check_branch
          %697 = sbr.rel (%p695) target = $region32
        $region31: #{bert_regression_forward.1} parent=11 // pred_region
          _
        $region32: #{bert_regression_forward.1} parent=11 // pred_fallthru
          _
        // Predicated region
        $region33: #{bert_regression_forward.1} parent=11 // pred_check
          %p698 = pneg %p167
        $region34: #{bert_regression_forward.1} parent=11 // pred_check_branch
          %700 = sbr.rel (%p698) target = $region36
        $region35: #{bert_regression_forward.1} parent=11 // pred_region
          _
        $region36: #{bert_regression_forward.1} parent=11 // pred_fallthru
          _
        // Predicated region
        $region37: #{bert_regression_forward.1} parent=11 // pred_check
          %p701 = pneg %p500
        $region38: #{bert_regression_forward.1} parent=11 // pred_check_branch
          %703 = sbr.rel (%p701) target = $region40
        $region39: #{bert_regression_forward.1} parent=11 // pred_region
          _
        $region40: #{bert_regression_forward.1} parent=11 // pred_fallthru
          _
        // Predicated region
        $region41: #{bert_regression_forward.1} parent=11 // pred_check
          %p704 = pneg %p521
        $region42: #{bert_regression_forward.1} parent=11 // pred_check_branch
          %706 = sbr.rel (%p704) target = $region44
        $region43: #{bert_regression_forward.1} parent=11 // pred_region
          _
        $region44: #{bert_regression_forward.1} parent=11 // pred_fallthru
          _
        // Predicated region
        $region45: #{bert_regression_forward.1} parent=11 // pred_check
          %p707 = pneg %p542
        $region46: #{bert_regression_forward.1} parent=11 // pred_check_branch
          %709 = sbr.rel (%p707) target = $region48
        $region47: #{bert_regression_forward.1} parent=11 // pred_region
          %711 = vsyncadd [#allocation10], 0
          %s712 = sshll.u32 %s20, 4
          %s713 = int_to_ptr.hbm [resolvable:$true] %s712
          %s714 = sshll.u32 [#allocation9], 4
          %s715 = int_to_ptr.vmem [resolvable:$true] %s714
          %720 = dma.hbm_to_vmem [thread:$0]  %s713, 1024, %s715, [#allocation10], 64, 64, 4
        $region48: #{bert_regression_forward.1} parent=11 // pred_fallthru
          _
        // Predicated region
        $region49: #{bert_regression_forward.1} parent=11 // pred_check
          %p721 = pneg %p563
        $region50: #{bert_regression_forward.1} parent=11 // pred_check_branch
          %723 = sbr.rel (%p721) target = $region52
        $region51: #{bert_regression_forward.1} parent=11 // pred_region
          _
        $region52: #{bert_regression_forward.1} parent=11 // pred_fallthru
          _
        // Predicated region
        $region53: #{bert_regression_forward.1} parent=11 // pred_check
          %p724 = pneg %p584
        $region54: #{bert_regression_forward.1} parent=11 // pred_check_branch
          %726 = sbr.rel (%p724) target = $region56
        $region55: #{bert_regression_forward.1} parent=11 // pred_region
          %728 = vsyncadd [#allocation10], 0
          %s729 = sshll.u32 %s22, 4
          %s730 = int_to_ptr.hbm [resolvable:$true] %s729
          %s731 = sshll.u32 [#allocation11], 4
          %s732 = int_to_ptr.vmem [resolvable:$true] %s731
          %737 = dma.hbm_to_vmem [thread:$0]  %s730, 1024, %s732, [#allocation10], 64, 64, 4
        $region56: #{bert_regression_forward.1} parent=11 // pred_fallthru
          _
        // Predicated region
        $region57: #{bert_regression_forward.1} parent=11 // pred_check
          %p738 = pneg %p605
        $region58: #{bert_regression_forward.1} parent=11 // pred_check_branch
          %740 = sbr.rel (%p738) target = $region60
        $region59: #{bert_regression_forward.1} parent=11 // pred_region
          _
        $region60: #{bert_regression_forward.1} parent=11 // pred_fallthru
          _
        // Predicated region
        $region61: #{bert_regression_forward.1} parent=11 // pred_check
          %p741 = pneg %p626
        $region62: #{bert_regression_forward.1} parent=11 // pred_check_branch
          %743 = sbr.rel (%p741) target = $region64
        $region63: #{bert_regression_forward.1} parent=11 // pred_region
          _
        $region64: #{bert_regression_forward.1} parent=11 // pred_fallthru
          _
        // Predicated region
        $region65: #{bert_regression_forward.1} parent=11 // pred_check
          %p744 = pneg %p647
        $region66: #{bert_regression_forward.1} parent=11 // pred_check_branch
          %746 = sbr.rel (%p744) target = $region68
        $region67: #{bert_regression_forward.1} parent=11 // pred_region
          _
        $region68: #{bert_regression_forward.1} parent=11 // pred_fallthru
          _
      $region12: #{bert_regression_forward.1} parent=5 // pred_fallthru
        _
      %p747 = scmp.lt.s32.totalorder %s41, 2
      // Predicated region
      $region69: #{bert_regression_forward.1} parent=5 // pred_check
        %p748 = pneg %p747
      $region70: #{bert_regression_forward.1} parent=5 // pred_check_branch
        %750 = sbr.rel (%p748) target = $region72
      $region71: #{bert_regression_forward.1} parent=5 // pred_region
        // Predicated region
        $region73: #{bert_regression_forward.1} parent=71 // pred_check
          %p751 = pneg %p187
        $region74: #{bert_regression_forward.1} parent=71 // pred_check_branch
          %753 = sbr.rel (%p751) target = $region76
        $region75: #{bert_regression_forward.1} parent=71 // pred_region
          %s754 = sand.u32 %s177, 1
          %s755 = scalar_lea.sflag [#allocation5], %s754
          %s756 = sand.u32 %s177, 1
          %s757 = smul.addr %s756, 192
          %s758 = scalar_lea.vmem [#allocation4], %s757
          %760 = vsyncadd %s755, 0
          %s761 = smul.addr %s41, 48
          %s762 = smul.addr %s761, 4
          %s763 = scalar_lea.hbm %s6, %s762
          %s764 = sshll.u32 %s763, 4
          %s765 = int_to_ptr.hbm [resolvable:$true] %s764
          %s766 = sshll.u32 %s758, 4
          %s767 = int_to_ptr.vmem [resolvable:$true] %s766
          %772 = dma.hbm_to_vmem [thread:$0]  %s765, 3072, %s767, %s755, 192, 192, 12
        $region76: #{bert_regression_forward.1} parent=71 // pred_fallthru
          _
        // Predicated region
        $region77: #{bert_regression_forward.1} parent=71 // pred_check
          %p773 = pneg %p213
        $region78: #{bert_regression_forward.1} parent=71 // pred_check_branch
          %775 = sbr.rel (%p773) target = $region80
        $region79: #{bert_regression_forward.1} parent=71 // pred_region
          %p776 = scmp.lt.s32.totalorder %s41, 1
          %s777 = scalar_select %p776, %s41, 1
          %s778 = smul.addr %s777, 3
          %s779 = scalar_lea.vmem %s7, %s778
        $region80: #{bert_regression_forward.1} parent=71 // pred_fallthru
          _
        // Predicated region
        $region81: #{bert_regression_forward.1} parent=71 // pred_check
          %p780 = pneg %p239
        $region82: #{bert_regression_forward.1} parent=71 // pred_check_branch
          %782 = sbr.rel (%p780) target = $region84
        $region83: #{bert_regression_forward.1} parent=71 // pred_region
          %p783 = scmp.lt.s32.totalorder %s41, 1
          %s784 = scalar_select %p783, %s41, 1
          %s785 = smul.addr %s784, 16
          %s786 = smul.addr %s785, 4
          %s787 = scalar_lea.vmem %s8, %s786
        $region84: #{bert_regression_forward.1} parent=71 // pred_fallthru
          _
        // Predicated region
        $region85: #{bert_regression_forward.1} parent=71 // pred_check
          %p788 = pneg %p265
        $region86: #{bert_regression_forward.1} parent=71 // pred_check_branch
          %790 = sbr.rel (%p788) target = $region88
        $region87: #{bert_regression_forward.1} parent=71 // pred_region
          %p791 = scmp.lt.s32.totalorder %s41, 1
          %s792 = scalar_select %p791, %s41, 1
          %s793 = scalar_lea.vmem %s9, %s792
        $region88: #{bert_regression_forward.1} parent=71 // pred_fallthru
          _
        // Predicated region
        $region89: #{bert_regression_forward.1} parent=71 // pred_check
          %p794 = pneg %p291
        $region90: #{bert_regression_forward.1} parent=71 // pred_check_branch
          %796 = sbr.rel (%p794) target = $region92
        $region91: #{bert_regression_forward.1} parent=71 // pred_region
          %p797 = scmp.lt.s32.totalorder %s41, 1
          %s798 = scalar_select %p797, %s41, 1
          %s799 = scalar_lea.vmem %s10, %s798
        $region92: #{bert_regression_forward.1} parent=71 // pred_fallthru
          _
        // Predicated region
        $region93: #{bert_regression_forward.1} parent=71 // pred_check
          %p800 = pneg %p317
        $region94: #{bert_regression_forward.1} parent=71 // pred_check_branch
          %802 = sbr.rel (%p800) target = $region96
        $region95: #{bert_regression_forward.1} parent=71 // pred_region
          %p803 = scmp.lt.s32.totalorder %s41, 1
          %s804 = scalar_select %p803, %s41, 1
          %s805 = scalar_lea.vmem %s11, %s804
        $region96: #{bert_regression_forward.1} parent=71 // pred_fallthru
          _
        // Predicated region
        $region97: #{bert_regression_forward.1} parent=71 // pred_check
          %p806 = pneg %p343
        $region98: #{bert_regression_forward.1} parent=71 // pred_check_branch
          %808 = sbr.rel (%p806) target = $region100
        $region99: #{bert_regression_forward.1} parent=71 // pred_region
          %s809 = sand.u32 %s41, 1
          %s810 = scalar_lea.sflag [#allocation7], %s809
          %s811 = sand.u32 %s333, 1
          %s812 = smul.addr %s811, 256
          %s813 = scalar_lea.vmem [#allocation6], %s812
          %815 = vsyncadd %s810, 0
          %s816 = smul.addr %s41, 64
          %s817 = smul.addr %s816, 4
          %s818 = scalar_lea.hbm %s12, %s817
          %s819 = sshll.u32 %s818, 4
          %s820 = int_to_ptr.hbm [resolvable:$true] %s819
          %s821 = sshll.u32 %s813, 4
          %s822 = int_to_ptr.vmem [resolvable:$true] %s821
          %827 = dma.hbm_to_vmem [thread:$0]  %s820, 4096, %s822, %s810, 256, 256, 16
        $region100: #{bert_regression_forward.1} parent=71 // pred_fallthru
          _
        // Predicated region
        $region101: #{bert_regression_forward.1} parent=71 // pred_check
          %p828 = pneg %p369
        $region102: #{bert_regression_forward.1} parent=71 // pred_check_branch
          %830 = sbr.rel (%p828) target = $region104
        $region103: #{bert_regression_forward.1} parent=71 // pred_region
          %p831 = scmp.lt.s32.totalorder %s41, 1
          %s832 = scalar_select %p831, %s41, 1
          %s833 = smul.addr %s832, 4
          %s834 = scalar_lea.vmem %s13, %s833
        $region104: #{bert_regression_forward.1} parent=71 // pred_fallthru
          _
        // Predicated region
        $region105: #{bert_regression_forward.1} parent=71 // pred_check
          %p835 = pneg %p395
        $region106: #{bert_regression_forward.1} parent=71 // pred_check_branch
          %837 = sbr.rel (%p835) target = $region108
        $region107: #{bert_regression_forward.1} parent=71 // pred_region
          %s838 = sand.u32 %s41, 1
          %s839 = scalar_lea.sflag [#allocation7], %s838
          %s840 = sand.u32 %s385, 1
          %s841 = smul.addr %s840, 256
          %s842 = scalar_lea.vmem [#allocation8], %s841
          %844 = vsyncadd %s839, 0
          %s845 = smul.addr %s41, 64
          %s846 = smul.addr %s845, 4
          %s847 = scalar_lea.hbm %s14, %s846
          %s848 = sshll.u32 %s847, 4
          %s849 = int_to_ptr.hbm [resolvable:$true] %s848
          %s850 = sshll.u32 %s842, 4
          %s851 = int_to_ptr.vmem [resolvable:$true] %s850
          %856 = dma.hbm_to_vmem [thread:$0]  %s849, 4096, %s851, %s839, 64, 64, 4
        $region108: #{bert_regression_forward.1} parent=71 // pred_fallthru
          _
        // Predicated region
        $region109: #{bert_regression_forward.1} parent=71 // pred_check
          %p857 = pneg %p421
        $region110: #{bert_regression_forward.1} parent=71 // pred_check_branch
          %859 = sbr.rel (%p857) target = $region112
        $region111: #{bert_regression_forward.1} parent=71 // pred_region
          %p860 = scmp.lt.s32.totalorder %s41, 1
          %s861 = scalar_select %p860, %s41, 1
          %s862 = scalar_lea.vmem %s15, %s861
        $region112: #{bert_regression_forward.1} parent=71 // pred_fallthru
          _
        // Predicated region
        $region113: #{bert_regression_forward.1} parent=71 // pred_check
          %p863 = pneg %p447
        $region114: #{bert_regression_forward.1} parent=71 // pred_check_branch
          %865 = sbr.rel (%p863) target = $region116
        $region115: #{bert_regression_forward.1} parent=71 // pred_region
          %p866 = scmp.lt.s32.totalorder %s41, 1
          %s867 = scalar_select %p866, %s41, 1
          %s868 = scalar_lea.vmem %s16, %s867
        $region116: #{bert_regression_forward.1} parent=71 // pred_fallthru
          _
        // Predicated region
        $region117: #{bert_regression_forward.1} parent=71 // pred_check
          %p869 = pneg %p473
        $region118: #{bert_regression_forward.1} parent=71 // pred_check_branch
          %871 = sbr.rel (%p869) target = $region120
        $region119: #{bert_regression_forward.1} parent=71 // pred_region
          %p872 = scmp.lt.s32.totalorder %s41, 1
          %s873 = scalar_select %p872, %s41, 1
          %s874 = scalar_lea.vmem %s17, %s873
        $region120: #{bert_regression_forward.1} parent=71 // pred_fallthru
          _
      $region72: #{bert_regression_forward.1} parent=5 // pred_fallthru
        _
      %p875 = scmp.le.s32.totalorder 1, %s41
      %p876 = scmp.lt.s32.totalorder %s41, 3
      %p877 = pnand %p875, %p876
      %p878 = pneg %p877
      // Predicated region
      $region121: #{bert_regression_forward.1} parent=5 // pred_check
        _
      $region122: #{bert_regression_forward.1} parent=5 // pred_check_branch
        %880 = sbr.rel (%p877) target = $region124
      $region123: #{bert_regression_forward.1} parent=5 // pred_region
        %s881 = ssub.s32 %s41, 1
        %s882 = sand.u32 %s180, 1
        %s883 = scalar_lea.sflag [#allocation5], %s882
        %s884 = sand.u32 %s180, 1
        %s885 = smul.addr %s884, 192
        %s886 = scalar_lea.vmem [#allocation4], %s885
        // Predicated region
        $region125: #{bert_regression_forward.1} parent=123 // pred_check
          %p887 = pneg %p193
        $region126: #{bert_regression_forward.1} parent=123 // pred_check_branch
          %889 = sbr.rel (%p887) target = $region128
        $region127: #{bert_regression_forward.1} parent=123 // pred_region
          %891 = dma.done %s883, 3072
        $region128: #{bert_regression_forward.1} parent=123 // pred_fallthru
          _
        %s892 = sand.u32 %s46, 1
        %s893 = scalar_lea.sflag [#allocation7], %s892
        %s894 = sand.u32 %s336, 1
        %s895 = smul.addr %s894, 256
        %s896 = scalar_lea.vmem [#allocation6], %s895
        // Predicated region
        $region129: #{bert_regression_forward.1} parent=123 // pred_check
          %p897 = pneg %p349
        $region130: #{bert_regression_forward.1} parent=123 // pred_check_branch
          %899 = sbr.rel (%p897) target = $region132
        $region131: #{bert_regression_forward.1} parent=123 // pred_region
          %901 = dma.done %s893, 4096
        $region132: #{bert_regression_forward.1} parent=123 // pred_fallthru
          _
        %s902 = sand.u32 %s46, 1
        %s903 = scalar_lea.sflag [#allocation7], %s902
        %s904 = sand.u32 %s388, 1
        %s905 = smul.addr %s904, 256
        %s906 = scalar_lea.vmem [#allocation8], %s905
        // Predicated region
        $region133: #{bert_regression_forward.1} parent=123 // pred_check
          %p907 = pneg %p401
        $region134: #{bert_regression_forward.1} parent=123 // pred_check_branch
          %909 = sbr.rel (%p907) target = $region136
        $region135: #{bert_regression_forward.1} parent=123 // pred_region
          %911 = dma.done %s903, 4096
        $region136: #{bert_regression_forward.1} parent=123 // pred_fallthru
          _
        // Predicated region
        $region137: #{bert_regression_forward.1} parent=123 // pred_check
          %p912 = pneg %p542
        $region138: #{bert_regression_forward.1} parent=123 // pred_check_branch
          %914 = sbr.rel (%p912) target = $region140
        $region139: #{bert_regression_forward.1} parent=123 // pred_region
          %916 = dma.done [#allocation10], 1024
        $region140: #{bert_regression_forward.1} parent=123 // pred_fallthru
          _
        // Predicated region
        $region141: #{bert_regression_forward.1} parent=123 // pred_check
          %p917 = pneg %p584
        $region142: #{bert_regression_forward.1} parent=123 // pred_check_branch
          %919 = sbr.rel (%p917) target = $region144
        $region143: #{bert_regression_forward.1} parent=123 // pred_region
          %921 = dma.done [#allocation10], 1024
        $region144: #{bert_regression_forward.1} parent=123 // pred_fallthru
          _
        %p922 = pneg %p62
        %p923 = pneg %p59
        %p924 = pneg %p83
        %p925 = pneg %p80
        %p926 = pneg %p104
        %p927 = pneg %p101
        %p928 = pneg %p125
        %p929 = pneg %p122
        %p930 = pneg %p146
        %p931 = pneg %p143
        %p932 = pneg %p167
        %p933 = pneg %p164
        %s934 = sand.u32 %s180, 1
        %s935 = scalar_lea.sflag [#allocation5], %s934
        %s936 = sand.u32 %s180, 1
        %s937 = smul.addr %s936, 192
        %s938 = scalar_lea.vmem [#allocation4], %s937
        %p939 = pneg %p193
        %p940 = pneg %p190
        %p941 = scmp.lt.s32.totalorder %s46, 1
        %s942 = scalar_select %p941, %s46, 1
        %s943 = smul.addr %s942, 3
        %s944 = scalar_lea.vmem %s7, %s943
        %p945 = pneg %p219
        %p946 = pneg %p216
        %p947 = scmp.lt.s32.totalorder %s46, 1
        %s948 = scalar_select %p947, %s46, 1
        %s949 = smul.addr %s948, 16
        %s950 = smul.addr %s949, 4
        %s951 = scalar_lea.vmem %s8, %s950
        %p952 = pneg %p245
        %p953 = pneg %p242
        %p954 = scmp.lt.s32.totalorder %s46, 1
        %s955 = scalar_select %p954, %s46, 1
        %s956 = scalar_lea.vmem %s9, %s955
        %p957 = pneg %p271
        %p958 = pneg %p268
        %p959 = scmp.lt.s32.totalorder %s46, 1
        %s960 = scalar_select %p959, %s46, 1
        %s961 = scalar_lea.vmem %s10, %s960
        %p962 = pneg %p297
        %p963 = pneg %p294
        %p964 = scmp.lt.s32.totalorder %s46, 1
        %s965 = scalar_select %p964, %s46, 1
        %s966 = scalar_lea.vmem %s11, %s965
        %p967 = pneg %p323
        %p968 = pneg %p320
        %s969 = sand.u32 %s46, 1
        %s970 = scalar_lea.sflag [#allocation7], %s969
        %s971 = sand.u32 %s336, 1
        %s972 = smul.addr %s971, 256
        %s973 = scalar_lea.vmem [#allocation6], %s972
        %p974 = pneg %p349
        %p975 = pneg %p346
        %p976 = scmp.lt.s32.totalorder %s46, 1
        %s977 = scalar_select %p976, %s46, 1
        %s978 = smul.addr %s977, 4
        %s979 = scalar_lea.vmem %s13, %s978
        %p980 = pneg %p375
        %p981 = pneg %p372
        %s982 = sand.u32 %s46, 1
        %s983 = scalar_lea.sflag [#allocation7], %s982
        %s984 = sand.u32 %s388, 1
        %s985 = smul.addr %s984, 256
        %s986 = scalar_lea.vmem [#allocation8], %s985
        %p987 = pneg %p401
        %p988 = pneg %p398
        %p989 = scmp.lt.s32.totalorder %s46, 1
        %s990 = scalar_select %p989, %s46, 1
        %s991 = scalar_lea.vmem %s15, %s990
        %p992 = pneg %p427
        %p993 = pneg %p424
        %p994 = scmp.lt.s32.totalorder %s46, 1
        %s995 = scalar_select %p994, %s46, 1
        %s996 = scalar_lea.vmem %s16, %s995
        %p997 = pneg %p453
        %p998 = pneg %p450
        %p999 = scmp.lt.s32.totalorder %s46, 1
        %s1000 = scalar_select %p999, %s46, 1
        %s1001 = scalar_lea.vmem %s17, %s1000
        %p1002 = pneg %p479
        %p1003 = pneg %p476
        %p1004 = pneg %p500
        %p1005 = pneg %p497
        %p1006 = pneg %p521
        %p1007 = pneg %p518
        %p1008 = pneg %p542
        %p1009 = pneg %p539
        %p1010 = pneg %p563
        %p1011 = pneg %p560
        %p1012 = pneg %p584
        %p1013 = pneg %p581
        %p1014 = pneg %p605
        %p1015 = pneg %p602
        %p1016 = pneg %p626
        %p1017 = pneg %p623
        %p1018 = pneg %p647
        %p1019 = pneg %p644
        %p1020 = pneg %p668
        %p1021 = pneg %p665
        %p1022 = scmp.lt.s32.totalorder %s46, 1
        %s1023 = scalar_select %p1022, %s46, 1
        %s1024 = smul.addr %s1023, 3
        %s1025 = scalar_lea.vmem %s7, %s1024
        %p1026 = scmp.lt.s32.totalorder %s46, 1
        %s1027 = scalar_select %p1026, %s46, 1
        %s1028 = smul.addr %s1027, 16
        %s1029 = smul.addr %s1028, 4
        %s1030 = scalar_lea.vmem %s8, %s1029
        %p1031 = scmp.lt.s32.totalorder %s46, 1
        %s1032 = scalar_select %p1031, %s46, 1
        %s1033 = scalar_lea.vmem %s9, %s1032
        %p1034 = scmp.lt.s32.totalorder %s46, 1
        %s1035 = scalar_select %p1034, %s46, 1
        %s1036 = scalar_lea.vmem %s10, %s1035
        %p1037 = scmp.lt.s32.totalorder %s46, 1
        %s1038 = scalar_select %p1037, %s46, 1
        %s1039 = scalar_lea.vmem %s11, %s1038
        %p1040 = scmp.lt.s32.totalorder %s46, 1
        %s1041 = scalar_select %p1040, %s46, 1
        %s1042 = smul.addr %s1041, 4
        %s1043 = scalar_lea.vmem %s13, %s1042
        %p1044 = scmp.lt.s32.totalorder %s46, 1
        %s1045 = scalar_select %p1044, %s46, 1
        %s1046 = scalar_lea.vmem %s15, %s1045
        %p1047 = scmp.lt.s32.totalorder %s46, 1
        %s1048 = scalar_select %p1047, %s46, 1
        %s1049 = scalar_lea.vmem %s16, %s1048
        %p1050 = scmp.lt.s32.totalorder %s46, 1
        %s1051 = scalar_select %p1050, %s46, 1
        %s1052 = scalar_lea.vmem %s17, %s1051
        %p1054 = scmp.eq.s32.totalorder %s46, 0
        // Predicated region
        $region145: #{bert_regression_forward.1} parent=123 // pred_check
          %p1055 = pneg %p1054
        $region146: #{bert_regression_forward.1} parent=123 // pred_check_branch
          %1057 = sbr.rel (%p1055) target = $region148
        $region147: #{bert_regression_forward.1} parent=123 // pred_region
          %v1058 = vld [vmem:[%s0] sm:$0xf]
          %v1059 = vld [vmem:[%s0 + $0x4] sm:$0xf]
          %v1060 = vunpack.c.l.bf16 %v1058
          %v1061 = vunpack.c.l.bf16 %v1059
          %v1062 = vld [vmem:[%s2] sm:$0xf]
          %v1063 = vld [vmem:[%s2 + $0x4] sm:$0xf]
          %v1064 = vunpack.c.l.bf16 %v1062
          %v1065 = vunpack.c.l.bf16 %v1063
          %v1066 = vadd.f32 %v1060, %v1064
          %v1067 = vadd.f32 %v1061, %v1065
          %v1068 = vld [vmem:[%s1] sm:$0xf]
          %v1069 = vunpack.c.l.bf16 %v1068
          %v1070 = vadd.f32 %v1066, %v1069
          %v1071 = vadd.f32 %v1067, %v1069
          %v1072 = vld [vmem:[%s4] sm:$0x1]
          %v1073 = vunpack.c.l.bf16 %v1072
          %v1074 = vld [vmem:[%s5] sm:$0x1]
          %v1075 = vunpack.c.l.bf16 %v1074
          %1076 = vadd.xlane.f32.xlu0 %v1070
          %v1077 = vpop.xlane.xlu0 %1076
          %1078 = vadd.xlane.f32.xlu0 %v1071
          %v1079 = vpop.xlane.xlu0 %1078
          %v1080 = vrcp.pop 128.0
          %v1081 = vmul.f32 128.0, %v1080
          %v1082 = vsub.f32 1.0, %v1081
          %v1083 = vmul.f32 %v1080, %v1082
          %v1084 = vadd.f32 %v1080, %v1083
          %vm1085 = vweird.f32 %v1080
          %v1086 = vsel %vm1085, %v1080, %v1084
          %v1087 = vmul.f32 %v1077, %v1086
          %v1088 = vmul.f32 %v1079, %v1086
          %v1089 = vmul.f32 %v1070, %v1070
          %v1090 = vmul.f32 %v1071, %v1071
          %1091 = vadd.xlane.f32.xlu0 %v1089
          %v1092 = vpop.xlane.xlu0 %1091
          %1093 = vadd.xlane.f32.xlu0 %v1090
          %v1094 = vpop.xlane.xlu0 %1093
          %v1095 = vmul.f32 %v1092, %v1086
          %v1096 = vmul.f32 %v1094, %v1086
          %v1097 = vmul.f32 %v1087, %v1087
          %v1098 = vmul.f32 %v1088, %v1088
          %v1099 = vsub.f32 %v1095, %v1097
          %v1100 = vsub.f32 %v1096, %v1098
          %v1101 = vsub.f32 %v1070, %v1087
          %v1102 = vsub.f32 %v1071, %v1088
          %v1103 = vadd.f32 %v1099, 1e-12
          %v1104 = vadd.f32 %v1100, 1e-12
          %v1105 = vrsqrt.pop %v1103
          %v1106 = vmul.f32 %v1105, %v1103
          %v1107 = vmul.f32 %v1106, %v1105
          %v1108 = vmul.f32 0.5, %v1107
          %v1109 = vsub.f32 1.5, %v1108
          %v1110 = vmul.f32 %v1105, %v1109
          %vm1111 = vweird.f32 %v1103
          %vm1112 = vweird.f32 %v1105
          %vm1113 = vmor %vm1111, %vm1112
          %v1114 = vsel %vm1113, %v1105, %v1110
          %v1115 = vrsqrt.pop %v1104
          %v1116 = vmul.f32 %v1115, %v1104
          %v1117 = vmul.f32 %v1116, %v1115
          %v1118 = vmul.f32 0.5, %v1117
          %v1119 = vsub.f32 1.5, %v1118
          %v1120 = vmul.f32 %v1115, %v1119
          %vm1121 = vweird.f32 %v1104
          %vm1122 = vweird.f32 %v1115
          %vm1123 = vmor %vm1121, %vm1122
          %v1124 = vsel %vm1123, %v1115, %v1120
          %v1125 = vmul.f32 %v1101, %v1114
          %v1126 = vmul.f32 %v1102, %v1124
          %v1127 = vperm.slane %v1073, 0
          %v1128 = vmul.f32 %v1125, %v1127
          %v1129 = vmul.f32 %v1126, %v1127
          %v1130 = vperm.slane %v1075, 0
          %v1131 = vadd.f32 %v1128, %v1130
          %v1132 = vadd.f32 %v1129, %v1130
          %1133 = vst [vmem:[#allocation2] sm:$0xff] %v1131
          %1134 = vst [vmem:[#allocation2 + $0x8] sm:$0xff] %v1132
        $region148: #{bert_regression_forward.1} parent=123 // pred_fallthru
          _
        %v1135 = vld [vmem:[#allocation2] sm:$0xff]
        %v1136 = vld [vmem:[#allocation2 + $0x8] sm:$0xff]
        %v1137 = vld [vmem:[%s3] sm:$0x1]
        %v1138 = vld [vmem:[%s3 + $0x1] sm:$0x1]
        %v1139 = vcvt.s32.f32 %v1137
        %v1140 = vcvt.s32.f32 %v1138
        %v1141 = vsub.f32 1.0, %v1139
        %v1142 = vsub.f32 1.0, %v1140
        %v1143 = vmul.f32 %v1141, -10000.0
        %v1144 = vmul.f32 %v1142, -10000.0
        %v1145 = vpack.c.bf16 %v1136, %v1135
        %v1146 = vld [vmem:[%s886] sm:$0xff]
        %v1147 = vld [vmem:[%s886 + $0x8] sm:$0xf]
        %v1148 = vld [vmem:[%s886 + $0xc] sm:$0xff]
        %v1149 = vld [vmem:[%s886 + $0x14] sm:$0xf]
        %v1150 = vld [vmem:[%s886 + $0x18] sm:$0xff]
        %v1151 = vld [vmem:[%s886 + $0x20] sm:$0xf]
        %v1152 = vld [vmem:[%s886 + $0x24] sm:$0xff]
        %v1153 = vld [vmem:[%s886 + $0x2c] sm:$0xf]
        %v1154 = vld [vmem:[%s886 + $0x30] sm:$0xff]
        %v1155 = vld [vmem:[%s886 + $0x38] sm:$0xf]
        %v1156 = vld [vmem:[%s886 + $0x3c] sm:$0xff]
        %v1157 = vld [vmem:[%s886 + $0x44] sm:$0xf]
        %v1158 = vld [vmem:[%s886 + $0x48] sm:$0xff]
        %v1159 = vld [vmem:[%s886 + $0x50] sm:$0xf]
        %v1160 = vld [vmem:[%s886 + $0x54] sm:$0xff]
        %v1161 = vld [vmem:[%s886 + $0x5c] sm:$0xf]
        %v1162 = vld [vmem:[%s886 + $0x60] sm:$0xff]
        %v1163 = vld [vmem:[%s886 + $0x68] sm:$0xf]
        %v1164 = vld [vmem:[%s886 + $0x6c] sm:$0xff]
        %v1165 = vld [vmem:[%s886 + $0x74] sm:$0xf]
        %v1166 = vld [vmem:[%s886 + $0x78] sm:$0xff]
        %v1167 = vld [vmem:[%s886 + $0x80] sm:$0xf]
        %v1168 = vld [vmem:[%s886 + $0x84] sm:$0xff]
        %v1169 = vld [vmem:[%s886 + $0x8c] sm:$0xf]
        %v1170 = vld [vmem:[%s886 + $0x90] sm:$0xff]
        %v1171 = vld [vmem:[%s886 + $0x98] sm:$0xf]
        %v1172 = vld [vmem:[%s886 + $0x9c] sm:$0xff]
        %v1173 = vld [vmem:[%s886 + $0xa4] sm:$0xf]
        %v1174 = vld [vmem:[%s886 + $0xa8] sm:$0xff]
        %v1175 = vld [vmem:[%s886 + $0xb0] sm:$0xf]
        %v1176 = vld [vmem:[%s886 + $0xb4] sm:$0xff]
        %v1177 = vld [vmem:[%s886 + $0xbc] sm:$0xf]
        %v1178 = vld [vmem:[%s1025] sm:$0x7]
        %v1179 = vunpack.c.l.bf16 %v1178
        %v1181 = vperm.slane %v1179, 0
        %v1182 = vperm.slane %v1179, 2
        %v1183 = vperm.slane %v1179, 4
        %v1187 = vperm.slane %v1181, 0
        %v1188 = vperm.slane %v1182, 0
        %v1189 = vperm.slane %v1183, 0
        %v1222 = vunpack.c.l.b16 %v1146
        %v1223 = vunpack.c.h.b16 %v1146
        %v1224 = vunpack.c.l.b16 %v1147
        %v1225 = vunpack.c.l.b16 %v1148
        %v1226 = vunpack.c.h.b16 %v1148
        %v1227 = vunpack.c.l.b16 %v1149
        %v1228 = vunpack.c.l.b16 %v1150
        %v1229 = vunpack.c.h.b16 %v1150
        %v1230 = vunpack.c.l.b16 %v1151
        %v1231 = vunpack.c.l.b16 %v1152
        %v1232 = vunpack.c.h.b16 %v1152
        %v1233 = vunpack.c.l.b16 %v1153
        %v1234 = vunpack.c.l.b16 %v1154
        %v1235 = vunpack.c.h.b16 %v1154
        %v1236 = vunpack.c.l.b16 %v1155
        %v1237 = vunpack.c.l.b16 %v1156
        %v1238 = vunpack.c.h.b16 %v1156
        %v1239 = vunpack.c.l.b16 %v1157
        %v1240 = vunpack.c.l.b16 %v1158
        %v1241 = vunpack.c.h.b16 %v1158
        %v1242 = vunpack.c.l.b16 %v1159
        %v1243 = vunpack.c.l.b16 %v1160
        %v1244 = vunpack.c.h.b16 %v1160
        %v1245 = vunpack.c.l.b16 %v1161
        %v1246 = vunpack.c.l.b16 %v1162
        %v1247 = vunpack.c.h.b16 %v1162
        %v1248 = vunpack.c.l.b16 %v1163
        %v1249 = vunpack.c.l.b16 %v1164
        %v1250 = vunpack.c.h.b16 %v1164
        %v1251 = vunpack.c.l.b16 %v1165
        %v1252 = vunpack.c.l.b16 %v1166
        %v1253 = vunpack.c.h.b16 %v1166
        %v1254 = vunpack.c.l.b16 %v1167
        %v1255 = vunpack.c.l.b16 %v1168
        %v1256 = vunpack.c.h.b16 %v1168
        %v1257 = vunpack.c.l.b16 %v1169
        %v1258 = vunpack.c.l.b16 %v1170
        %v1259 = vunpack.c.h.b16 %v1170
        %v1260 = vunpack.c.l.b16 %v1171
        %v1261 = vunpack.c.l.b16 %v1172
        %v1262 = vunpack.c.h.b16 %v1172
        %v1263 = vunpack.c.l.b16 %v1173
        %v1264 = vunpack.c.l.b16 %v1174
        %v1265 = vunpack.c.h.b16 %v1174
        %v1266 = vunpack.c.l.b16 %v1175
        %v1267 = vunpack.c.l.b16 %v1176
        %v1268 = vunpack.c.h.b16 %v1176
        %v1269 = vunpack.c.l.b16 %v1177
        %v1270 = vpack.c.b16 %v1225, %v1222
        %v1271 = vpack.c.b16 %v1226, %v1223
        %v1272 = vpack.c.b16 %v1227, %v1224
        %v1273 = vpack.c.b16 %v1231, %v1228
        %v1274 = vpack.c.b16 %v1232, %v1229
        %v1275 = vpack.c.b16 %v1233, %v1230
        %v1276 = vpack.c.b16 %v1237, %v1234
        %v1277 = vpack.c.b16 %v1238, %v1235
        %v1278 = vpack.c.b16 %v1239, %v1236
        %v1279 = vpack.c.b16 %v1243, %v1240
        %v1280 = vpack.c.b16 %v1244, %v1241
        %v1281 = vpack.c.b16 %v1245, %v1242
        %v1282 = vpack.c.b16 %v1249, %v1246
        %v1283 = vpack.c.b16 %v1250, %v1247
        %v1284 = vpack.c.b16 %v1251, %v1248
        %v1285 = vpack.c.b16 %v1255, %v1252
        %v1286 = vpack.c.b16 %v1256, %v1253
        %v1287 = vpack.c.b16 %v1257, %v1254
        %v1288 = vpack.c.b16 %v1261, %v1258
        %v1289 = vpack.c.b16 %v1262, %v1259
        %v1290 = vpack.c.b16 %v1263, %v1260
        %v1291 = vpack.c.b16 %v1267, %v1264
        %v1292 = vpack.c.b16 %v1268, %v1265
        %v1293 = vpack.c.b16 %v1269, %v1266
        %1318 = vmatpush.bf16.msra.mxu0 %v1291
        %1319 = vmatpush.bf16.msra.mxu0 %v1288
        %1320 = vmatpush.bf16.msra.mxu0 %v1285
        %1321 = vmatpush.bf16.msra.mxu0 %v1282
        %1322 = vmatpush.bf16.msra.mxu0 %v1279
        %1323 = vmatpush.bf16.msra.mxu0 %v1276
        %1324 = vmatpush.bf16.msra.mxu0 %v1273
        %1325 = vmatpush.bf16.msra.mxu0 %v1270
        %1326 = vmatmul.bf16.gmra.mxu0 %v1145
        %v1327 = vpop.f32.mrf.mxu0
        %v1328 = vadd.f32 %v1187, %v1327
        %v1329 = vpop.f32.mrf.mxu0
        %v1330 = vadd.f32 %v1187, %v1329
        %1331 = vdwg.mxu0
        %1332 = vmatpush.bf16.msra.mxu0 %v1292
        %1333 = vmatpush.bf16.msra.mxu0 %v1289
        %1334 = vmatpush.bf16.msra.mxu0 %v1286
        %1335 = vmatpush.bf16.msra.mxu0 %v1283
        %1336 = vmatpush.bf16.msra.mxu0 %v1280
        %1337 = vmatpush.bf16.msra.mxu0 %v1277
        %1338 = vmatpush.bf16.msra.mxu0 %v1274
        %1339 = vmatpush.bf16.msra.mxu0 %v1271
        %1340 = vmatmul.bf16.gmra.mxu0 %v1145
        %v1341 = vpop.f32.mrf.mxu0
        %v1342 = vadd.f32 %v1188, %v1341
        %v1343 = vpop.f32.mrf.mxu0
        %v1344 = vadd.f32 %v1188, %v1343
        %1345 = vdwg.mxu0
        %1346 = vmatpush.bf16.msra.mxu0 %v1293
        %1347 = vmatpush.bf16.msra.mxu0 %v1290
        %1348 = vmatpush.bf16.msra.mxu0 %v1287
        %1349 = vmatpush.bf16.msra.mxu0 %v1284
        %1350 = vmatpush.bf16.msra.mxu0 %v1281
        %1351 = vmatpush.bf16.msra.mxu0 %v1278
        %1352 = vmatpush.bf16.msra.mxu0 %v1275
        %1353 = vmatpush.bf16.msra.mxu0 %v1272
        %1354 = vmatmul.bf16.gmra.mxu0 %v1145
        %v1355 = vpop.f32.mrf.mxu0
        %v1356 = vadd.f32 %v1189, %v1355
        %v1357 = vpop.f32.mrf.mxu0
        %v1358 = vadd.f32 %v1189, %v1357
        %1359 = vdwg.mxu0
        %v1360 = vpack.c.bf16 %v1342, %v1342
        %v1361 = vpack.c.bf16 %v1344, %v1344
        %v1362 = vlaneseq
        %v1363 = vand.u32 %v1362, 127
        %vm1364 = vcmp.ge.s32.totalorder %v1363, 0
        %vm1365 = vcmp.lt.s32.totalorder %v1363, 64
        %vm1366 = vmand %vm1364, %vm1365
        %v1367 = vsel %vm1366, 1.0, 0.0
        %v1368 = vmul.f32 %v1328, %v1367
        %v1369 = vmul.f32 %v1330, %v1367
        %v1370 = vpack.c.bf16 %v1368, %v1368
        %v1371 = vpack.c.bf16 %v1369, %v1369
        %1372 = vmatpush.bf16.xpose.msra.mxu0 0
        %1373 = vmatpush.bf16.xpose.msra.mxu0 0
        %1374 = vmatpush.bf16.xpose.msra.mxu0 0
        %1375 = vmatpush.bf16.xpose.msra.mxu0 0
        %1376 = vmatpush.bf16.xpose.msra.mxu0 0
        %1377 = vmatpush.bf16.xpose.msra.mxu0 0
        %1378 = vmatpush.bf16.xpose.msra.mxu0 0
        %1379 = vmatpush.bf16.xpose.msra.mxu0 %v1360
        %1380 = vmatmul.bf16.gmra.mxu0 %v1370
        %v1381 = vpop.f32.mrf.mxu0
        %v1382 = vadd.f32 0.0, %v1381
        %v1383 = vpop.f32.mrf.mxu0
        %1384 = vdwg.mxu0
        %1385 = vmatpush.bf16.xpose.msra.mxu0 0
        %1386 = vmatpush.bf16.xpose.msra.mxu0 0
        %1387 = vmatpush.bf16.xpose.msra.mxu0 0
        %1388 = vmatpush.bf16.xpose.msra.mxu0 0
        %1389 = vmatpush.bf16.xpose.msra.mxu0 0
        %1390 = vmatpush.bf16.xpose.msra.mxu0 0
        %1391 = vmatpush.bf16.xpose.msra.mxu0 0
        %1392 = vmatpush.bf16.xpose.msra.mxu0 %v1361
        %1393 = vmatmul.bf16.gmra.mxu0 %v1371
        %v1394 = vpop.f32.mrf.mxu0
        %v1395 = vadd.f32 0.0, %v1394
        %v1396 = vpop.f32.mrf.mxu0
        %1397 = vdwg.mxu0
        %v1398 = vmul.f32 %v1382, 0.125
        %v1399 = vmul.f32 %v1395, 0.125
        %v1402 = vperm.slane %v1143, 0
        %v1403 = vperm.slane %v1144, 0
        %v1406 = vadd.f32 %v1398, %v1402
        %v1407 = vadd.f32 %v1399, %v1403
        %vm1408 = vcmask 64512
        %v1409 = vsel %vm1408, %v1406, -inf
        %1410 = vmax.xlane.f32.xlu0 %v1409
        %v1411 = vpop.xlane.xlu0 %1410
        %v1412 = vsel %vm1408, %v1407, -inf
        %1413 = vmax.xlane.f32.xlu0 %v1412
        %v1414 = vpop.xlane.xlu0 %1413
        %v1415 = vsub.f32 %v1406, %v1411
        %v1416 = vsub.f32 %v1407, %v1414
        %v1417 = vmul.f32 %v1415, 1.442695
        %v1418 = vpow.pop %v1417
        %v1419 = vmul.f32 %v1416, 1.442695
        %v1420 = vpow.pop %v1419
        %v1421 = vsel %vm1408, %v1418, 0.0
        %1422 = vadd.xlane.f32.xlu0 %v1421
        %v1423 = vpop.xlane.xlu0 %1422
        %v1424 = vsel %vm1408, %v1420, 0.0
        %1425 = vadd.xlane.f32.xlu0 %v1424
        %v1426 = vpop.xlane.xlu0 %1425
        %v1427 = vrcp.pop %v1423
        %v1428 = vrcp.pop %v1426
        %v1429 = vmul.f32 %v1418, %v1427
        %v1430 = vmul.f32 %v1420, %v1428
        %v1431 = vmul.f32 %v1356, %v1367
        %v1432 = vmul.f32 %v1358, %v1367
        %v1433 = vpack.c.bf16 %v1431, %v1431
        %v1434 = vpack.c.bf16 %v1432, %v1432
        %v1435 = vpack.c.bf16 %v1429, %v1429
        %v1436 = vpack.c.bf16 %v1430, %v1430
        %vm1437 = vcmp.ge.s32.totalorder %v1363, 64
        %vm1438 = vcmp.lt.s32.totalorder %v1363, 128
        %vm1439 = vmand %vm1437, %vm1438
        %v1440 = vsel %vm1439, 1.0, 0.0
        %v1441 = vmul.f32 %v1328, %v1440
        %v1442 = vmul.f32 %v1330, %v1440
        %v1443 = vpack.c.bf16 %v1441, %v1441
        %v1444 = vpack.c.bf16 %v1442, %v1442
        %1445 = vmatpush.bf16.xpose.msra.mxu0 0
        %1446 = vmatpush.bf16.xpose.msra.mxu0 0
        %1447 = vmatpush.bf16.xpose.msra.mxu0 0
        %1448 = vmatpush.bf16.xpose.msra.mxu0 0
        %1449 = vmatpush.bf16.xpose.msra.mxu0 0
        %1450 = vmatpush.bf16.xpose.msra.mxu0 0
        %1451 = vmatpush.bf16.xpose.msra.mxu0 0
        %1452 = vmatpush.bf16.xpose.msra.mxu0 %v1360
        %1453 = vmatmul.bf16.gmra.mxu0 %v1443
        %v1454 = vpop.f32.mrf.mxu0
        %v1455 = vadd.f32 0.0, %v1454
        %v1456 = vpop.f32.mrf.mxu0
        %1457 = vdwg.mxu0
        %1458 = vmatpush.bf16.xpose.msra.mxu0 0
        %1459 = vmatpush.bf16.xpose.msra.mxu0 0
        %1460 = vmatpush.bf16.xpose.msra.mxu0 0
        %1461 = vmatpush.bf16.xpose.msra.mxu0 0
        %1462 = vmatpush.bf16.xpose.msra.mxu0 0
        %1463 = vmatpush.bf16.xpose.msra.mxu0 0
        %1464 = vmatpush.bf16.xpose.msra.mxu0 0
        %1465 = vmatpush.bf16.xpose.msra.mxu0 %v1361
        %1466 = vmatmul.bf16.gmra.mxu0 %v1444
        %v1467 = vpop.f32.mrf.mxu0
        %v1468 = vadd.f32 0.0, %v1467
        %v1469 = vpop.f32.mrf.mxu0
        %1470 = vdwg.mxu0
        %v1471 = vmul.f32 %v1455, 0.125
        %v1472 = vmul.f32 %v1468, 0.125
        %v1473 = vadd.f32 %v1471, %v1402
        %v1474 = vadd.f32 %v1472, %v1403
        %v1475 = vsel %vm1408, %v1473, -inf
        %1476 = vmax.xlane.f32.xlu0 %v1475
        %v1477 = vpop.xlane.xlu0 %1476
        %v1478 = vsel %vm1408, %v1474, -inf
        %1479 = vmax.xlane.f32.xlu0 %v1478
        %v1480 = vpop.xlane.xlu0 %1479
        %v1481 = vsub.f32 %v1473, %v1477
        %v1482 = vsub.f32 %v1474, %v1480
        %v1483 = vmul.f32 %v1481, 1.442695
        %v1484 = vpow.pop %v1483
        %v1485 = vmul.f32 %v1482, 1.442695
        %v1486 = vpow.pop %v1485
        %v1487 = vsel %vm1408, %v1484, 0.0
        %1488 = vadd.xlane.f32.xlu0 %v1487
        %v1489 = vpop.xlane.xlu0 %1488
        %v1490 = vsel %vm1408, %v1486, 0.0
        %1491 = vadd.xlane.f32.xlu0 %v1490
        %v1492 = vpop.xlane.xlu0 %1491
        %v1493 = vrcp.pop %v1489
        %v1494 = vrcp.pop %v1492
        %v1495 = vmul.f32 %v1484, %v1493
        %v1496 = vmul.f32 %v1486, %v1494
        %v1497 = vmul.f32 %v1356, %v1440
        %v1498 = vmul.f32 %v1358, %v1440
        %v1499 = vpack.c.bf16 %v1497, %v1497
        %v1500 = vpack.c.bf16 %v1498, %v1498
        %v1501 = vpack.c.bf16 %v1495, %v1495
        %v1502 = vpack.c.bf16 %v1496, %v1496
        %v1504 = vsel %vm1408, %v1501, 0
        %vm1506 = vcmask 1043456
        %v1508 = vsel %vm1506, %v1499, 0
        %1510 = vmatpush.bf16.msra.mxu0 0
        %1511 = vmatpush.bf16.msra.mxu0 0
        %1512 = vmatpush.bf16.msra.mxu0 0
        %1513 = vmatpush.bf16.msra.mxu0 0
        %1514 = vmatpush.bf16.msra.mxu0 0
        %1515 = vmatpush.bf16.msra.mxu0 0
        %1516 = vmatpush.bf16.msra.mxu0 0
        %1517 = vmatpush.bf16.msra.mxu0 %v1508
        %1518 = vmatmul.bf16.gmra.mxu0 %v1504
        %v1519 = vpop.f32.mrf.mxu0
        %v1520 = vadd.f32 0.0, %v1519
        %v1521 = vpop.f32.mrf.mxu0
        %1522 = vdwg.mxu0
        %v1524 = vsel %vm1408, %v1502, 0
        %v1527 = vsel %vm1506, %v1500, 0
        %1529 = vmatpush.bf16.msra.mxu0 0
        %1530 = vmatpush.bf16.msra.mxu0 0
        %1531 = vmatpush.bf16.msra.mxu0 0
        %1532 = vmatpush.bf16.msra.mxu0 0
        %1533 = vmatpush.bf16.msra.mxu0 0
        %1534 = vmatpush.bf16.msra.mxu0 0
        %1535 = vmatpush.bf16.msra.mxu0 0
        %1536 = vmatpush.bf16.msra.mxu0 %v1527
        %1537 = vmatmul.bf16.gmra.mxu0 %v1524
        %v1538 = vpop.f32.mrf.mxu0
        %v1539 = vadd.f32 0.0, %v1538
        %v1540 = vpop.f32.mrf.mxu0
        %1541 = vdwg.mxu0
        %v1543 = vsel %vm1408, %v1435, 0
        %v1546 = vsel %vm1506, %v1433, 0
        %1548 = vmatpush.bf16.msra.mxu0 0
        %1549 = vmatpush.bf16.msra.mxu0 0
        %1550 = vmatpush.bf16.msra.mxu0 0
        %1551 = vmatpush.bf16.msra.mxu0 0
        %1552 = vmatpush.bf16.msra.mxu0 0
        %1553 = vmatpush.bf16.msra.mxu0 0
        %1554 = vmatpush.bf16.msra.mxu0 0
        %1555 = vmatpush.bf16.msra.mxu0 %v1546
        %1556 = vmatmul.bf16.gmra.mxu0 %v1543
        %v1557 = vpop.f32.mrf.mxu0
        %v1558 = vadd.f32 %v1520, %v1557
        %v1559 = vpop.f32.mrf.mxu0
        %1560 = vdwg.mxu0
        %v1562 = vsel %vm1408, %v1436, 0
        %v1565 = vsel %vm1506, %v1434, 0
        %1567 = vmatpush.bf16.msra.mxu0 0
        %1568 = vmatpush.bf16.msra.mxu0 0
        %1569 = vmatpush.bf16.msra.mxu0 0
        %1570 = vmatpush.bf16.msra.mxu0 0
        %1571 = vmatpush.bf16.msra.mxu0 0
        %1572 = vmatpush.bf16.msra.mxu0 0
        %1573 = vmatpush.bf16.msra.mxu0 0
        %1574 = vmatpush.bf16.msra.mxu0 %v1565
        %1575 = vmatmul.bf16.gmra.mxu0 %v1562
        %v1576 = vpop.f32.mrf.mxu0
        %v1577 = vadd.f32 %v1539, %v1576
        %v1578 = vpop.f32.mrf.mxu0
        %1579 = vdwg.mxu0
        %v1580 = vpack.c.bf16 %v1577, %v1558
        %v1581 = vld [vmem:[%s1030] sm:$0xf]
        %v1582 = vld [vmem:[%s1030 + $0x4] sm:$0xf]
        %v1583 = vld [vmem:[%s1030 + $0x8] sm:$0xf]
        %v1584 = vld [vmem:[%s1030 + $0xc] sm:$0xf]
        %v1585 = vld [vmem:[%s1030 + $0x10] sm:$0xf]
        %v1586 = vld [vmem:[%s1030 + $0x14] sm:$0xf]
        %v1587 = vld [vmem:[%s1030 + $0x18] sm:$0xf]
        %v1588 = vld [vmem:[%s1030 + $0x1c] sm:$0xf]
        %v1589 = vld [vmem:[%s1030 + $0x20] sm:$0xf]
        %v1590 = vld [vmem:[%s1030 + $0x24] sm:$0xf]
        %v1591 = vld [vmem:[%s1030 + $0x28] sm:$0xf]
        %v1592 = vld [vmem:[%s1030 + $0x2c] sm:$0xf]
        %v1593 = vld [vmem:[%s1030 + $0x30] sm:$0xf]
        %v1594 = vld [vmem:[%s1030 + $0x34] sm:$0xf]
        %v1595 = vld [vmem:[%s1030 + $0x38] sm:$0xf]
        %v1596 = vld [vmem:[%s1030 + $0x3c] sm:$0xf]
        %v1597 = vld [vmem:[%s1033] sm:$0x1]
        %v1598 = vunpack.c.l.bf16 %v1597
        %v1599 = vperm.slane %v1598, 0
        %v1616 = vunpack.c.l.b16 %v1581
        %v1617 = vunpack.c.l.b16 %v1582
        %v1618 = vunpack.c.l.b16 %v1583
        %v1619 = vunpack.c.l.b16 %v1584
        %v1620 = vunpack.c.l.b16 %v1585
        %v1621 = vunpack.c.l.b16 %v1586
        %v1622 = vunpack.c.l.b16 %v1587
        %v1623 = vunpack.c.l.b16 %v1588
        %v1624 = vunpack.c.l.b16 %v1589
        %v1625 = vunpack.c.l.b16 %v1590
        %v1626 = vunpack.c.l.b16 %v1591
        %v1627 = vunpack.c.l.b16 %v1592
        %v1628 = vunpack.c.l.b16 %v1593
        %v1629 = vunpack.c.l.b16 %v1594
        %v1630 = vunpack.c.l.b16 %v1595
        %v1631 = vunpack.c.l.b16 %v1596
        %v1632 = vpack.c.b16 %v1617, %v1616
        %v1633 = vpack.c.b16 %v1619, %v1618
        %v1634 = vpack.c.b16 %v1621, %v1620
        %v1635 = vpack.c.b16 %v1623, %v1622
        %v1636 = vpack.c.b16 %v1625, %v1624
        %v1637 = vpack.c.b16 %v1627, %v1626
        %v1638 = vpack.c.b16 %v1629, %v1628
        %v1639 = vpack.c.b16 %v1631, %v1630
        %1648 = vmatpush.bf16.msra.mxu0 %v1639
        %1649 = vmatpush.bf16.msra.mxu0 %v1638
        %1650 = vmatpush.bf16.msra.mxu0 %v1637
        %1651 = vmatpush.bf16.msra.mxu0 %v1636
        %1652 = vmatpush.bf16.msra.mxu0 %v1635
        %1653 = vmatpush.bf16.msra.mxu0 %v1634
        %1654 = vmatpush.bf16.msra.mxu0 %v1633
        %1655 = vmatpush.bf16.msra.mxu0 %v1632
        %1656 = vmatmul.bf16.gmra.mxu0 %v1580
        %v1657 = vpop.f32.mrf.mxu0
        %v1658 = vadd.f32 %v1599, %v1657
        %v1659 = vpop.f32.mrf.mxu0
        %v1660 = vadd.f32 %v1599, %v1659
        %1661 = vdwg.mxu0
        %v1662 = vadd.f32 %v1658, %v1135
        %v1663 = vadd.f32 %v1660, %v1136
        %v1664 = vld [vmem:[%s1036] sm:$0x1]
        %v1665 = vunpack.c.l.bf16 %v1664
        %v1666 = vld [vmem:[%s1039] sm:$0x1]
        %v1667 = vunpack.c.l.bf16 %v1666
        %1668 = vadd.xlane.f32.xlu0 %v1662
        %v1669 = vpop.xlane.xlu0 %1668
        %1670 = vadd.xlane.f32.xlu0 %v1663
        %v1671 = vpop.xlane.xlu0 %1670
        %v1672 = vrcp.pop 128.0
        %v1673 = vmul.f32 128.0, %v1672
        %v1674 = vsub.f32 1.0, %v1673
        %v1675 = vmul.f32 %v1672, %v1674
        %v1676 = vadd.f32 %v1672, %v1675
        %vm1677 = vweird.f32 %v1672
        %v1678 = vsel %vm1677, %v1672, %v1676
        %v1679 = vmul.f32 %v1669, %v1678
        %v1680 = vmul.f32 %v1671, %v1678
        %v1681 = vmul.f32 %v1662, %v1662
        %v1682 = vmul.f32 %v1663, %v1663
        %1683 = vadd.xlane.f32.xlu0 %v1681
        %v1684 = vpop.xlane.xlu0 %1683
        %1685 = vadd.xlane.f32.xlu0 %v1682
        %v1686 = vpop.xlane.xlu0 %1685
        %v1687 = vmul.f32 %v1684, %v1678
        %v1688 = vmul.f32 %v1686, %v1678
        %v1689 = vmul.f32 %v1679, %v1679
        %v1690 = vmul.f32 %v1680, %v1680
        %v1691 = vsub.f32 %v1687, %v1689
        %v1692 = vsub.f32 %v1688, %v1690
        %v1693 = vsub.f32 %v1662, %v1679
        %v1694 = vsub.f32 %v1663, %v1680
        %v1695 = vadd.f32 %v1691, 1e-12
        %v1696 = vadd.f32 %v1692, 1e-12
        %v1697 = vrsqrt.pop %v1695
        %v1698 = vmul.f32 %v1697, %v1695
        %v1699 = vmul.f32 %v1698, %v1697
        %v1700 = vmul.f32 0.5, %v1699
        %v1701 = vsub.f32 1.5, %v1700
        %v1702 = vmul.f32 %v1697, %v1701
        %vm1703 = vweird.f32 %v1695
        %vm1704 = vweird.f32 %v1697
        %vm1705 = vmor %vm1703, %vm1704
        %v1706 = vsel %vm1705, %v1697, %v1702
        %v1707 = vrsqrt.pop %v1696
        %v1708 = vmul.f32 %v1707, %v1696
        %v1709 = vmul.f32 %v1708, %v1707
        %v1710 = vmul.f32 0.5, %v1709
        %v1711 = vsub.f32 1.5, %v1710
        %v1712 = vmul.f32 %v1707, %v1711
        %vm1713 = vweird.f32 %v1696
        %vm1714 = vweird.f32 %v1707
        %vm1715 = vmor %vm1713, %vm1714
        %v1716 = vsel %vm1715, %v1707, %v1712
        %v1717 = vmul.f32 %v1693, %v1706
        %v1718 = vmul.f32 %v1694, %v1716
        %v1719 = vperm.slane %v1665, 0
        %v1720 = vmul.f32 %v1717, %v1719
        %v1721 = vmul.f32 %v1718, %v1719
        %v1722 = vperm.slane %v1667, 0
        %v1723 = vadd.f32 %v1720, %v1722
        %v1724 = vadd.f32 %v1721, %v1722
        %v1725 = vpack.c.bf16 %v1724, %v1723
        %v1726 = vld [vmem:[%s896] sm:$0xff]
        %v1727 = vld [vmem:[%s896 + $0x8] sm:$0xff]
        %v1728 = vld [vmem:[%s896 + $0x10] sm:$0xff]
        %v1729 = vld [vmem:[%s896 + $0x18] sm:$0xff]
        %v1730 = vld [vmem:[%s896 + $0x20] sm:$0xff]
        %v1731 = vld [vmem:[%s896 + $0x28] sm:$0xff]
        %v1732 = vld [vmem:[%s896 + $0x30] sm:$0xff]
        %v1733 = vld [vmem:[%s896 + $0x38] sm:$0xff]
        %v1734 = vld [vmem:[%s896 + $0x40] sm:$0xff]
        %v1735 = vld [vmem:[%s896 + $0x48] sm:$0xff]
        %v1736 = vld [vmem:[%s896 + $0x50] sm:$0xff]
        %v1737 = vld [vmem:[%s896 + $0x58] sm:$0xff]
        %v1738 = vld [vmem:[%s896 + $0x60] sm:$0xff]
        %v1739 = vld [vmem:[%s896 + $0x68] sm:$0xff]
        %v1740 = vld [vmem:[%s896 + $0x70] sm:$0xff]
        %v1741 = vld [vmem:[%s896 + $0x78] sm:$0xff]
        %v1742 = vld [vmem:[%s896 + $0x80] sm:$0xff]
        %v1743 = vld [vmem:[%s896 + $0x88] sm:$0xff]
        %v1744 = vld [vmem:[%s896 + $0x90] sm:$0xff]
        %v1745 = vld [vmem:[%s896 + $0x98] sm:$0xff]
        %v1746 = vld [vmem:[%s896 + $0xa0] sm:$0xff]
        %v1747 = vld [vmem:[%s896 + $0xa8] sm:$0xff]
        %v1748 = vld [vmem:[%s896 + $0xb0] sm:$0xff]
        %v1749 = vld [vmem:[%s896 + $0xb8] sm:$0xff]
        %v1750 = vld [vmem:[%s896 + $0xc0] sm:$0xff]
        %v1751 = vld [vmem:[%s896 + $0xc8] sm:$0xff]
        %v1752 = vld [vmem:[%s896 + $0xd0] sm:$0xff]
        %v1753 = vld [vmem:[%s896 + $0xd8] sm:$0xff]
        %v1754 = vld [vmem:[%s896 + $0xe0] sm:$0xff]
        %v1755 = vld [vmem:[%s896 + $0xe8] sm:$0xff]
        %v1756 = vld [vmem:[%s896 + $0xf0] sm:$0xff]
        %v1757 = vld [vmem:[%s896 + $0xf8] sm:$0xff]
        %v1758 = vld [vmem:[%s1043] sm:$0xf]
        %v1759 = vunpack.c.l.bf16 %v1758
        %v1761 = vperm.slane %v1759, 0
        %v1762 = vperm.slane %v1759, 2
        %v1763 = vperm.slane %v1759, 4
        %v1764 = vperm.slane %v1759, 6
        %v1769 = vperm.slane %v1761, 0
        %v1770 = vperm.slane %v1762, 0
        %v1771 = vperm.slane %v1763, 0
        %v1772 = vperm.slane %v1764, 0
        %v1805 = vunpack.c.l.b16 %v1726
        %v1806 = vunpack.c.h.b16 %v1726
        %v1807 = vunpack.c.l.b16 %v1727
        %v1808 = vunpack.c.h.b16 %v1727
        %v1809 = vunpack.c.l.b16 %v1728
        %v1810 = vunpack.c.h.b16 %v1728
        %v1811 = vunpack.c.l.b16 %v1729
        %v1812 = vunpack.c.h.b16 %v1729
        %v1813 = vunpack.c.l.b16 %v1730
        %v1814 = vunpack.c.h.b16 %v1730
        %v1815 = vunpack.c.l.b16 %v1731
        %v1816 = vunpack.c.h.b16 %v1731
        %v1817 = vunpack.c.l.b16 %v1732
        %v1818 = vunpack.c.h.b16 %v1732
        %v1819 = vunpack.c.l.b16 %v1733
        %v1820 = vunpack.c.h.b16 %v1733
        %v1821 = vunpack.c.l.b16 %v1734
        %v1822 = vunpack.c.h.b16 %v1734
        %v1823 = vunpack.c.l.b16 %v1735
        %v1824 = vunpack.c.h.b16 %v1735
        %v1825 = vunpack.c.l.b16 %v1736
        %v1826 = vunpack.c.h.b16 %v1736
        %v1827 = vunpack.c.l.b16 %v1737
        %v1828 = vunpack.c.h.b16 %v1737
        %v1829 = vunpack.c.l.b16 %v1738
        %v1830 = vunpack.c.h.b16 %v1738
        %v1831 = vunpack.c.l.b16 %v1739
        %v1832 = vunpack.c.h.b16 %v1739
        %v1833 = vunpack.c.l.b16 %v1740
        %v1834 = vunpack.c.h.b16 %v1740
        %v1835 = vunpack.c.l.b16 %v1741
        %v1836 = vunpack.c.h.b16 %v1741
        %v1837 = vunpack.c.l.b16 %v1742
        %v1838 = vunpack.c.h.b16 %v1742
        %v1839 = vunpack.c.l.b16 %v1743
        %v1840 = vunpack.c.h.b16 %v1743
        %v1841 = vunpack.c.l.b16 %v1744
        %v1842 = vunpack.c.h.b16 %v1744
        %v1843 = vunpack.c.l.b16 %v1745
        %v1844 = vunpack.c.h.b16 %v1745
        %v1845 = vunpack.c.l.b16 %v1746
        %v1846 = vunpack.c.h.b16 %v1746
        %v1847 = vunpack.c.l.b16 %v1747
        %v1848 = vunpack.c.h.b16 %v1747
        %v1849 = vunpack.c.l.b16 %v1748
        %v1850 = vunpack.c.h.b16 %v1748
        %v1851 = vunpack.c.l.b16 %v1749
        %v1852 = vunpack.c.h.b16 %v1749
        %v1853 = vunpack.c.l.b16 %v1750
        %v1854 = vunpack.c.h.b16 %v1750
        %v1855 = vunpack.c.l.b16 %v1751
        %v1856 = vunpack.c.h.b16 %v1751
        %v1857 = vunpack.c.l.b16 %v1752
        %v1858 = vunpack.c.h.b16 %v1752
        %v1859 = vunpack.c.l.b16 %v1753
        %v1860 = vunpack.c.h.b16 %v1753
        %v1861 = vunpack.c.l.b16 %v1754
        %v1862 = vunpack.c.h.b16 %v1754
        %v1863 = vunpack.c.l.b16 %v1755
        %v1864 = vunpack.c.h.b16 %v1755
        %v1865 = vunpack.c.l.b16 %v1756
        %v1866 = vunpack.c.h.b16 %v1756
        %v1867 = vunpack.c.l.b16 %v1757
        %v1868 = vunpack.c.h.b16 %v1757
        %v1869 = vpack.c.b16 %v1809, %v1805
        %v1870 = vpack.c.b16 %v1810, %v1806
        %v1871 = vpack.c.b16 %v1811, %v1807
        %v1872 = vpack.c.b16 %v1812, %v1808
        %v1873 = vpack.c.b16 %v1817, %v1813
        %v1874 = vpack.c.b16 %v1818, %v1814
        %v1875 = vpack.c.b16 %v1819, %v1815
        %v1876 = vpack.c.b16 %v1820, %v1816
        %v1877 = vpack.c.b16 %v1825, %v1821
        %v1878 = vpack.c.b16 %v1826, %v1822
        %v1879 = vpack.c.b16 %v1827, %v1823
        %v1880 = vpack.c.b16 %v1828, %v1824
        %v1881 = vpack.c.b16 %v1833, %v1829
        %v1882 = vpack.c.b16 %v1834, %v1830
        %v1883 = vpack.c.b16 %v1835, %v1831
        %v1884 = vpack.c.b16 %v1836, %v1832
        %v1885 = vpack.c.b16 %v1841, %v1837
        %v1886 = vpack.c.b16 %v1842, %v1838
        %v1887 = vpack.c.b16 %v1843, %v1839
        %v1888 = vpack.c.b16 %v1844, %v1840
        %v1889 = vpack.c.b16 %v1849, %v1845
        %v1890 = vpack.c.b16 %v1850, %v1846
        %v1891 = vpack.c.b16 %v1851, %v1847
        %v1892 = vpack.c.b16 %v1852, %v1848
        %v1893 = vpack.c.b16 %v1857, %v1853
        %v1894 = vpack.c.b16 %v1858, %v1854
        %v1895 = vpack.c.b16 %v1859, %v1855
        %v1896 = vpack.c.b16 %v1860, %v1856
        %v1897 = vpack.c.b16 %v1865, %v1861
        %v1898 = vpack.c.b16 %v1866, %v1862
        %v1899 = vpack.c.b16 %v1867, %v1863
        %v1900 = vpack.c.b16 %v1868, %v1864
        %1933 = vmatpush.bf16.msra.mxu0 %v1897
        %1934 = vmatpush.bf16.msra.mxu0 %v1893
        %1935 = vmatpush.bf16.msra.mxu0 %v1889
        %1936 = vmatpush.bf16.msra.mxu0 %v1885
        %1937 = vmatpush.bf16.msra.mxu0 %v1881
        %1938 = vmatpush.bf16.msra.mxu0 %v1877
        %1939 = vmatpush.bf16.msra.mxu0 %v1873
        %1940 = vmatpush.bf16.msra.mxu0 %v1869
        %1941 = vmatmul.bf16.gmra.mxu0 %v1725
        %v1942 = vpop.f32.mrf.mxu0
        %v1943 = vadd.f32 %v1769, %v1942
        %v1944 = vpop.f32.mrf.mxu0
        %v1945 = vadd.f32 %v1769, %v1944
        %1946 = vdwg.mxu0
        %1947 = vmatpush.bf16.msra.mxu0 %v1898
        %1948 = vmatpush.bf16.msra.mxu0 %v1894
        %1949 = vmatpush.bf16.msra.mxu0 %v1890
        %1950 = vmatpush.bf16.msra.mxu0 %v1886
        %1951 = vmatpush.bf16.msra.mxu0 %v1882
        %1952 = vmatpush.bf16.msra.mxu0 %v1878
        %1953 = vmatpush.bf16.msra.mxu0 %v1874
        %1954 = vmatpush.bf16.msra.mxu0 %v1870
        %1955 = vmatmul.bf16.gmra.mxu0 %v1725
        %v1956 = vpop.f32.mrf.mxu0
        %v1957 = vadd.f32 %v1770, %v1956
        %v1958 = vpop.f32.mrf.mxu0
        %v1959 = vadd.f32 %v1770, %v1958
        %1960 = vdwg.mxu0
        %1961 = vmatpush.bf16.msra.mxu0 %v1899
        %1962 = vmatpush.bf16.msra.mxu0 %v1895
        %1963 = vmatpush.bf16.msra.mxu0 %v1891
        %1964 = vmatpush.bf16.msra.mxu0 %v1887
        %1965 = vmatpush.bf16.msra.mxu0 %v1883
        %1966 = vmatpush.bf16.msra.mxu0 %v1879
        %1967 = vmatpush.bf16.msra.mxu0 %v1875
        %1968 = vmatpush.bf16.msra.mxu0 %v1871
        %1969 = vmatmul.bf16.gmra.mxu0 %v1725
        %v1970 = vpop.f32.mrf.mxu0
        %v1971 = vadd.f32 %v1771, %v1970
        %v1972 = vpop.f32.mrf.mxu0
        %v1973 = vadd.f32 %v1771, %v1972
        %1974 = vdwg.mxu0
        %1975 = vmatpush.bf16.msra.mxu0 %v1900
        %1976 = vmatpush.bf16.msra.mxu0 %v1896
        %1977 = vmatpush.bf16.msra.mxu0 %v1892
        %1978 = vmatpush.bf16.msra.mxu0 %v1888
        %1979 = vmatpush.bf16.msra.mxu0 %v1884
        %1980 = vmatpush.bf16.msra.mxu0 %v1880
        %1981 = vmatpush.bf16.msra.mxu0 %v1876
        %1982 = vmatpush.bf16.msra.mxu0 %v1872
        %1983 = vmatmul.bf16.gmra.mxu0 %v1725
        %v1984 = vpop.f32.mrf.mxu0
        %v1985 = vadd.f32 %v1772, %v1984
        %v1986 = vpop.f32.mrf.mxu0
        %v1987 = vadd.f32 %v1772, %v1986
        %1988 = vdwg.mxu0
        %v1989 = vmul.f32 %v1943, %v1943
        %v1990 = vmul.f32 %v1957, %v1957
        %v1991 = vmul.f32 %v1971, %v1971
        %v1992 = vmul.f32 %v1985, %v1985
        %v1993 = vmul.f32 %v1945, %v1945
        %v1994 = vmul.f32 %v1959, %v1959
        %v1995 = vmul.f32 %v1973, %v1973
        %v1996 = vmul.f32 %v1987, %v1987
        %v1997 = vmul.f32 %v1943, %v1989
        %v1998 = vmul.f32 %v1957, %v1990
        %v1999 = vmul.f32 %v1971, %v1991
        %v2000 = vmul.f32 %v1985, %v1992
        %v2001 = vmul.f32 %v1945, %v1993
        %v2002 = vmul.f32 %v1959, %v1994
        %v2003 = vmul.f32 %v1973, %v1995
        %v2004 = vmul.f32 %v1987, %v1996
        %v2005 = vmul.f32 %v1997, 0.044715
        %v2006 = vmul.f32 %v1998, 0.044715
        %v2007 = vmul.f32 %v1999, 0.044715
        %v2008 = vmul.f32 %v2000, 0.044715
        %v2009 = vmul.f32 %v2001, 0.044715
        %v2010 = vmul.f32 %v2002, 0.044715
        %v2011 = vmul.f32 %v2003, 0.044715
        %v2012 = vmul.f32 %v2004, 0.044715
        %v2013 = vadd.f32 %v1943, %v2005
        %v2014 = vadd.f32 %v1957, %v2006
        %v2015 = vadd.f32 %v1971, %v2007
        %v2016 = vadd.f32 %v1985, %v2008
        %v2017 = vadd.f32 %v1945, %v2009
        %v2018 = vadd.f32 %v1959, %v2010
        %v2019 = vadd.f32 %v1973, %v2011
        %v2020 = vadd.f32 %v1987, %v2012
        %v2021 = vmul.f32 %v2013, 0.7978846
        %v2022 = vmul.f32 %v2014, 0.7978846
        %v2023 = vmul.f32 %v2015, 0.7978846
        %v2024 = vmul.f32 %v2016, 0.7978846
        %v2025 = vmul.f32 %v2017, 0.7978846
        %v2026 = vmul.f32 %v2018, 0.7978846
        %v2027 = vmul.f32 %v2019, 0.7978846
        %v2028 = vmul.f32 %v2020, 0.7978846
        %v2029 = vtanh.pop %v2021
        %v2030 = vtanh.pop %v2022
        %v2031 = vtanh.pop %v2023
        %v2032 = vtanh.pop %v2024
        %v2033 = vtanh.pop %v2025
        %v2034 = vtanh.pop %v2026
        %v2035 = vtanh.pop %v2027
        %v2036 = vtanh.pop %v2028
        %v2037 = vadd.f32 %v2029, 1.0
        %v2038 = vadd.f32 %v2030, 1.0
        %v2039 = vadd.f32 %v2031, 1.0
        %v2040 = vadd.f32 %v2032, 1.0
        %v2041 = vadd.f32 %v2033, 1.0
        %v2042 = vadd.f32 %v2034, 1.0
        %v2043 = vadd.f32 %v2035, 1.0
        %v2044 = vadd.f32 %v2036, 1.0
        %v2045 = vmul.f32 %v2037, 0.5
        %v2046 = vmul.f32 %v2038, 0.5
        %v2047 = vmul.f32 %v2039, 0.5
        %v2048 = vmul.f32 %v2040, 0.5
        %v2049 = vmul.f32 %v2041, 0.5
        %v2050 = vmul.f32 %v2042, 0.5
        %v2051 = vmul.f32 %v2043, 0.5
        %v2052 = vmul.f32 %v2044, 0.5
        %v2053 = vmul.f32 %v1943, %v2045
        %v2054 = vmul.f32 %v1957, %v2046
        %v2055 = vmul.f32 %v1971, %v2047
        %v2056 = vmul.f32 %v1985, %v2048
        %v2057 = vmul.f32 %v1945, %v2049
        %v2058 = vmul.f32 %v1959, %v2050
        %v2059 = vmul.f32 %v1973, %v2051
        %v2060 = vmul.f32 %v1987, %v2052
        %v2061 = vpack.c.bf16 %v2057, %v2053
        %v2062 = vpack.c.bf16 %v2058, %v2054
        %v2063 = vpack.c.bf16 %v2059, %v2055
        %v2064 = vpack.c.bf16 %v2060, %v2056
        %v2065 = vld [vmem:[%s906] sm:$0xf]
        %v2066 = vld [vmem:[%s906 + $0x4] sm:$0xf]
        %v2067 = vld [vmem:[%s906 + $0x8] sm:$0xf]
        %v2068 = vld [vmem:[%s906 + $0xc] sm:$0xf]
        %v2069 = vld [vmem:[%s906 + $0x10] sm:$0xf]
        %v2070 = vld [vmem:[%s906 + $0x14] sm:$0xf]
        %v2071 = vld [vmem:[%s906 + $0x18] sm:$0xf]
        %v2072 = vld [vmem:[%s906 + $0x1c] sm:$0xf]
        %v2073 = vld [vmem:[%s906 + $0x20] sm:$0xf]
        %v2074 = vld [vmem:[%s906 + $0x24] sm:$0xf]
        %v2075 = vld [vmem:[%s906 + $0x28] sm:$0xf]
        %v2076 = vld [vmem:[%s906 + $0x2c] sm:$0xf]
        %v2077 = vld [vmem:[%s906 + $0x30] sm:$0xf]
        %v2078 = vld [vmem:[%s906 + $0x34] sm:$0xf]
        %v2079 = vld [vmem:[%s906 + $0x38] sm:$0xf]
        %v2080 = vld [vmem:[%s906 + $0x3c] sm:$0xf]
        %v2081 = vld [vmem:[%s906 + $0x40] sm:$0xf]
        %v2082 = vld [vmem:[%s906 + $0x44] sm:$0xf]
        %v2083 = vld [vmem:[%s906 + $0x48] sm:$0xf]
        %v2084 = vld [vmem:[%s906 + $0x4c] sm:$0xf]
        %v2085 = vld [vmem:[%s906 + $0x50] sm:$0xf]
        %v2086 = vld [vmem:[%s906 + $0x54] sm:$0xf]
        %v2087 = vld [vmem:[%s906 + $0x58] sm:$0xf]
        %v2088 = vld [vmem:[%s906 + $0x5c] sm:$0xf]
        %v2089 = vld [vmem:[%s906 + $0x60] sm:$0xf]
        %v2090 = vld [vmem:[%s906 + $0x64] sm:$0xf]
        %v2091 = vld [vmem:[%s906 + $0x68] sm:$0xf]
        %v2092 = vld [vmem:[%s906 + $0x6c] sm:$0xf]
        %v2093 = vld [vmem:[%s906 + $0x70] sm:$0xf]
        %v2094 = vld [vmem:[%s906 + $0x74] sm:$0xf]
        %v2095 = vld [vmem:[%s906 + $0x78] sm:$0xf]
        %v2096 = vld [vmem:[%s906 + $0x7c] sm:$0xf]
        %v2097 = vld [vmem:[%s906 + $0x80] sm:$0xf]
        %v2098 = vld [vmem:[%s906 + $0x84] sm:$0xf]
        %v2099 = vld [vmem:[%s906 + $0x88] sm:$0xf]
        %v2100 = vld [vmem:[%s906 + $0x8c] sm:$0xf]
        %v2101 = vld [vmem:[%s906 + $0x90] sm:$0xf]
        %v2102 = vld [vmem:[%s906 + $0x94] sm:$0xf]
        %v2103 = vld [vmem:[%s906 + $0x98] sm:$0xf]
        %v2104 = vld [vmem:[%s906 + $0x9c] sm:$0xf]
        %v2105 = vld [vmem:[%s906 + $0xa0] sm:$0xf]
        %v2106 = vld [vmem:[%s906 + $0xa4] sm:$0xf]
        %v2107 = vld [vmem:[%s906 + $0xa8] sm:$0xf]
        %v2108 = vld [vmem:[%s906 + $0xac] sm:$0xf]
        %v2109 = vld [vmem:[%s906 + $0xb0] sm:$0xf]
        %v2110 = vld [vmem:[%s906 + $0xb4] sm:$0xf]
        %v2111 = vld [vmem:[%s906 + $0xb8] sm:$0xf]
        %v2112 = vld [vmem:[%s906 + $0xbc] sm:$0xf]
        %v2113 = vld [vmem:[%s906 + $0xc0] sm:$0xf]
        %v2114 = vld [vmem:[%s906 + $0xc4] sm:$0xf]
        %v2115 = vld [vmem:[%s906 + $0xc8] sm:$0xf]
        %v2116 = vld [vmem:[%s906 + $0xcc] sm:$0xf]
        %v2117 = vld [vmem:[%s906 + $0xd0] sm:$0xf]
        %v2118 = vld [vmem:[%s906 + $0xd4] sm:$0xf]
        %v2119 = vld [vmem:[%s906 + $0xd8] sm:$0xf]
        %v2120 = vld [vmem:[%s906 + $0xdc] sm:$0xf]
        %v2121 = vld [vmem:[%s906 + $0xe0] sm:$0xf]
        %v2122 = vld [vmem:[%s906 + $0xe4] sm:$0xf]
        %v2123 = vld [vmem:[%s906 + $0xe8] sm:$0xf]
        %v2124 = vld [vmem:[%s906 + $0xec] sm:$0xf]
        %v2125 = vld [vmem:[%s906 + $0xf0] sm:$0xf]
        %v2126 = vld [vmem:[%s906 + $0xf4] sm:$0xf]
        %v2127 = vld [vmem:[%s906 + $0xf8] sm:$0xf]
        %v2128 = vld [vmem:[%s906 + $0xfc] sm:$0xf]
        %v2129 = vld [vmem:[%s1046] sm:$0x1]
        %v2130 = vunpack.c.l.bf16 %v2129
        %v2131 = vperm.slane %v2130, 0
        %v2196 = vunpack.c.l.b16 %v2065
        %v2197 = vunpack.c.l.b16 %v2066
        %v2198 = vunpack.c.l.b16 %v2067
        %v2199 = vunpack.c.l.b16 %v2068
        %v2200 = vunpack.c.l.b16 %v2069
        %v2201 = vunpack.c.l.b16 %v2070
        %v2202 = vunpack.c.l.b16 %v2071
        %v2203 = vunpack.c.l.b16 %v2072
        %v2204 = vunpack.c.l.b16 %v2073
        %v2205 = vunpack.c.l.b16 %v2074
        %v2206 = vunpack.c.l.b16 %v2075
        %v2207 = vunpack.c.l.b16 %v2076
        %v2208 = vunpack.c.l.b16 %v2077
        %v2209 = vunpack.c.l.b16 %v2078
        %v2210 = vunpack.c.l.b16 %v2079
        %v2211 = vunpack.c.l.b16 %v2080
        %v2212 = vunpack.c.l.b16 %v2081
        %v2213 = vunpack.c.l.b16 %v2082
        %v2214 = vunpack.c.l.b16 %v2083
        %v2215 = vunpack.c.l.b16 %v2084
        %v2216 = vunpack.c.l.b16 %v2085
        %v2217 = vunpack.c.l.b16 %v2086
        %v2218 = vunpack.c.l.b16 %v2087
        %v2219 = vunpack.c.l.b16 %v2088
        %v2220 = vunpack.c.l.b16 %v2089
        %v2221 = vunpack.c.l.b16 %v2090
        %v2222 = vunpack.c.l.b16 %v2091
        %v2223 = vunpack.c.l.b16 %v2092
        %v2224 = vunpack.c.l.b16 %v2093
        %v2225 = vunpack.c.l.b16 %v2094
        %v2226 = vunpack.c.l.b16 %v2095
        %v2227 = vunpack.c.l.b16 %v2096
        %v2228 = vunpack.c.l.b16 %v2097
        %v2229 = vunpack.c.l.b16 %v2098
        %v2230 = vunpack.c.l.b16 %v2099
        %v2231 = vunpack.c.l.b16 %v2100
        %v2232 = vunpack.c.l.b16 %v2101
        %v2233 = vunpack.c.l.b16 %v2102
        %v2234 = vunpack.c.l.b16 %v2103
        %v2235 = vunpack.c.l.b16 %v2104
        %v2236 = vunpack.c.l.b16 %v2105
        %v2237 = vunpack.c.l.b16 %v2106
        %v2238 = vunpack.c.l.b16 %v2107
        %v2239 = vunpack.c.l.b16 %v2108
        %v2240 = vunpack.c.l.b16 %v2109
        %v2241 = vunpack.c.l.b16 %v2110
        %v2242 = vunpack.c.l.b16 %v2111
        %v2243 = vunpack.c.l.b16 %v2112
        %v2244 = vunpack.c.l.b16 %v2113
        %v2245 = vunpack.c.l.b16 %v2114
        %v2246 = vunpack.c.l.b16 %v2115
        %v2247 = vunpack.c.l.b16 %v2116
        %v2248 = vunpack.c.l.b16 %v2117
        %v2249 = vunpack.c.l.b16 %v2118
        %v2250 = vunpack.c.l.b16 %v2119
        %v2251 = vunpack.c.l.b16 %v2120
        %v2252 = vunpack.c.l.b16 %v2121
        %v2253 = vunpack.c.l.b16 %v2122
        %v2254 = vunpack.c.l.b16 %v2123
        %v2255 = vunpack.c.l.b16 %v2124
        %v2256 = vunpack.c.l.b16 %v2125
        %v2257 = vunpack.c.l.b16 %v2126
        %v2258 = vunpack.c.l.b16 %v2127
        %v2259 = vunpack.c.l.b16 %v2128
        %v2260 = vpack.c.b16 %v2197, %v2196
        %v2261 = vpack.c.b16 %v2199, %v2198
        %v2262 = vpack.c.b16 %v2201, %v2200
        %v2263 = vpack.c.b16 %v2203, %v2202
        %v2264 = vpack.c.b16 %v2205, %v2204
        %v2265 = vpack.c.b16 %v2207, %v2206
        %v2266 = vpack.c.b16 %v2209, %v2208
        %v2267 = vpack.c.b16 %v2211, %v2210
        %v2268 = vpack.c.b16 %v2213, %v2212
        %v2269 = vpack.c.b16 %v2215, %v2214
        %v2270 = vpack.c.b16 %v2217, %v2216
        %v2271 = vpack.c.b16 %v2219, %v2218
        %v2272 = vpack.c.b16 %v2221, %v2220
        %v2273 = vpack.c.b16 %v2223, %v2222
        %v2274 = vpack.c.b16 %v2225, %v2224
        %v2275 = vpack.c.b16 %v2227, %v2226
        %v2276 = vpack.c.b16 %v2229, %v2228
        %v2277 = vpack.c.b16 %v2231, %v2230
        %v2278 = vpack.c.b16 %v2233, %v2232
        %v2279 = vpack.c.b16 %v2235, %v2234
        %v2280 = vpack.c.b16 %v2237, %v2236
        %v2281 = vpack.c.b16 %v2239, %v2238
        %v2282 = vpack.c.b16 %v2241, %v2240
        %v2283 = vpack.c.b16 %v2243, %v2242
        %v2284 = vpack.c.b16 %v2245, %v2244
        %v2285 = vpack.c.b16 %v2247, %v2246
        %v2286 = vpack.c.b16 %v2249, %v2248
        %v2287 = vpack.c.b16 %v2251, %v2250
        %v2288 = vpack.c.b16 %v2253, %v2252
        %v2289 = vpack.c.b16 %v2255, %v2254
        %v2290 = vpack.c.b16 %v2257, %v2256
        %v2291 = vpack.c.b16 %v2259, %v2258
        %2324 = vmatpush.bf16.msra.mxu0 %v2267
        %2325 = vmatpush.bf16.msra.mxu0 %v2266
        %2326 = vmatpush.bf16.msra.mxu0 %v2265
        %2327 = vmatpush.bf16.msra.mxu0 %v2264
        %2328 = vmatpush.bf16.msra.mxu0 %v2263
        %2329 = vmatpush.bf16.msra.mxu0 %v2262
        %2330 = vmatpush.bf16.msra.mxu0 %v2261
        %2331 = vmatpush.bf16.msra.mxu0 %v2260
        %2332 = vmatmul.bf16.gmra.mxu0 %v2061
        %v2333 = vpop.f32.mrf.mxu0
        %v2334 = vadd.f32 %v2131, %v2333
        %v2335 = vpop.f32.mrf.mxu0
        %v2336 = vadd.f32 %v2131, %v2335
        %2337 = vdwg.mxu0
        %2338 = vmatpush.bf16.msra.mxu0 %v2275
        %2339 = vmatpush.bf16.msra.mxu0 %v2274
        %2340 = vmatpush.bf16.msra.mxu0 %v2273
        %2341 = vmatpush.bf16.msra.mxu0 %v2272
        %2342 = vmatpush.bf16.msra.mxu0 %v2271
        %2343 = vmatpush.bf16.msra.mxu0 %v2270
        %2344 = vmatpush.bf16.msra.mxu0 %v2269
        %2345 = vmatpush.bf16.msra.mxu0 %v2268
        %2346 = vmatmul.bf16.gmra.mxu0 %v2062
        %v2347 = vpop.f32.mrf.mxu0
        %v2348 = vadd.f32 %v2334, %v2347
        %v2349 = vpop.f32.mrf.mxu0
        %v2350 = vadd.f32 %v2336, %v2349
        %2351 = vdwg.mxu0
        %2352 = vmatpush.bf16.msra.mxu0 %v2283
        %2353 = vmatpush.bf16.msra.mxu0 %v2282
        %2354 = vmatpush.bf16.msra.mxu0 %v2281
        %2355 = vmatpush.bf16.msra.mxu0 %v2280
        %2356 = vmatpush.bf16.msra.mxu0 %v2279
        %2357 = vmatpush.bf16.msra.mxu0 %v2278
        %2358 = vmatpush.bf16.msra.mxu0 %v2277
        %2359 = vmatpush.bf16.msra.mxu0 %v2276
        %2360 = vmatmul.bf16.gmra.mxu0 %v2063
        %v2361 = vpop.f32.mrf.mxu0
        %v2362 = vadd.f32 %v2348, %v2361
        %v2363 = vpop.f32.mrf.mxu0
        %v2364 = vadd.f32 %v2350, %v2363
        %2365 = vdwg.mxu0
        %2366 = vmatpush.bf16.msra.mxu0 %v2291
        %2367 = vmatpush.bf16.msra.mxu0 %v2290
        %2368 = vmatpush.bf16.msra.mxu0 %v2289
        %2369 = vmatpush.bf16.msra.mxu0 %v2288
        %2370 = vmatpush.bf16.msra.mxu0 %v2287
        %2371 = vmatpush.bf16.msra.mxu0 %v2286
        %2372 = vmatpush.bf16.msra.mxu0 %v2285
        %2373 = vmatpush.bf16.msra.mxu0 %v2284
        %2374 = vmatmul.bf16.gmra.mxu0 %v2064
        %v2375 = vpop.f32.mrf.mxu0
        %v2376 = vadd.f32 %v2362, %v2375
        %v2377 = vpop.f32.mrf.mxu0
        %v2378 = vadd.f32 %v2364, %v2377
        %2379 = vdwg.mxu0
        %v2380 = vadd.f32 %v2376, %v1723
        %v2381 = vadd.f32 %v2378, %v1724
        %v2382 = vld [vmem:[%s1049] sm:$0x1]
        %v2383 = vunpack.c.l.bf16 %v2382
        %v2384 = vld [vmem:[%s1052] sm:$0x1]
        %v2385 = vunpack.c.l.bf16 %v2384
        %2386 = vadd.xlane.f32.xlu0 %v2380
        %v2387 = vpop.xlane.xlu0 %2386
        %2388 = vadd.xlane.f32.xlu0 %v2381
        %v2389 = vpop.xlane.xlu0 %2388
        %v2390 = vmul.f32 %v2387, %v1678
        %v2391 = vmul.f32 %v2389, %v1678
        %v2392 = vmul.f32 %v2380, %v2380
        %v2393 = vmul.f32 %v2381, %v2381
        %2394 = vadd.xlane.f32.xlu0 %v2392
        %v2395 = vpop.xlane.xlu0 %2394
        %2396 = vadd.xlane.f32.xlu0 %v2393
        %v2397 = vpop.xlane.xlu0 %2396
        %v2398 = vmul.f32 %v2395, %v1678
        %v2399 = vmul.f32 %v2397, %v1678
        %v2400 = vmul.f32 %v2390, %v2390
        %v2401 = vmul.f32 %v2391, %v2391
        %v2402 = vsub.f32 %v2398, %v2400
        %v2403 = vsub.f32 %v2399, %v2401
        %v2404 = vsub.f32 %v2380, %v2390
        %v2405 = vsub.f32 %v2381, %v2391
        %v2406 = vadd.f32 %v2402, 1e-12
        %v2407 = vadd.f32 %v2403, 1e-12
        %v2408 = vrsqrt.pop %v2406
        %v2409 = vmul.f32 %v2408, %v2406
        %v2410 = vmul.f32 %v2409, %v2408
        %v2411 = vmul.f32 0.5, %v2410
        %v2412 = vsub.f32 1.5, %v2411
        %v2413 = vmul.f32 %v2408, %v2412
        %vm2414 = vweird.f32 %v2406
        %vm2415 = vweird.f32 %v2408
        %vm2416 = vmor %vm2414, %vm2415
        %v2417 = vsel %vm2416, %v2408, %v2413
        %v2418 = vrsqrt.pop %v2407
        %v2419 = vmul.f32 %v2418, %v2407
        %v2420 = vmul.f32 %v2419, %v2418
        %v2421 = vmul.f32 0.5, %v2420
        %v2422 = vsub.f32 1.5, %v2421
        %v2423 = vmul.f32 %v2418, %v2422
        %vm2424 = vweird.f32 %v2407
        %vm2425 = vweird.f32 %v2418
        %vm2426 = vmor %vm2424, %vm2425
        %v2427 = vsel %vm2426, %v2418, %v2423
        %v2428 = vmul.f32 %v2404, %v2417
        %v2429 = vmul.f32 %v2405, %v2427
        %v2430 = vperm.slane %v2383, 0
        %v2431 = vmul.f32 %v2428, %v2430
        %v2432 = vmul.f32 %v2429, %v2430
        %v2433 = vperm.slane %v2385, 0
        %v2434 = vadd.f32 %v2431, %v2433
        %v2435 = vadd.f32 %v2432, %v2433
        %2436 = vst [vmem:[#allocation2] sm:$0xff] %v2434
        %2437 = vst [vmem:[#allocation2 + $0x8] sm:$0xff] %v2435
        %p2438 = scmp.eq.s32.totalorder %s46, 1
        // Predicated region
        $region149: #{bert_regression_forward.1} parent=123 // pred_check
          %p2439 = pneg %p2438
        $region150: #{bert_regression_forward.1} parent=123 // pred_check_branch
          %2441 = sbr.rel (%p2439) target = $region152
        $region151: #{bert_regression_forward.1} parent=123 // pred_region
          %v2442 = vpack.c.bf16 %v2434, %v2434
          %v2443 = vpack.c.bf16 %v2435, %v2435
          %v2444 = vld [vmem:[%s18] sm:$0xf]
          %v2445 = vld [vmem:[%s18 + $0x4] sm:$0xf]
          %v2446 = vld [vmem:[%s18 + $0x8] sm:$0xf]
          %v2447 = vld [vmem:[%s18 + $0xc] sm:$0xf]
          %v2448 = vld [vmem:[%s18 + $0x10] sm:$0xf]
          %v2449 = vld [vmem:[%s18 + $0x14] sm:$0xf]
          %v2450 = vld [vmem:[%s18 + $0x18] sm:$0xf]
          %v2451 = vld [vmem:[%s18 + $0x1c] sm:$0xf]
          %v2452 = vld [vmem:[%s18 + $0x20] sm:$0xf]
          %v2453 = vld [vmem:[%s18 + $0x24] sm:$0xf]
          %v2454 = vld [vmem:[%s18 + $0x28] sm:$0xf]
          %v2455 = vld [vmem:[%s18 + $0x2c] sm:$0xf]
          %v2456 = vld [vmem:[%s18 + $0x30] sm:$0xf]
          %v2457 = vld [vmem:[%s18 + $0x34] sm:$0xf]
          %v2458 = vld [vmem:[%s18 + $0x38] sm:$0xf]
          %v2459 = vld [vmem:[%s18 + $0x3c] sm:$0xf]
          %v2460 = vld [vmem:[%s19] sm:$0x1]
          %v2461 = vunpack.c.l.bf16 %v2460
          %v2462 = vperm.slane %v2461, 0
          %v2465 = vunpack.c.l.b16 %v2442
          %v2466 = vunpack.c.l.b16 %v2443
          %v2467 = vrot.slane %v2466, 7
          %vm2468 = vcmask 1041409
          %v2469 = vsel %vm2468, %v2467, %v2465
          %v2470 = vpack.c.b16 %v2469, %v2469
          %v2488 = vunpack.c.l.b16 %v2444
          %v2489 = vunpack.c.l.b16 %v2445
          %v2490 = vunpack.c.l.b16 %v2446
          %v2491 = vunpack.c.l.b16 %v2447
          %v2492 = vunpack.c.l.b16 %v2448
          %v2493 = vunpack.c.l.b16 %v2449
          %v2494 = vunpack.c.l.b16 %v2450
          %v2495 = vunpack.c.l.b16 %v2451
          %v2496 = vunpack.c.l.b16 %v2452
          %v2497 = vunpack.c.l.b16 %v2453
          %v2498 = vunpack.c.l.b16 %v2454
          %v2499 = vunpack.c.l.b16 %v2455
          %v2500 = vunpack.c.l.b16 %v2456
          %v2501 = vunpack.c.l.b16 %v2457
          %v2502 = vunpack.c.l.b16 %v2458
          %v2503 = vunpack.c.l.b16 %v2459
          %v2504 = vpack.c.b16 %v2489, %v2488
          %v2505 = vpack.c.b16 %v2491, %v2490
          %v2506 = vpack.c.b16 %v2493, %v2492
          %v2507 = vpack.c.b16 %v2495, %v2494
          %v2508 = vpack.c.b16 %v2497, %v2496
          %v2509 = vpack.c.b16 %v2499, %v2498
          %v2510 = vpack.c.b16 %v2501, %v2500
          %v2511 = vpack.c.b16 %v2503, %v2502
          %2520 = vmatpush.bf16.msra.mxu0 %v2511
          %2521 = vmatpush.bf16.msra.mxu0 %v2510
          %2522 = vmatpush.bf16.msra.mxu0 %v2509
          %2523 = vmatpush.bf16.msra.mxu0 %v2508
          %2524 = vmatpush.bf16.msra.mxu0 %v2507
          %2525 = vmatpush.bf16.msra.mxu0 %v2506
          %2526 = vmatpush.bf16.msra.mxu0 %v2505
          %2527 = vmatpush.bf16.msra.mxu0 %v2504
          %2528 = vmatmul.bf16.gmra.mxu0 %v2470
          %v2529 = vpop.f32.mrf.mxu0
          %v2530 = vadd.f32 %v2462, %v2529
          %v2531 = vpop.f32.mrf.mxu0
          %2532 = vdwg.mxu0
          %v2533 = vtanh.pop %v2530
          %v2534 = vpack.c.bf16 %v2533, %v2533
          %v2535 = vld [vmem:[#allocation9] sm:$0xf]
          %v2536 = vld [vmem:[#allocation9 + $0x4] sm:$0xf]
          %v2537 = vld [vmem:[#allocation9 + $0x8] sm:$0xf]
          %v2538 = vld [vmem:[#allocation9 + $0xc] sm:$0xf]
          %v2539 = vld [vmem:[#allocation9 + $0x10] sm:$0xf]
          %v2540 = vld [vmem:[#allocation9 + $0x14] sm:$0xf]
          %v2541 = vld [vmem:[#allocation9 + $0x18] sm:$0xf]
          %v2542 = vld [vmem:[#allocation9 + $0x1c] sm:$0xf]
          %v2543 = vld [vmem:[#allocation9 + $0x20] sm:$0xf]
          %v2544 = vld [vmem:[#allocation9 + $0x24] sm:$0xf]
          %v2545 = vld [vmem:[#allocation9 + $0x28] sm:$0xf]
          %v2546 = vld [vmem:[#allocation9 + $0x2c] sm:$0xf]
          %v2547 = vld [vmem:[#allocation9 + $0x30] sm:$0xf]
          %v2548 = vld [vmem:[#allocation9 + $0x34] sm:$0xf]
          %v2549 = vld [vmem:[#allocation9 + $0x38] sm:$0xf]
          %v2550 = vld [vmem:[#allocation9 + $0x3c] sm:$0xf]
          %v2551 = vld [vmem:[%s21] sm:$0x1]
          %v2552 = vunpack.c.l.bf16 %v2551
          %v2553 = vperm.slane %v2552, 0
          %v2570 = vunpack.c.l.b16 %v2535
          %v2571 = vunpack.c.l.b16 %v2536
          %v2572 = vunpack.c.l.b16 %v2537
          %v2573 = vunpack.c.l.b16 %v2538
          %v2574 = vunpack.c.l.b16 %v2539
          %v2575 = vunpack.c.l.b16 %v2540
          %v2576 = vunpack.c.l.b16 %v2541
          %v2577 = vunpack.c.l.b16 %v2542
          %v2578 = vunpack.c.l.b16 %v2543
          %v2579 = vunpack.c.l.b16 %v2544
          %v2580 = vunpack.c.l.b16 %v2545
          %v2581 = vunpack.c.l.b16 %v2546
          %v2582 = vunpack.c.l.b16 %v2547
          %v2583 = vunpack.c.l.b16 %v2548
          %v2584 = vunpack.c.l.b16 %v2549
          %v2585 = vunpack.c.l.b16 %v2550
          %v2586 = vpack.c.b16 %v2571, %v2570
          %v2587 = vpack.c.b16 %v2573, %v2572
          %v2588 = vpack.c.b16 %v2575, %v2574
          %v2589 = vpack.c.b16 %v2577, %v2576
          %v2590 = vpack.c.b16 %v2579, %v2578
          %v2591 = vpack.c.b16 %v2581, %v2580
          %v2592 = vpack.c.b16 %v2583, %v2582
          %v2593 = vpack.c.b16 %v2585, %v2584
          %2602 = vmatpush.bf16.msra.mxu0 %v2593
          %2603 = vmatpush.bf16.msra.mxu0 %v2592
          %2604 = vmatpush.bf16.msra.mxu0 %v2591
          %2605 = vmatpush.bf16.msra.mxu0 %v2590
          %2606 = vmatpush.bf16.msra.mxu0 %v2589
          %2607 = vmatpush.bf16.msra.mxu0 %v2588
          %2608 = vmatpush.bf16.msra.mxu0 %v2587
          %2609 = vmatpush.bf16.msra.mxu0 %v2586
          %2610 = vmatmul.bf16.gmra.mxu0 %v2534
          %v2611 = vpop.f32.mrf.mxu0
          %v2612 = vadd.f32 %v2553, %v2611
          %v2613 = vpop.f32.mrf.mxu0
          %2614 = vdwg.mxu0
          %v2615 = vmax.f32 %v2612, 0.0
          %v2616 = vpack.c.bf16 %v2615, %v2615
          %v2617 = vld [vmem:[#allocation11] sm:$0xf]
          %v2618 = vld [vmem:[#allocation11 + $0x4] sm:$0xf]
          %v2619 = vld [vmem:[#allocation11 + $0x8] sm:$0xf]
          %v2620 = vld [vmem:[#allocation11 + $0xc] sm:$0xf]
          %v2621 = vld [vmem:[#allocation11 + $0x10] sm:$0xf]
          %v2622 = vld [vmem:[#allocation11 + $0x14] sm:$0xf]
          %v2623 = vld [vmem:[#allocation11 + $0x18] sm:$0xf]
          %v2624 = vld [vmem:[#allocation11 + $0x1c] sm:$0xf]
          %v2625 = vld [vmem:[#allocation11 + $0x20] sm:$0xf]
          %v2626 = vld [vmem:[#allocation11 + $0x24] sm:$0xf]
          %v2627 = vld [vmem:[#allocation11 + $0x28] sm:$0xf]
          %v2628 = vld [vmem:[#allocation11 + $0x2c] sm:$0xf]
          %v2629 = vld [vmem:[#allocation11 + $0x30] sm:$0xf]
          %v2630 = vld [vmem:[#allocation11 + $0x34] sm:$0xf]
          %v2631 = vld [vmem:[#allocation11 + $0x38] sm:$0xf]
          %v2632 = vld [vmem:[#allocation11 + $0x3c] sm:$0xf]
          %v2633 = vld [vmem:[%s23] sm:$0x1]
          %v2634 = vunpack.c.l.bf16 %v2633
          %v2635 = vperm.slane %v2634, 0
          %v2652 = vunpack.c.l.b16 %v2617
          %v2653 = vunpack.c.l.b16 %v2618
          %v2654 = vunpack.c.l.b16 %v2619
          %v2655 = vunpack.c.l.b16 %v2620
          %v2656 = vunpack.c.l.b16 %v2621
          %v2657 = vunpack.c.l.b16 %v2622
          %v2658 = vunpack.c.l.b16 %v2623
          %v2659 = vunpack.c.l.b16 %v2624
          %v2660 = vunpack.c.l.b16 %v2625
          %v2661 = vunpack.c.l.b16 %v2626
          %v2662 = vunpack.c.l.b16 %v2627
          %v2663 = vunpack.c.l.b16 %v2628
          %v2664 = vunpack.c.l.b16 %v2629
          %v2665 = vunpack.c.l.b16 %v2630
          %v2666 = vunpack.c.l.b16 %v2631
          %v2667 = vunpack.c.l.b16 %v2632
          %v2668 = vpack.c.b16 %v2653, %v2652
          %v2669 = vpack.c.b16 %v2655, %v2654
          %v2670 = vpack.c.b16 %v2657, %v2656
          %v2671 = vpack.c.b16 %v2659, %v2658
          %v2672 = vpack.c.b16 %v2661, %v2660
          %v2673 = vpack.c.b16 %v2663, %v2662
          %v2674 = vpack.c.b16 %v2665, %v2664
          %v2675 = vpack.c.b16 %v2667, %v2666
          %2684 = vmatpush.bf16.msra.mxu0 %v2675
          %2685 = vmatpush.bf16.msra.mxu0 %v2674
          %2686 = vmatpush.bf16.msra.mxu0 %v2673
          %2687 = vmatpush.bf16.msra.mxu0 %v2672
          %2688 = vmatpush.bf16.msra.mxu0 %v2671
          %2689 = vmatpush.bf16.msra.mxu0 %v2670
          %2690 = vmatpush.bf16.msra.mxu0 %v2669
          %2691 = vmatpush.bf16.msra.mxu0 %v2668
          %2692 = vmatmul.bf16.gmra.mxu0 %v2616
          %v2693 = vpop.f32.mrf.mxu0
          %v2694 = vadd.f32 %v2635, %v2693
          %v2695 = vpop.f32.mrf.mxu0
          %2696 = vdwg.mxu0
          %v2697 = vmax.f32 %v2694, 0.0
          %v2698 = vld [vmem:[%s24] sm:$0x1]
          %v2699 = vunpack.c.l.bf16 %v2698
          %v2700 = vperm.slane %v2699, 0
          %v2701 = vmul.f32 %v2697, %v2700
          %vm2702 = vcmask 1041408
          %v2703 = vsel %vm2702, %v2701, 0.0
          %2704 = vadd.xlane.f32.xlu0 %v2703
          %v2705 = vpop.xlane.xlu0 %2704
          %v2706 = vld [vmem:[#allocation3] sm:$0x1]
          %v2708 = vperm.slane %v2706, 0
          %v2710 = vadd.f32 %v2705, %v2708
          %vm2711 = vcmask 1024
          %2712 = vst.msk [vmem:[%s26] sm:$0x3] %vm2711, %v2710
        $region152: #{bert_regression_forward.1} parent=123 // pred_fallthru
          _
        // Predicated region
        $region153: #{bert_regression_forward.1} parent=123 // pred_check
          %p2713 = pneg %p665
        $region154: #{bert_regression_forward.1} parent=123 // pred_check_branch
          %2715 = sbr.rel (%p2713) target = $region156
        $region155: #{bert_regression_forward.1} parent=123 // pred_region
          _
        $region156: #{bert_regression_forward.1} parent=123 // pred_fallthru
          _
        // Predicated region
        $region157: #{bert_regression_forward.1} parent=123 // pred_check
          %p2716 = pneg %p665
        $region158: #{bert_regression_forward.1} parent=123 // pred_check_branch
          %2718 = sbr.rel (%p2716) target = $region160
        $region159: #{bert_regression_forward.1} parent=123 // pred_region
          _
        $region160: #{bert_regression_forward.1} parent=123 // pred_fallthru
          _
      $region124: #{bert_regression_forward.1} parent=5 // pred_fallthru
        _
      %p2719 = scmp.le.s32.totalorder 2, %s41
      // Predicated region
      $region161: #{bert_regression_forward.1} parent=5 // pred_check
        %p2720 = pneg %p2719
      $region162: #{bert_regression_forward.1} parent=5 // pred_check_branch
        %2722 = sbr.rel (%p2720) target = $region164
      $region163: #{bert_regression_forward.1} parent=5 // pred_region
        %s2723 = ssub.s32 %s41, 2
      $region164: #{bert_regression_forward.1} parent=5 // pred_fallthru
        _
    $region6: #{bert_regression_forward.1} parent=1 // loop_footer
      %s45 = sadd.s32 1, %s41
    $region7: #{bert_regression_forward.1} parent=1 // loop_footer_branch
      %40 = sbr.rel target = $region3
    $region8: #{bert_regression_forward.1} parent=1 // loop_exit
      _
    %2724 = vsyncpa [#allocation5], 1
    %s2725 = scalar_lea.sflag [#allocation5], 1
    %2726 = vsyncpa %s2725, 1
    %2727 = vsyncpa [#allocation7], 1
    %s2728 = scalar_lea.sflag [#allocation7], 1
    %2729 = vsyncpa %s2728, 1
    %2730 = vsyncpa [#allocation10], 1

</llo_original>
